<compile_context>
chip_gen: v7x
topology: tpu7x:2x2x1
jax: 0.10.0
libtpu: 0.0.40
codegen_flags: <defaults>
</compile_context>

<pallas_src>
import jax
import jax.numpy as jnp
from jax import lax
from jax.experimental import pallas as pl
from jax.experimental.pallas import tpu as pltpu

LANES = 128


# ----------------------------- Pallas kernels ------------------------------

def _conv_pool_kernel(patches_ref, w_ref, b_ref, o_ref):
    """4 phase-GEMMs -> elementwise max over the 2x2 pool window -> bias + ReLU."""
    w = w_ref[...]                                   # (K, 128) bf16

    acc = jnp.dot(patches_ref[0, 0], w, preferred_element_type=jnp.float32)
    for p in (1, 2, 3):
        acc = jnp.maximum(
            acc, jnp.dot(patches_ref[0, p], w, preferred_element_type=jnp.float32))
    # bias + ReLU hoisted outside the phase max (exact: both are monotone elementwise).
    o_ref[0] = jnp.maximum(acc + b_ref[...], 0.0).astype(o_ref.dtype)


def _conv_pool_fc_kernel(patches_ref, w2_ref, b2_ref, wf1_ref, bf1_ref,
                         wf2_ref, bf2_ref, wf3_ref, bf3_ref, o_ref):
    """conv2 (4 phases) + pool + bias + ReLU, then the fc1->fc2->fc3 head, one call."""
    w2 = w2_ref[...]                                 # (150, 128) bf16

    acc = jnp.dot(patches_ref[0, 0], w2, preferred_element_type=jnp.float32)
    for p in (1, 2, 3):
        acc = jnp.maximum(
            acc, jnp.dot(patches_ref[0, p], w2, preferred_element_type=jnp.float32))
    p2 = jnp.maximum(acc + b2_ref[...], 0.0)                   # (25, 128): 5x5 x 16ch (padded)
    p2 = p2.astype(jnp.bfloat16)

    # fc1: accumulate over the 25 spatial positions; wf1_ref[s] is the (128, 128) weight slab
    # for spatial position s (torch's channel-major flatten is folded into the packing).
    fc_acc = jnp.zeros((1, LANES), jnp.float32)
    for s in range(25):
        fc_acc = fc_acc + jnp.dot(p2[s:s + 1, :], wf1_ref[s],
                                  preferred_element_type=jnp.float32)
    h = jnp.maximum(fc_acc + bf1_ref[...], 0.0).astype(jnp.bfloat16)       # (1, 128)
    h = jnp.maximum(jnp.dot(h, wf2_ref[...], preferred_element_type=jnp.float32)
                    + bf2_ref[...], 0.0).astype(jnp.bfloat16)              # (1, 128)
    out = (jnp.dot(h, wf3_ref[...], preferred_element_type=jnp.float32)
           + bf3_ref[...])                                                 # (1, 128)
    o_ref[0] = out.astype(o_ref.dtype)


# ------------------------- pallas_call wrappers -----------------------------

def conv_pool(patches, w, b):
    B, _, P, K = patches.shape
    return pl.pallas_call(
        _conv_pool_kernel,
        out_shape=jax.ShapeDtypeStruct((B, P, LANES), jnp.bfloat16),
        grid=(B,),
        in_specs=[
            pl.BlockSpec((1, 4, P, K), lambda i: (i, 0, 0, 0)),
            pl.BlockSpec((K, LANES), lambda i: (0, 0)),
            pl.BlockSpec((1, LANES), lambda i: (0, 0)),
        ],
        out_specs=pl.BlockSpec((1, P, LANES), lambda i: (i, 0, 0)),
        compiler_params=pltpu.CompilerParams(dimension_semantics=("parallel",)),
        cost_estimate=pl.CostEstimate(
            flops=2 * B * 4 * P * K * LANES, transcendentals=0,
            bytes_accessed=patches.size * 2 + w.size * 2 + B * P * LANES * 2),
    )(patches, w, b)


def conv_pool_fc(patches, w2, b2, wf1, bf1, wf2, bf2, wf3, bf3):
    B, _, P, K = patches.shape
    const2 = lambda i: (0, 0)
    flops = 2 * B * (4 * P * K * LANES + 25 * LANES * LANES + 2 * LANES * LANES)
    nbytes = (patches.size + w2.size + wf1.size + wf2.size + wf3.size) * 2 + B * LANES * 4
    return pl.pallas_call(
        _conv_pool_fc_kernel,
        out_shape=jax.ShapeDtypeStruct((B, 1, LANES), jnp.float32),
        grid=(B,),
        in_specs=[
            pl.BlockSpec((1, 4, P, K), lambda i: (i, 0, 0, 0)),
            pl.BlockSpec((K, LANES), const2),
            pl.BlockSpec((1, LANES), const2),
            pl.BlockSpec((25, LANES, LANES), lambda i: (0, 0, 0)),
            pl.BlockSpec((1, LANES), const2),
            pl.BlockSpec((LANES, LANES), const2),
            pl.BlockSpec((1, LANES), const2),
            pl.BlockSpec((LANES, LANES), const2),
            pl.BlockSpec((1, LANES), const2),
        ],
        out_specs=pl.BlockSpec((1, 1, LANES), lambda i: (i, 0, 0)),
        compiler_params=pltpu.CompilerParams(dimension_semantics=("parallel",)),
        cost_estimate=pl.CostEstimate(flops=flops, transcendentals=0,
                                      bytes_accessed=nbytes),
    )(patches, w2, b2, wf1, bf1, wf2, bf2, wf3, bf3)


# ------------------- one-time weight packing (hoisted) ----------------------

def _pad2(w, rows, cols):
    r, c = w.shape
    return jnp.pad(w, ((0, rows - r), (0, cols - c)))


def _pad_bias(b):
    return jnp.pad(b, (0, LANES - b.shape[0])).reshape(1, LANES).astype(jnp.float32)


def prepare_params(p):
    """Repack PyTorch-layout weights into kernel layouts (done ONCE, not per forward)."""
    bf16 = jnp.bfloat16
    # conv weights (O, Cin, kh, kw) -> im2col layout (kh*kw*Cin, O), O zero-padded to 128.
    w1 = jnp.transpose(p['conv1_w'], (2, 3, 1, 0)).reshape(75, 6)
    w2 = jnp.transpose(p['conv2_w'], (2, 3, 1, 0)).reshape(150, 16)
    # fc1 (120, 400): torch flatten order is channel-major (c*25 + i*5 + j); repack to
    # (spatial s = i*5+j, cin padded to 128, cout padded to 128).
    wf1 = p['fc1_w'].reshape(120, 16, 5, 5).transpose(2, 3, 1, 0).reshape(25, 16, 120)
    wf1 = jnp.pad(wf1, ((0, 0), (0, LANES - 16), (0, LANES - 120)))
    return {
        'w1': _pad2(w1, 75, LANES).astype(bf16),
        'b1': _pad_bias(p['conv1_b']),
        'w2': _pad2(w2, 150, LANES).astype(bf16),
        'b2': _pad_bias(p['conv2_b']),
        'wf1': wf1.astype(bf16),
        'bf1': _pad_bias(p['fc1_b']),
        'wf2': _pad2(p['fc2_w'].T, LANES, LANES).astype(bf16),
        'bf2': _pad_bias(p['fc2_b']),
        'wf3': _pad2(p['fc3_w'].T, LANES, LANES).astype(bf16),
        'bf3': _pad_bias(p['fc3_b']),
    }


# --------------------------- forward (host glue) ----------------------------

def _conv_pool_patches(x_nhwc, kh, kw, cin):
    """im2col patches for a VALID kh x kw conv followed by a 2x2 stride-2 max-pool.

    Returns (B, 4, Hp*Wp, kh*kw*cin); axis 1 indexes the 4 positions of each pool window
    (conv-output phase), letting the kernel fuse the pool as an elementwise max.
    """
    B, H, W, _ = x_nhwc.shape
    Hp, Wp = (H - kh + 1) // 2, (W - kw + 1) // 2
    phases = []
    for a in (0, 1):
        for b in (0, 1):
            taps = []
            for di in range(kh):
                for dj in range(kw):
                    taps.append(x_nhwc[:, a + di: a + di + 2 * Hp - 1: 2,
                                          b + dj: b + dj + 2 * Wp - 1: 2, :cin])
            ph = jnp.concatenate(taps, axis=-1)          # (B, Hp, Wp, kh*kw*cin)
            phases.append(ph.reshape(B, Hp * Wp, kh * kw * cin))
    return jnp.stack(phases, axis=1)                     # (B, 4, Hp*Wp, K)


@jax.jit
def net_forward(x_nchw, pp):
    B = x_nchw.shape[0]
    x = jnp.transpose(x_nchw, (0, 2, 3, 1))                           # NCHW -> NHWC
    pat1 = _conv_pool_patches(x, 5, 5, 3).astype(jnp.bfloat16)        # (B, 4, 196, 75)
    p1 = conv_pool(pat1, pp['w1'], pp['b1'])                          # (B, 196, 128) bf16
    p1 = p1.reshape(B, 14, 14, LANES)
    pat2 = _conv_pool_patches(p1, 5, 5, 6)                            # (B, 4, 25, 150) bf16
    out = conv_pool_fc(pat2, pp['w2'], pp['b2'], pp['wf1'], pp['bf1'],
                       pp['wf2'], pp['bf2'], pp['wf3'], pp['bf3'])    # (B, 1, 128)
    return out[:, 0, :10]


# --------------------------- pure-JAX reference -----------------------------

def ref_forward(x, p):
    def conv(x, w, b):
        y = lax.conv_general_dilated(x, w, (1, 1), 'VALID',
                                     dimension_numbers=('NCHW', 'OIHW', 'NCHW'))
        return y + b[None, :, None, None]

    def pool(x):
        return lax.reduce_window(x, -jnp.inf, lax.max,
                                 (1, 1, 2, 2), (1, 1, 2, 2), 'VALID')

    h = pool(jnp.maximum(conv(x, p['conv1_w'], p['conv1_b']), 0.0))
    h = pool(jnp.maximum(conv(h, p['conv2_w'], p['conv2_b']), 0.0))
    h = h.reshape(h.shape[0], -1)
    h = jnp.maximum(h @ p['fc1_w'].T + p['fc1_b'], 0.0)
    h = jnp.maximum(h @ p['fc2_w'].T + p['fc2_b'], 0.0)
    return h @ p['fc3_w'].T + p['fc3_b']


# --------------------------------- main -------------------------------------

if __name__ == "__main__":
    key = jax.random.PRNGKey(0)
    ks = jax.random.split(key, 11)

    def init(k, shape, scale=0.1):
        return scale * jax.random.normal(k, shape, jnp.float32)

    params = {
        'conv1_w': init(ks[0], (6, 3, 5, 5)),
        'conv1_b': init(ks[1], (6,)),
        'conv2_w': init(ks[2], (16, 6, 5, 5)),
        'conv2_b': init(ks[3], (16,)),
        'fc1_w': init(ks[4], (120, 400)),
        'fc1_b': init(ks[5], (120,)),
        'fc2_w': init(ks[6], (84, 120)),
        'fc2_b': init(ks[7], (84,)),
        'fc3_w': init(ks[8], (10, 84)),
        'fc3_b': init(ks[9], (10,)),
    }

    # 32x32 spatial is required by the module (fc1 expects 16*5*5 features).
    x = jax.random.normal(ks[10], (2, 3, 32, 32), jnp.float32)   # NCHW, like PyTorch

    pp = prepare_params(params)                        # one-time weight repacking

    out = jax.block_until_ready(net_forward(x, pp))
    assert out.shape == (2, 10), out.shape

    ref = ref_forward(x, params)
    # bf16 MXU inputs (f32 accumulation) -> relaxed tolerance vs. the pure-f32 reference.
    err = float(jnp.max(jnp.abs(out - ref)))
    assert bool(jnp.allclose(out, ref, rtol=5e-2, atol=1e-1)), err

    print("KERNEL_OK")
</pallas_src>

<mosaic_0001>
module attributes {stable_mosaic.version = 11 : i64} {
  func.func @_conv_pool_kernel(%arg0: i32, %arg1: memref<1x4x196x75xbf16, #tpu.memory_space<vmem>>, %arg2: memref<75x128xbf16, #tpu.memory_space<vmem>>, %arg3: memref<1x128xf32, #tpu.memory_space<vmem>>, %arg4: memref<1x196x128xbf16, #tpu.memory_space<vmem>>) attributes {dimension_semantics = [#tpu.dimension_semantics<parallel>], iteration_bounds = array<i64: 2>, scalar_prefetch = 0 : i64, scratch_operands = 0 : i64, tpu.core_type = #tpu.core_type<tc>, window_params = [{transform_indices = @transform_0, window_bounds = array<i64: 1, 4, 196, 75>}, {pipeline_mode = #tpu.pipeline_mode<synchronous>, transform_indices = @transform_1, window_bounds = array<i64: 75, 128>}, {pipeline_mode = #tpu.pipeline_mode<synchronous>, transform_indices = @transform_2, window_bounds = array<i64: 1, 128>}, {transform_indices = @transform_3, window_bounds = array<i64: 1, 196, 128>}]} {
    %c0 = arith.constant 0 : index
    %c0_0 = arith.constant 0 : index
    %0 = vector.load %arg2[%c0, %c0_0] : memref<75x128xbf16, #tpu.memory_space<vmem>>, vector<75x128xbf16>
    %c0_1 = arith.constant 0 : index
    %c0_2 = arith.constant 0 : index
    %c0_3 = arith.constant 0 : index
    %c0_4 = arith.constant 0 : index
    %1 = vector.load %arg1[%c0_1, %c0_2, %c0_3, %c0_4] : memref<1x4x196x75xbf16, #tpu.memory_space<vmem>>, vector<1x1x196x75xbf16>
    %2 = vector.shape_cast %1 : vector<1x1x196x75xbf16> to vector<196x75xbf16>
    %cst = arith.constant dense<0.000000e+00> : vector<196x128xf32>
    %3 = tpu.matmul %2, %0, %cst {dimension_numbers = #tpu.dot_dimension_numbers<[1], [0], [0], [1], [0, 0, 1, 1], [], []>} : vector<196x75xbf16>, vector<75x128xbf16>, vector<196x128xf32> -> vector<196x128xf32>
    %c0_5 = arith.constant 0 : index
    %c1 = arith.constant 1 : index
    %c0_6 = arith.constant 0 : index
    %c0_7 = arith.constant 0 : index
    %4 = vector.load %arg1[%c0_5, %c1, %c0_6, %c0_7] : memref<1x4x196x75xbf16, #tpu.memory_space<vmem>>, vector<1x1x196x75xbf16>
    %5 = vector.shape_cast %4 : vector<1x1x196x75xbf16> to vector<196x75xbf16>
    %cst_8 = arith.constant dense<0.000000e+00> : vector<196x128xf32>
    %6 = tpu.matmul %5, %0, %cst_8 {dimension_numbers = #tpu.dot_dimension_numbers<[1], [0], [0], [1], [0, 0, 1, 1], [], []>} : vector<196x75xbf16>, vector<75x128xbf16>, vector<196x128xf32> -> vector<196x128xf32>
    %7 = arith.maximumf %3, %6 : vector<196x128xf32>
    %c0_9 = arith.constant 0 : index
    %c2 = arith.constant 2 : index
    %c0_10 = arith.constant 0 : index
    %c0_11 = arith.constant 0 : index
    %8 = vector.load %arg1[%c0_9, %c2, %c0_10, %c0_11] : memref<1x4x196x75xbf16, #tpu.memory_space<vmem>>, vector<1x1x196x75xbf16>
    %9 = vector.shape_cast %8 : vector<1x1x196x75xbf16> to vector<196x75xbf16>
    %cst_12 = arith.constant dense<0.000000e+00> : vector<196x128xf32>
    %10 = tpu.matmul %9, %0, %cst_12 {dimension_numbers = #tpu.dot_dimension_numbers<[1], [0], [0], [1], [0, 0, 1, 1], [], []>} : vector<196x75xbf16>, vector<75x128xbf16>, vector<196x128xf32> -> vector<196x128xf32>
    %11 = arith.maximumf %7, %10 : vector<196x128xf32>
    %c0_13 = arith.constant 0 : index
    %c3 = arith.constant 3 : index
    %c0_14 = arith.constant 0 : index
    %c0_15 = arith.constant 0 : index
    %12 = vector.load %arg1[%c0_13, %c3, %c0_14, %c0_15] : memref<1x4x196x75xbf16, #tpu.memory_space<vmem>>, vector<1x1x196x75xbf16>
    %13 = vector.shape_cast %12 : vector<1x1x196x75xbf16> to vector<196x75xbf16>
    %cst_16 = arith.constant dense<0.000000e+00> : vector<196x128xf32>
    %14 = tpu.matmul %13, %0, %cst_16 {dimension_numbers = #tpu.dot_dimension_numbers<[1], [0], [0], [1], [0, 0, 1, 1], [], []>} : vector<196x75xbf16>, vector<75x128xbf16>, vector<196x128xf32> -> vector<196x128xf32>
    %15 = arith.maximumf %11, %14 : vector<196x128xf32>
    %c0_17 = arith.constant 0 : index
    %c0_18 = arith.constant 0 : index
    %16 = vector.load %arg3[%c0_17, %c0_18] : memref<1x128xf32, #tpu.memory_space<vmem>>, vector<1x128xf32>
    %17 = vector.broadcast %16 : vector<1x128xf32> to vector<196x128xf32>
    %18 = arith.addf %15, %17 : vector<196x128xf32>
    %cst_19 = arith.constant 0.000000e+00 : f32
    %19 = vector.broadcast %cst_19 : f32 to vector<196x128xf32>
    %20 = arith.maximumf %18, %19 : vector<196x128xf32>
    %21 = arith.truncf %20 : vector<196x128xf32> to vector<196x128xbf16>
    %c0_20 = arith.constant 0 : index
    %c0_21 = arith.constant 0 : index
    %c0_22 = arith.constant 0 : index
    %22 = vector.load %arg4[%c0_20, %c0_21, %c0_22] : memref<1x196x128xbf16, #tpu.memory_space<vmem>>, vector<1x196x128xbf16>
    %23 = vector.shape_cast %22 : vector<1x196x128xbf16> to vector<196x128xbf16>
    %24 = vector.shape_cast %21 : vector<196x128xbf16> to vector<1x196x128xbf16>
    tpu.vector_store %arg4[%c0_20, %c0_21, %c0_22], %24 {strides = array<i32>} : memref<1x196x128xbf16, #tpu.memory_space<vmem>>, vector<1x196x128xbf16>,
    return
  }
  func.func @transform_0(%arg0: i32) -> (i32, i32, i32, i32) {
    %c0_i32 = arith.constant 0 : i32
    %c0_i32_0 = arith.constant 0 : i32
    %c0_i32_1 = arith.constant 0 : i32
    %c0_i32_2 = arith.constant 0 : i32
    return %arg0, %c0_i32, %c0_i32_0, %c0_i32_1 : i32, i32, i32, i32
  }
  func.func @transform_1(%arg0: i32) -> (i32, i32) {
    %c0_i32 = arith.constant 0 : i32
    %c0_i32_0 = arith.constant 0 : i32
    %c0_i32_1 = arith.constant 0 : i32
    return %c0_i32, %c0_i32_0 : i32, i32
  }
  func.func @transform_2(%arg0: i32) -> (i32, i32) {
    %c0_i32 = arith.constant 0 : i32
    %c0_i32_0 = arith.constant 0 : i32
    %c0_i32_1 = arith.constant 0 : i32
    return %c0_i32, %c0_i32_0 : i32, i32
  }
  func.func @transform_3(%arg0: i32) -> (i32, i32, i32) {
    %c0_i32 = arith.constant 0 : i32
    %c0_i32_0 = arith.constant 0 : i32
    %c0_i32_1 = arith.constant 0 : i32
    return %arg0, %c0_i32, %c0_i32_0 : i32, i32, i32
  }
}

module attributes {stable_mosaic.version = 11 : i64} {
  func.func @_conv_pool_fc_kernel(%arg0: i32, %arg1: memref<1x4x25x150xbf16, #tpu.memory_space<vmem>>, %arg2: memref<150x128xbf16, #tpu.memory_space<vmem>>, %arg3: memref<1x128xf32, #tpu.memory_space<vmem>>, %arg4: memref<25x128x128xbf16, #tpu.memory_space<vmem>>, %arg5: memref<1x128xf32, #tpu.memory_space<vmem>>, %arg6: memref<128x128xbf16, #tpu.memory_space<vmem>>, %arg7: memref<1x128xf32, #tpu.memory_space<vmem>>, %arg8: memref<128x128xbf16, #tpu.memory_space<vmem>>, %arg9: memref<1x128xf32, #tpu.memory_space<vmem>>, %arg10: memref<1x1x128xf32, #tpu.memory_space<vmem>>) attributes {dimension_semantics = [#tpu.dimension_semantics<parallel>], iteration_bounds = array<i64: 2>, scalar_prefetch = 0 : i64, scratch_operands = 0 : i64, tpu.core_type = #tpu.core_type<tc>, window_params = [{transform_indices = @transform_0, window_bounds = array<i64: 1, 4, 25, 150>}, {pipeline_mode = #tpu.pipeline_mode<synchronous>, transform_indices = @transform_1, window_bounds = array<i64: 150, 128>}, {pipeline_mode = #tpu.pipeline_mode<synchronous>, transform_indices = @transform_2, window_bounds = array<i64: 1, 128>}, {pipeline_mode = #tpu.pipeline_mode<synchronous>, transform_indices = @transform_3, window_bounds = array<i64: 25, 128, 128>}, {pipeline_mode = #tpu.pipeline_mode<synchronous>, transform_indices = @transform_4, window_bounds = array<i64: 1, 128>}, {pipeline_mode = #tpu.pipeline_mode<synchronous>, transform_indices = @transform_5, window_bounds = array<i64: 128, 128>}, {pipeline_mode = #tpu.pipeline_mode<synchronous>, transform_indices = @transform_6, window_bounds = array<i64: 1, 128>}, {pipeline_mode = #tpu.pipeline_mode<synchronous>, transform_indices = @transform_7, window_bounds = array<i64: 128, 128>}, {pipeline_mode = #tpu.pipeline_mode<synchronous>, transform_indices = @transform_8, window_bounds = array<i64: 1, 128>}, {transform_indices = @transform_9, window_bounds = array<i64: 1, 1, 128>}]} {
    %c0 = arith.constant 0 : index
    %c0_0 = arith.constant 0 : index
    %0 = vector.load %arg2[%c0, %c0_0] : memref<150x128xbf16, #tpu.memory_space<vmem>>, vector<150x128xbf16>
    %c0_1 = arith.constant 0 : index
    %c0_2 = arith.constant 0 : index
    %c0_3 = arith.constant 0 : index
    %c0_4 = arith.constant 0 : index
    %1 = vector.load %arg1[%c0_1, %c0_2, %c0_3, %c0_4] : memref<1x4x25x150xbf16, #tpu.memory_space<vmem>>, vector<1x1x25x150xbf16>
    %2 = vector.shape_cast %1 : vector<1x1x25x150xbf16> to vector<25x150xbf16>
    %cst = arith.constant dense<0.000000e+00> : vector<25x128xf32>
    %3 = tpu.matmul %2, %0, %cst {dimension_numbers = #tpu.dot_dimension_numbers<[1], [0], [0], [1], [0, 0, 1, 1], [], []>} : vector<25x150xbf16>, vector<150x128xbf16>, vector<25x128xf32> -> vector<25x128xf32>
    %c0_5 = arith.constant 0 : index
    %c1 = arith.constant 1 : index
    %c0_6 = arith.constant 0 : index
    %c0_7 = arith.constant 0 : index
    %4 = vector.load %arg1[%c0_5, %c1, %c0_6, %c0_7] : memref<1x4x25x150xbf16, #tpu.memory_space<vmem>>, vector<1x1x25x150xbf16>
    %5 = vector.shape_cast %4 : vector<1x1x25x150xbf16> to vector<25x150xbf16>
    %cst_8 = arith.constant dense<0.000000e+00> : vector<25x128xf32>
    %6 = tpu.matmul %5, %0, %cst_8 {dimension_numbers = #tpu.dot_dimension_numbers<[1], [0], [0], [1], [0, 0, 1, 1], [], []>} : vector<25x150xbf16>, vector<150x128xbf16>, vector<25x128xf32> -> vector<25x128xf32>
    %7 = arith.maximumf %3, %6 : vector<25x128xf32>
    %c0_9 = arith.constant 0 : index
    %c2 = arith.constant 2 : index
    %c0_10 = arith.constant 0 : index
    %c0_11 = arith.constant 0 : index
    %8 = vector.load %arg1[%c0_9, %c2, %c0_10, %c0_11] : memref<1x4x25x150xbf16, #tpu.memory_space<vmem>>, vector<1x1x25x150xbf16>
    %9 = vector.shape_cast %8 : vector<1x1x25x150xbf16> to vector<25x150xbf16>
    %cst_12 = arith.constant dense<0.000000e+00> : vector<25x128xf32>
    %10 = tpu.matmul %9, %0, %cst_12 {dimension_numbers = #tpu.dot_dimension_numbers<[1], [0], [0], [1], [0, 0, 1, 1], [], []>} : vector<25x150xbf16>, vector<150x128xbf16>, vector<25x128xf32> -> vector<25x128xf32>
    %11 = arith.maximumf %7, %10 : vector<25x128xf32>
    %c0_13 = arith.constant 0 : index
    %c3 = arith.constant 3 : index
    %c0_14 = arith.constant 0 : index
    %c0_15 = arith.constant 0 : index
    %12 = vector.load %arg1[%c0_13, %c3, %c0_14, %c0_15] : memref<1x4x25x150xbf16, #tpu.memory_space<vmem>>, vector<1x1x25x150xbf16>
    %13 = vector.shape_cast %12 : vector<1x1x25x150xbf16> to vector<25x150xbf16>
    %cst_16 = arith.constant dense<0.000000e+00> : vector<25x128xf32>
    %14 = tpu.matmul %13, %0, %cst_16 {dimension_numbers = #tpu.dot_dimension_numbers<[1], [0], [0], [1], [0, 0, 1, 1], [], []>} : vector<25x150xbf16>, vector<150x128xbf16>, vector<25x128xf32> -> vector<25x128xf32>
    %15 = arith.maximumf %11, %14 : vector<25x128xf32>
    %c0_17 = arith.constant 0 : index
    %c0_18 = arith.constant 0 : index
    %16 = vector.load %arg3[%c0_17, %c0_18] : memref<1x128xf32, #tpu.memory_space<vmem>>, vector<1x128xf32>
    %17 = vector.broadcast %16 : vector<1x128xf32> to vector<25x128xf32>
    %18 = arith.addf %15, %17 : vector<25x128xf32>
    %cst_19 = arith.constant 0.000000e+00 : f32
    %19 = vector.broadcast %cst_19 : f32 to vector<25x128xf32>
    %20 = arith.maximumf %18, %19 : vector<25x128xf32>
    %21 = arith.truncf %20 : vector<25x128xf32> to vector<25x128xbf16>
    %cst_20 = arith.constant 0.000000e+00 : f32
    %22 = vector.broadcast %cst_20 : f32 to vector<1x128xf32>
    %23 = vector.extract_strided_slice %21 {offsets = [0, 0], sizes = [1, 128], strides = [1, 1]} : vector<25x128xbf16> to vector<1x128xbf16>
    %c0_21 = arith.constant 0 : index
    %c0_22 = arith.constant 0 : index
    %c0_23 = arith.constant 0 : index
    %24 = vector.load %arg4[%c0_21, %c0_22, %c0_23] : memref<25x128x128xbf16, #tpu.memory_space<vmem>>, vector<1x128x128xbf16>
    %25 = vector.shape_cast %24 : vector<1x128x128xbf16> to vector<128x128xbf16>
    %cst_24 = arith.constant dense<0.000000e+00> : vector<1x128xf32>
    %26 = tpu.matmul %23, %25, %cst_24 {dimension_numbers = #tpu.dot_dimension_numbers<[1], [0], [0], [1], [0, 0, 1, 1], [], []>} : vector<1x128xbf16>, vector<128x128xbf16>, vector<1x128xf32> -> vector<1x128xf32>
    %27 = arith.addf %22, %26 : vector<1x128xf32>
    %28 = vector.extract_strided_slice %21 {offsets = [1, 0], sizes = [1, 128], strides = [1, 1]} : vector<25x128xbf16> to vector<1x128xbf16>
    %c1_25 = arith.constant 1 : index
    %c0_26 = arith.constant 0 : index
    %c0_27 = arith.constant 0 : index
    %29 = vector.load %arg4[%c1_25, %c0_26, %c0_27] : memref<25x128x128xbf16, #tpu.memory_space<vmem>>, vector<1x128x128xbf16>
    %30 = vector.shape_cast %29 : vector<1x128x128xbf16> to vector<128x128xbf16>
    %cst_28 = arith.constant dense<0.000000e+00> : vector<1x128xf32>
    %31 = tpu.matmul %28, %30, %cst_28 {dimension_numbers = #tpu.dot_dimension_numbers<[1], [0], [0], [1], [0, 0, 1, 1], [], []>} : vector<1x128xbf16>, vector<128x128xbf16>, vector<1x128xf32> -> vector<1x128xf32>
    %32 = arith.addf %27, %31 : vector<1x128xf32>
    %33 = vector.extract_strided_slice %21 {offsets = [2, 0], sizes = [1, 128], strides = [1, 1]} : vector<25x128xbf16> to vector<1x128xbf16>
    %c2_29 = arith.constant 2 : index
    %c0_30 = arith.constant 0 : index
    %c0_31 = arith.constant 0 : index
    %34 = vector.load %arg4[%c2_29, %c0_30, %c0_31] : memref<25x128x128xbf16, #tpu.memory_space<vmem>>, vector<1x128x128xbf16>
    %35 = vector.shape_cast %34 : vector<1x128x128xbf16> to vector<128x128xbf16>
    %cst_32 = arith.constant dense<0.000000e+00> : vector<1x128xf32>
    %36 = tpu.matmul %33, %35, %cst_32 {dimension_numbers = #tpu.dot_dimension_numbers<[1], [0], [0], [1], [0, 0, 1, 1], [], []>} : vector<1x128xbf16>, vector<128x128xbf16>, vector<1x128xf32> -> vector<1x128xf32>
    %37 = arith.addf %32, %36 : vector<1x128xf32>
    %38 = vector.extract_strided_slice %21 {offsets = [3, 0], sizes = [1, 128], strides = [1, 1]} : vector<25x128xbf16> to vector<1x128xbf16>
    %c3_33 = arith.constant 3 : index
    %c0_34 = arith.constant 0 : index
    %c0_35 = arith.constant 0 : index
    %39 = vector.load %arg4[%c3_33, %c0_34, %c0_35] : memref<25x128x128xbf16, #tpu.memory_space<vmem>>, vector<1x128x128xbf16>
    %40 = vector.shape_cast %39 : vector<1x128x128xbf16> to vector<128x128xbf16>
    %cst_36 = arith.constant dense<0.000000e+00> : vector<1x128xf32>
    %41 = tpu.matmul %38, %40, %cst_36 {dimension_numbers = #tpu.dot_dimension_numbers<[1], [0], [0], [1], [0, 0, 1, 1], [], []>} : vector<1x128xbf16>, vector<128x128xbf16>, vector<1x128xf32> -> vector<1x128xf32>
    %42 = arith.addf %37, %41 : vector<1x128xf32>
    %43 = vector.extract_strided_slice %21 {offsets = [4, 0], sizes = [1, 128], strides = [1, 1]} : vector<25x128xbf16> to vector<1x128xbf16>
    %c4 = arith.constant 4 : index
    %c0_37 = arith.constant 0 : index
    %c0_38 = arith.constant 0 : index
    %44 = vector.load %arg4[%c4, %c0_37, %c0_38] : memref<25x128x128xbf16, #tpu.memory_space<vmem>>, vector<1x128x128xbf16>
    %45 = vector.shape_cast %44 : vector<1x128x128xbf16> to vector<128x128xbf16>
    %cst_39 = arith.constant dense<0.000000e+00> : vector<1x128xf32>
    %46 = tpu.matmul %43, %45, %cst_39 {dimension_numbers = #tpu.dot_dimension_numbers<[1], [0], [0], [1], [0, 0, 1, 1], [], []>} : vector<1x128xbf16>, vector<128x128xbf16>, vector<1x128xf32> -> vector<1x128xf32>
    %47 = arith.addf %42, %46 : vector<1x128xf32>
    %48 = vector.extract_strided_slice %21 {offsets = [5, 0], sizes = [1, 128], strides = [1, 1]} : vector<25x128xbf16> to vector<1x128xbf16>
    %c5 = arith.constant 5 : index
    %c0_40 = arith.constant 0 : index
    %c0_41 = arith.constant 0 : index
    %49 = vector.load %arg4[%c5, %c0_40, %c0_41] : memref<25x128x128xbf16, #tpu.memory_space<vmem>>, vector<1x128x128xbf16>
    %50 = vector.shape_cast %49 : vector<1x128x128xbf16> to vector<128x128xbf16>
    %cst_42 = arith.constant dense<0.000000e+00> : vector<1x128xf32>
    %51 = tpu.matmul %48, %50, %cst_42 {dimension_numbers = #tpu.dot_dimension_numbers<[1], [0], [0], [1], [0, 0, 1, 1], [], []>} : vector<1x128xbf16>, vector<128x128xbf16>, vector<1x128xf32> -> vector<1x128xf32>
    %52 = arith.addf %47, %51 : vector<1x128xf32>
    %53 = vector.extract_strided_slice %21 {offsets = [6, 0], sizes = [1, 128], strides = [1, 1]} : vector<25x128xbf16> to vector<1x128xbf16>
    %c6 = arith.constant 6 : index
    %c0_43 = arith.constant 0 : index
    %c0_44 = arith.constant 0 : index
    %54 = vector.load %arg4[%c6, %c0_43, %c0_44] : memref<25x128x128xbf16, #tpu.memory_space<vmem>>, vector<1x128x128xbf16>
    %55 = vector.shape_cast %54 : vector<1x128x128xbf16> to vector<128x128xbf16>
    %cst_45 = arith.constant dense<0.000000e+00> : vector<1x128xf32>
    %56 = tpu.matmul %53, %55, %cst_45 {dimension_numbers = #tpu.dot_dimension_numbers<[1], [0], [0], [1], [0, 0, 1, 1], [], []>} : vector<1x128xbf16>, vector<128x128xbf16>, vector<1x128xf32> -> vector<1x128xf32>
    %57 = arith.addf %52, %56 : vector<1x128xf32>
    %58 = vector.extract_strided_slice %21 {offsets = [7, 0], sizes = [1, 128], strides = [1, 1]} : vector<25x128xbf16> to vector<1x128xbf16>
    %c7 = arith.constant 7 : index
    %c0_46 = arith.constant 0 : index
    %c0_47 = arith.constant 0 : index
    %59 = vector.load %arg4[%c7, %c0_46, %c0_47] : memref<25x128x128xbf16, #tpu.memory_space<vmem>>, vector<1x128x128xbf16>
    %60 = vector.shape_cast %59 : vector<1x128x128xbf16> to vector<128x128xbf16>
    %cst_48 = arith.constant dense<0.000000e+00> : vector<1x128xf32>
    %61 = tpu.matmul %58, %60, %cst_48 {dimension_numbers = #tpu.dot_dimension_numbers<[1], [0], [0], [1], [0, 0, 1, 1], [], []>} : vector<1x128xbf16>, vector<128x128xbf16>, vector<1x128xf32> -> vector<1x128xf32>
    %62 = arith.addf %57, %61 : vector<1x128xf32>
    %63 = vector.extract_strided_slice %21 {offsets = [8, 0], sizes = [1, 128], strides = [1, 1]} : vector<25x128xbf16> to vector<1x128xbf16>
    %c8 = arith.constant 8 : index
    %c0_49 = arith.constant 0 : index
    %c0_50 = arith.constant 0 : index
    %64 = vector.load %arg4[%c8, %c0_49, %c0_50] : memref<25x128x128xbf16, #tpu.memory_space<vmem>>, vector<1x128x128xbf16>
    %65 = vector.shape_cast %64 : vector<1x128x128xbf16> to vector<128x128xbf16>
    %cst_51 = arith.constant dense<0.000000e+00> : vector<1x128xf32>
    %66 = tpu.matmul %63, %65, %cst_51 {dimension_numbers = #tpu.dot_dimension_numbers<[1], [0], [0], [1], [0, 0, 1, 1], [], []>} : vector<1x128xbf16>, vector<128x128xbf16>, vector<1x128xf32> -> vector<1x128xf32>
    %67 = arith.addf %62, %66 : vector<1x128xf32>
    %68 = vector.extract_strided_slice %21 {offsets = [9, 0], sizes = [1, 128], strides = [1, 1]} : vector<25x128xbf16> to vector<1x128xbf16>
    %c9 = arith.constant 9 : index
    %c0_52 = arith.constant 0 : index
    %c0_53 = arith.constant 0 : index
    %69 = vector.load %arg4[%c9, %c0_52, %c0_53] : memref<25x128x128xbf16, #tpu.memory_space<vmem>>, vector<1x128x128xbf16>
    %70 = vector.shape_cast %69 : vector<1x128x128xbf16> to vector<128x128xbf16>
    %cst_54 = arith.constant dense<0.000000e+00> : vector<1x128xf32>
    %71 = tpu.matmul %68, %70, %cst_54 {dimension_numbers = #tpu.dot_dimension_numbers<[1], [0], [0], [1], [0, 0, 1, 1], [], []>} : vector<1x128xbf16>, vector<128x128xbf16>, vector<1x128xf32> -> vector<1x128xf32>
    %72 = arith.addf %67, %71 : vector<1x128xf32>
    %73 = vector.extract_strided_slice %21 {offsets = [10, 0], sizes = [1, 128], strides = [1, 1]} : vector<25x128xbf16> to vector<1x128xbf16>
    %c10 = arith.constant 10 : index
    %c0_55 = arith.constant 0 : index
    %c0_56 = arith.constant 0 : index
    %74 = vector.load %arg4[%c10, %c0_55, %c0_56] : memref<25x128x128xbf16, #tpu.memory_space<vmem>>, vector<1x128x128xbf16>
    %75 = vector.shape_cast %74 : vector<1x128x128xbf16> to vector<128x128xbf16>
    %cst_57 = arith.constant dense<0.000000e+00> : vector<1x128xf32>
    %76 = tpu.matmul %73, %75, %cst_57 {dimension_numbers = #tpu.dot_dimension_numbers<[1], [0], [0], [1], [0, 0, 1, 1], [], []>} : vector<1x128xbf16>, vector<128x128xbf16>, vector<1x128xf32> -> vector<1x128xf32>
    %77 = arith.addf %72, %76 : vector<1x128xf32>
    %78 = vector.extract_strided_slice %21 {offsets = [11, 0], sizes = [1, 128], strides = [1, 1]} : vector<25x128xbf16> to vector<1x128xbf16>
    %c11 = arith.constant 11 : index
    %c0_58 = arith.constant 0 : index
    %c0_59 = arith.constant 0 : index
    %79 = vector.load %arg4[%c11, %c0_58, %c0_59] : memref<25x128x128xbf16, #tpu.memory_space<vmem>>, vector<1x128x128xbf16>
    %80 = vector.shape_cast %79 : vector<1x128x128xbf16> to vector<128x128xbf16>
    %cst_60 = arith.constant dense<0.000000e+00> : vector<1x128xf32>
    %81 = tpu.matmul %78, %80, %cst_60 {dimension_numbers = #tpu.dot_dimension_numbers<[1], [0], [0], [1], [0, 0, 1, 1], [], []>} : vector<1x128xbf16>, vector<128x128xbf16>, vector<1x128xf32> -> vector<1x128xf32>
    %82 = arith.addf %77, %81 : vector<1x128xf32>
    %83 = vector.extract_strided_slice %21 {offsets = [12, 0], sizes = [1, 128], strides = [1, 1]} : vector<25x128xbf16> to vector<1x128xbf16>
    %c12 = arith.constant 12 : index
    %c0_61 = arith.constant 0 : index
    %c0_62 = arith.constant 0 : index
    %84 = vector.load %arg4[%c12, %c0_61, %c0_62] : memref<25x128x128xbf16, #tpu.memory_space<vmem>>, vector<1x128x128xbf16>
    %85 = vector.shape_cast %84 : vector<1x128x128xbf16> to vector<128x128xbf16>
    %cst_63 = arith.constant dense<0.000000e+00> : vector<1x128xf32>
    %86 = tpu.matmul %83, %85, %cst_63 {dimension_numbers = #tpu.dot_dimension_numbers<[1], [0], [0], [1], [0, 0, 1, 1], [], []>} : vector<1x128xbf16>, vector<128x128xbf16>, vector<1x128xf32> -> vector<1x128xf32>
    %87 = arith.addf %82, %86 : vector<1x128xf32>
    %88 = vector.extract_strided_slice %21 {offsets = [13, 0], sizes = [1, 128], strides = [1, 1]} : vector<25x128xbf16> to vector<1x128xbf16>
    %c13 = arith.constant 13 : index
    %c0_64 = arith.constant 0 : index
    %c0_65 = arith.constant 0 : index
    %89 = vector.load %arg4[%c13, %c0_64, %c0_65] : memref<25x128x128xbf16, #tpu.memory_space<vmem>>, vector<1x128x128xbf16>
    %90 = vector.shape_cast %89 : vector<1x128x128xbf16> to vector<128x128xbf16>
    %cst_66 = arith.constant dense<0.000000e+00> : vector<1x128xf32>
    %91 = tpu.matmul %88, %90, %cst_66 {dimension_numbers = #tpu.dot_dimension_numbers<[1], [0], [0], [1], [0, 0, 1, 1], [], []>} : vector<1x128xbf16>, vector<128x128xbf16>, vector<1x128xf32> -> vector<1x128xf32>
    %92 = arith.addf %87, %91 : vector<1x128xf32>
    %93 = vector.extract_strided_slice %21 {offsets = [14, 0], sizes = [1, 128], strides = [1, 1]} : vector<25x128xbf16> to vector<1x128xbf16>
    %c14 = arith.constant 14 : index
    %c0_67 = arith.constant 0 : index
    %c0_68 = arith.constant 0 : index
    %94 = vector.load %arg4[%c14, %c0_67, %c0_68] : memref<25x128x128xbf16, #tpu.memory_space<vmem>>, vector<1x128x128xbf16>
    %95 = vector.shape_cast %94 : vector<1x128x128xbf16> to vector<128x128xbf16>
    %cst_69 = arith.constant dense<0.000000e+00> : vector<1x128xf32>
    %96 = tpu.matmul %93, %95, %cst_69 {dimension_numbers = #tpu.dot_dimension_numbers<[1], [0], [0], [1], [0, 0, 1, 1], [], []>} : vector<1x128xbf16>, vector<128x128xbf16>, vector<1x128xf32> -> vector<1x128xf32>
    %97 = arith.addf %92, %96 : vector<1x128xf32>
    %98 = vector.extract_strided_slice %21 {offsets = [15, 0], sizes = [1, 128], strides = [1, 1]} : vector<25x128xbf16> to vector<1x128xbf16>
    %c15 = arith.constant 15 : index
    %c0_70 = arith.constant 0 : index
    %c0_71 = arith.constant 0 : index
    %99 = vector.load %arg4[%c15, %c0_70, %c0_71] : memref<25x128x128xbf16, #tpu.memory_space<vmem>>, vector<1x128x128xbf16>
    %100 = vector.shape_cast %99 : vector<1x128x128xbf16> to vector<128x128xbf16>
    %cst_72 = arith.constant dense<0.000000e+00> : vector<1x128xf32>
    %101 = tpu.matmul %98, %100, %cst_72 {dimension_numbers = #tpu.dot_dimension_numbers<[1], [0], [0], [1], [0, 0, 1, 1], [], []>} : vector<1x128xbf16>, vector<128x128xbf16>, vector<1x128xf32> -> vector<1x128xf32>
    %102 = arith.addf %97, %101 : vector<1x128xf32>
    %103 = vector.extract_strided_slice %21 {offsets = [16, 0], sizes = [1, 128], strides = [1, 1]} : vector<25x128xbf16> to vector<1x128xbf16>
    %c16 = arith.constant 16 : index
    %c0_73 = arith.constant 0 : index
    %c0_74 = arith.constant 0 : index
    %104 = vector.load %arg4[%c16, %c0_73, %c0_74] : memref<25x128x128xbf16, #tpu.memory_space<vmem>>, vector<1x128x128xbf16>
    %105 = vector.shape_cast %104 : vector<1x128x128xbf16> to vector<128x128xbf16>
    %cst_75 = arith.constant dense<0.000000e+00> : vector<1x128xf32>
    %106 = tpu.matmul %103, %105, %cst_75 {dimension_numbers = #tpu.dot_dimension_numbers<[1], [0], [0], [1], [0, 0, 1, 1], [], []>} : vector<1x128xbf16>, vector<128x128xbf16>, vector<1x128xf32> -> vector<1x128xf32>
    %107 = arith.addf %102, %106 : vector<1x128xf32>
    %108 = vector.extract_strided_slice %21 {offsets = [17, 0], sizes = [1, 128], strides = [1, 1]} : vector<25x128xbf16> to vector<1x128xbf16>
    %c17 = arith.constant 17 : index
    %c0_76 = arith.constant 0 : index
    %c0_77 = arith.constant 0 : index
    %109 = vector.load %arg4[%c17, %c0_76, %c0_77] : memref<25x128x128xbf16, #tpu.memory_space<vmem>>, vector<1x128x128xbf16>
    %110 = vector.shape_cast %109 : vector<1x128x128xbf16> to vector<128x128xbf16>
    %cst_78 = arith.constant dense<0.000000e+00> : vector<1x128xf32>
    %111 = tpu.matmul %108, %110, %cst_78 {dimension_numbers = #tpu.dot_dimension_numbers<[1], [0], [0], [1], [0, 0, 1, 1], [], []>} : vector<1x128xbf16>, vector<128x128xbf16>, vector<1x128xf32> -> vector<1x128xf32>
    %112 = arith.addf %107, %111 : vector<1x128xf32>
    %113 = vector.extract_strided_slice %21 {offsets = [18, 0], sizes = [1, 128], strides = [1, 1]} : vector<25x128xbf16> to vector<1x128xbf16>
    %c18 = arith.constant 18 : index
    %c0_79 = arith.constant 0 : index
    %c0_80 = arith.constant 0 : index
    %114 = vector.load %arg4[%c18, %c0_79, %c0_80] : memref<25x128x128xbf16, #tpu.memory_space<vmem>>, vector<1x128x128xbf16>
    %115 = vector.shape_cast %114 : vector<1x128x128xbf16> to vector<128x128xbf16>
    %cst_81 = arith.constant dense<0.000000e+00> : vector<1x128xf32>
    %116 = tpu.matmul %113, %115, %cst_81 {dimension_numbers = #tpu.dot_dimension_numbers<[1], [0], [0], [1], [0, 0, 1, 1], [], []>} : vector<1x128xbf16>, vector<128x128xbf16>, vector<1x128xf32> -> vector<1x128xf32>
    %117 = arith.addf %112, %116 : vector<1x128xf32>
    %118 = vector.extract_strided_slice %21 {offsets = [19, 0], sizes = [1, 128], strides = [1, 1]} : vector<25x128xbf16> to vector<1x128xbf16>
    %c19 = arith.constant 19 : index
    %c0_82 = arith.constant 0 : index
    %c0_83 = arith.constant 0 : index
    %119 = vector.load %arg4[%c19, %c0_82, %c0_83] : memref<25x128x128xbf16, #tpu.memory_space<vmem>>, vector<1x128x128xbf16>
    %120 = vector.shape_cast %119 : vector<1x128x128xbf16> to vector<128x128xbf16>
    %cst_84 = arith.constant dense<0.000000e+00> : vector<1x128xf32>
    %121 = tpu.matmul %118, %120, %cst_84 {dimension_numbers = #tpu.dot_dimension_numbers<[1], [0], [0], [1], [0, 0, 1, 1], [], []>} : vector<1x128xbf16>, vector<128x128xbf16>, vector<1x128xf32> -> vector<1x128xf32>
    %122 = arith.addf %117, %121 : vector<1x128xf32>
    %123 = vector.extract_strided_slice %21 {offsets = [20, 0], sizes = [1, 128], strides = [1, 1]} : vector<25x128xbf16> to vector<1x128xbf16>
    %c20 = arith.constant 20 : index
    %c0_85 = arith.constant 0 : index
    %c0_86 = arith.constant 0 : index
    %124 = vector.load %arg4[%c20, %c0_85, %c0_86] : memref<25x128x128xbf16, #tpu.memory_space<vmem>>, vector<1x128x128xbf16>
    %125 = vector.shape_cast %124 : vector<1x128x128xbf16> to vector<128x128xbf16>
    %cst_87 = arith.constant dense<0.000000e+00> : vector<1x128xf32>
    %126 = tpu.matmul %123, %125, %cst_87 {dimension_numbers = #tpu.dot_dimension_numbers<[1], [0], [0], [1], [0, 0, 1, 1], [], []>} : vector<1x128xbf16>, vector<128x128xbf16>, vector<1x128xf32> -> vector<1x128xf32>
    %127 = arith.addf %122, %126 : vector<1x128xf32>
    %128 = vector.extract_strided_slice %21 {offsets = [21, 0], sizes = [1, 128], strides = [1, 1]} : vector<25x128xbf16> to vector<1x128xbf16>
    %c21 = arith.constant 21 : index
    %c0_88 = arith.constant 0 : index
    %c0_89 = arith.constant 0 : index
    %129 = vector.load %arg4[%c21, %c0_88, %c0_89] : memref<25x128x128xbf16, #tpu.memory_space<vmem>>, vector<1x128x128xbf16>
    %130 = vector.shape_cast %129 : vector<1x128x128xbf16> to vector<128x128xbf16>
    %cst_90 = arith.constant dense<0.000000e+00> : vector<1x128xf32>
    %131 = tpu.matmul %128, %130, %cst_90 {dimension_numbers = #tpu.dot_dimension_numbers<[1], [0], [0], [1], [0, 0, 1, 1], [], []>} : vector<1x128xbf16>, vector<128x128xbf16>, vector<1x128xf32> -> vector<1x128xf32>
    %132 = arith.addf %127, %131 : vector<1x128xf32>
    %133 = vector.extract_strided_slice %21 {offsets = [22, 0], sizes = [1, 128], strides = [1, 1]} : vector<25x128xbf16> to vector<1x128xbf16>
    %c22 = arith.constant 22 : index
    %c0_91 = arith.constant 0 : index
    %c0_92 = arith.constant 0 : index
    %134 = vector.load %arg4[%c22, %c0_91, %c0_92] : memref<25x128x128xbf16, #tpu.memory_space<vmem>>, vector<1x128x128xbf16>
    %135 = vector.shape_cast %134 : vector<1x128x128xbf16> to vector<128x128xbf16>
    %cst_93 = arith.constant dense<0.000000e+00> : vector<1x128xf32>
    %136 = tpu.matmul %133, %135, %cst_93 {dimension_numbers = #tpu.dot_dimension_numbers<[1], [0], [0], [1], [0, 0, 1, 1], [], []>} : vector<1x128xbf16>, vector<128x128xbf16>, vector<1x128xf32> -> vector<1x128xf32>
    %137 = arith.addf %132, %136 : vector<1x128xf32>
    %138 = vector.extract_strided_slice %21 {offsets = [23, 0], sizes = [1, 128], strides = [1, 1]} : vector<25x128xbf16> to vector<1x128xbf16>
    %c23 = arith.constant 23 : index
    %c0_94 = arith.constant 0 : index
    %c0_95 = arith.constant 0 : index
    %139 = vector.load %arg4[%c23, %c0_94, %c0_95] : memref<25x128x128xbf16, #tpu.memory_space<vmem>>, vector<1x128x128xbf16>
    %140 = vector.shape_cast %139 : vector<1x128x128xbf16> to vector<128x128xbf16>
    %cst_96 = arith.constant dense<0.000000e+00> : vector<1x128xf32>
    %141 = tpu.matmul %138, %140, %cst_96 {dimension_numbers = #tpu.dot_dimension_numbers<[1], [0], [0], [1], [0, 0, 1, 1], [], []>} : vector<1x128xbf16>, vector<128x128xbf16>, vector<1x128xf32> -> vector<1x128xf32>
    %142 = arith.addf %137, %141 : vector<1x128xf32>
    %143 = vector.extract_strided_slice %21 {offsets = [24, 0], sizes = [1, 128], strides = [1, 1]} : vector<25x128xbf16> to vector<1x128xbf16>
    %c24 = arith.constant 24 : index
    %c0_97 = arith.constant 0 : index
    %c0_98 = arith.constant 0 : index
    %144 = vector.load %arg4[%c24, %c0_97, %c0_98] : memref<25x128x128xbf16, #tpu.memory_space<vmem>>, vector<1x128x128xbf16>
    %145 = vector.shape_cast %144 : vector<1x128x128xbf16> to vector<128x128xbf16>
    %cst_99 = arith.constant dense<0.000000e+00> : vector<1x128xf32>
    %146 = tpu.matmul %143, %145, %cst_99 {dimension_numbers = #tpu.dot_dimension_numbers<[1], [0], [0], [1], [0, 0, 1, 1], [], []>} : vector<1x128xbf16>, vector<128x128xbf16>, vector<1x128xf32> -> vector<1x128xf32>
    %147 = arith.addf %142, %146 : vector<1x128xf32>
    %c0_100 = arith.constant 0 : index
    %c0_101 = arith.constant 0 : index
    %148 = vector.load %arg5[%c0_100, %c0_101] : memref<1x128xf32, #tpu.memory_space<vmem>>, vector<1x128xf32>
    %149 = arith.addf %147, %148 : vector<1x128xf32>
    %cst_102 = arith.constant 0.000000e+00 : f32
    %150 = vector.broadcast %cst_102 : f32 to vector<1x128xf32>
    %151 = arith.maximumf %149, %150 : vector<1x128xf32>
    %152 = arith.truncf %151 : vector<1x128xf32> to vector<1x128xbf16>
    %c0_103 = arith.constant 0 : index
    %c0_104 = arith.constant 0 : index
    %153 = vector.load %arg6[%c0_103, %c0_104] : memref<128x128xbf16, #tpu.memory_space<vmem>>, vector<128x128xbf16>
    %cst_105 = arith.constant dense<0.000000e+00> : vector<1x128xf32>
    %154 = tpu.matmul %152, %153, %cst_105 {dimension_numbers = #tpu.dot_dimension_numbers<[1], [0], [0], [1], [0, 0, 1, 1], [], []>} : vector<1x128xbf16>, vector<128x128xbf16>, vector<1x128xf32> -> vector<1x128xf32>
    %c0_106 = arith.constant 0 : index
    %c0_107 = arith.constant 0 : index
    %155 = vector.load %arg7[%c0_106, %c0_107] : memref<1x128xf32, #tpu.memory_space<vmem>>, vector<1x128xf32>
    %156 = arith.addf %154, %155 : vector<1x128xf32>
    %cst_108 = arith.constant 0.000000e+00 : f32
    %157 = vector.broadcast %cst_108 : f32 to vector<1x128xf32>
    %158 = arith.maximumf %156, %157 : vector<1x128xf32>
    %159 = arith.truncf %158 : vector<1x128xf32> to vector<1x128xbf16>
    %c0_109 = arith.constant 0 : index
    %c0_110 = arith.constant 0 : index
    %160 = vector.load %arg8[%c0_109, %c0_110] : memref<128x128xbf16, #tpu.memory_space<vmem>>, vector<128x128xbf16>
    %cst_111 = arith.constant dense<0.000000e+00> : vector<1x128xf32>
    %161 = tpu.matmul %159, %160, %cst_111 {dimension_numbers = #tpu.dot_dimension_numbers<[1], [0], [0], [1], [0, 0, 1, 1], [], []>} : vector<1x128xbf16>, vector<128x128xbf16>, vector<1x128xf32> -> vector<1x128xf32>
    %c0_112 = arith.constant 0 : index
    %c0_113 = arith.constant 0 : index
    %162 = vector.load %arg9[%c0_112, %c0_113] : memref<1x128xf32, #tpu.memory_space<vmem>>, vector<1x128xf32>
    %163 = arith.addf %161, %162 : vector<1x128xf32>
    %c0_114 = arith.constant 0 : index
    %c0_115 = arith.constant 0 : index
    %c0_116 = arith.constant 0 : index
    %164 = vector.load %arg10[%c0_114, %c0_115, %c0_116] : memref<1x1x128xf32, #tpu.memory_space<vmem>>, vector<1x1x128xf32>
    %165 = vector.shape_cast %164 : vector<1x1x128xf32> to vector<1x128xf32>
    %166 = vector.shape_cast %163 : vector<1x128xf32> to vector<1x1x128xf32>
    tpu.vector_store %arg10[%c0_114, %c0_115, %c0_116], %166 {strides = array<i32>} : memref<1x1x128xf32, #tpu.memory_space<vmem>>, vector<1x1x128xf32>,
    return
  }
  func.func @transform_0(%arg0: i32) -> (i32, i32, i32, i32) {
    %c0_i32 = arith.constant 0 : i32
    %c0_i32_0 = arith.constant 0 : i32
    %c0_i32_1 = arith.constant 0 : i32
    %c0_i32_2 = arith.constant 0 : i32
    return %arg0, %c0_i32, %c0_i32_0, %c0_i32_1 : i32, i32, i32, i32
  }
  func.func @transform_1(%arg0: i32) -> (i32, i32) {
    %c0_i32 = arith.constant 0 : i32
    %c0_i32_0 = arith.constant 0 : i32
    %c0_i32_1 = arith.constant 0 : i32
    return %c0_i32, %c0_i32_0 : i32, i32
  }
  func.func @transform_2(%arg0: i32) -> (i32, i32) {
    %c0_i32 = arith.constant 0 : i32
    %c0_i32_0 = arith.constant 0 : i32
    %c0_i32_1 = arith.constant 0 : i32
    return %c0_i32, %c0_i32_0 : i32, i32
  }
  func.func @transform_3(%arg0: i32) -> (i32, i32, i32) {
    %c0_i32 = arith.constant 0 : i32
    %c0_i32_0 = arith.constant 0 : i32
    %c0_i32_1 = arith.constant 0 : i32
    %c0_i32_2 = arith.constant 0 : i32
    return %c0_i32, %c0_i32_0, %c0_i32_1 : i32, i32, i32
  }
  func.func @transform_4(%arg0: i32) -> (i32, i32) {
    %c0_i32 = arith.constant 0 : i32
    %c0_i32_0 = arith.constant 0 : i32
    %c0_i32_1 = arith.constant 0 : i32
    return %c0_i32, %c0_i32_0 : i32, i32
  }
  func.func @transform_5(%arg0: i32) -> (i32, i32) {
    %c0_i32 = arith.constant 0 : i32
    %c0_i32_0 = arith.constant 0 : i32
    %c0_i32_1 = arith.constant 0 : i32
    return %c0_i32, %c0_i32_0 : i32, i32
  }
  func.func @transform_6(%arg0: i32) -> (i32, i32) {
    %c0_i32 = arith.constant 0 : i32
    %c0_i32_0 = arith.constant 0 : i32
    %c0_i32_1 = arith.constant 0 : i32
    return %c0_i32, %c0_i32_0 : i32, i32
  }
  func.func @transform_7(%arg0: i32) -> (i32, i32) {
    %c0_i32 = arith.constant 0 : i32
    %c0_i32_0 = arith.constant 0 : i32
    %c0_i32_1 = arith.constant 0 : i32
    return %c0_i32, %c0_i32_0 : i32, i32
  }
  func.func @transform_8(%arg0: i32) -> (i32, i32) {
    %c0_i32 = arith.constant 0 : i32
    %c0_i32_0 = arith.constant 0 : i32
    %c0_i32_1 = arith.constant 0 : i32
    return %c0_i32, %c0_i32_0 : i32, i32
  }
  func.func @transform_9(%arg0: i32) -> (i32, i32, i32) {
    %c0_i32 = arith.constant 0 : i32
    %c0_i32_0 = arith.constant 0 : i32
    %c0_i32_1 = arith.constant 0 : i32
    return %arg0, %c0_i32, %c0_i32_0 : i32, i32, i32
  }
}

</mosaic_0001>

<llo_original>
// kernel: net_forward.2
$region0: #{net_forward.2}
  #allocation0 [shape = 'u32[]', space=smem, size = 0x4, offset = 0x4, fixed_abs, tag = 'smem constant byte address 0x4 - core index']
  #allocation1 [shape = 'u32[144,128]{1,0:T(1,128)}', space=vmem, size = 0x12000, scoped, tag = 'internal scratch']
  %s0 = inlined_call_operand.vmem [shape: bf16[2,4,196,75], index: 0, kind: input, shape index: {}]
  %s1 = inlined_call_operand.vmem [shape: bf16[75,128], index: 1, kind: input, shape index: {}]
  %s2 = inlined_call_operand.vmem [shape: f32[1,128], index: 2, kind: input, shape index: {}]
  %s3 = inlined_call_operand.vmem [shape: bf16[2,196,128], index: 3, kind: output, shape index: {}]
  %s4 = sld [smem:[#allocation0]]
  $region45: #{net_forward.2} parent=0
    _
  %s6 = ssub.s32 1, %s4
  %s7 = scalar_select 0, %s6, %s4
  loop: start=0, step=1, limit=4
  $region2: #{net_forward.2} parent=0 // loop_pre_header
    _
  $region3: #{net_forward.2} parent=0 // loop_header
    %s9 = sphi 0, %s13
    %p10 = scmp.ge.s32.totalorder %s9, 4
    %s19 = sphi 0, %s21
    %s22 = sphi 0, %s19
    %s23 = sphi 0, %s22
    %s39 = sphi 0, %s23
    %s43 = sphi 0, %s43
    %s45 = sphi 0, %s43
    %s46 = sphi 0, %s45
    %s60 = sphi 0, %s46
    %s64 = sphi 0, %s64
    %s66 = sphi 0, %s64
    %s67 = sphi 0, %s66
    %s81 = sphi 0, %s67
    %s87 = sphi 0, %s89
    %s90 = sphi 0, %s87
    %s91 = sphi 0, %s90
    %s107 = sphi 0, %s91
  $region4: #{net_forward.2} parent=0 // loop_header_branch
    %12 = sbr.rel (%p10) target = $region8
  $region5: #{net_forward.2} parent=0 // loop_body
    %s14 = ssub.s32 %s9, 1
    %s15 = ssub.s32 %s9, 2
    %s16 = sadd.s32 %s9, 1
    %s17 = ssub.s32 %s9, %s16
    %p18 = scmp.eq.s32.totalorder %s17, 0
    %s20 = sadd.s32 %s19, 1
    %s21 = scalar_select %p18, %s19, %s20
    %p24 = pneg %p18
    %p25 = scmp.eq.s32.totalorder %s9, 1
    %p26 = por %p24, %p25
    %p27 = scmp.ne.s32.totalorder %s19, %s22
    %p28 = scmp.eq.s32.totalorder %s9, 0
    %p29 = por %p27, %p28
    %p30 = scmp.ne.s32.totalorder %s19, %s22
    %p31 = scmp.eq.s32.totalorder %s14, 1
    %p32 = por %p30, %p31
    %p33 = scmp.ne.s32.totalorder %s22, %s23
    %p34 = scmp.eq.s32.totalorder %s14, 0
    %p35 = por %p33, %p34
    %p36 = scmp.ne.s32.totalorder %s22, %s23
    %p37 = scmp.eq.s32.totalorder %s15, 1
    %p38 = por %p36, %p37
    %p40 = scmp.ne.s32.totalorder %s23, %s39
    %p41 = scmp.eq.s32.totalorder %s15, 0
    %p42 = por %p40, %p41
    %s44 = sadd.s32 %s43, 1
    %p47 = scmp.eq.s32.totalorder %s9, 1
    %p48 = scmp.ne.s32.totalorder %s43, %s45
    %p49 = scmp.eq.s32.totalorder %s9, 0
    %p50 = por %p48, %p49
    %p51 = scmp.ne.s32.totalorder %s43, %s45
    %p52 = scmp.eq.s32.totalorder %s14, 1
    %p53 = por %p51, %p52
    %p54 = scmp.ne.s32.totalorder %s45, %s46
    %p55 = scmp.eq.s32.totalorder %s14, 0
    %p56 = por %p54, %p55
    %p57 = scmp.ne.s32.totalorder %s45, %s46
    %p58 = scmp.eq.s32.totalorder %s15, 1
    %p59 = por %p57, %p58
    %p61 = scmp.ne.s32.totalorder %s46, %s60
    %p62 = scmp.eq.s32.totalorder %s15, 0
    %p63 = por %p61, %p62
    %s65 = sadd.s32 %s64, 1
    %p68 = scmp.eq.s32.totalorder %s9, 1
    %p69 = scmp.ne.s32.totalorder %s64, %s66
    %p70 = scmp.eq.s32.totalorder %s9, 0
    %p71 = por %p69, %p70
    %p72 = scmp.ne.s32.totalorder %s64, %s66
    %p73 = scmp.eq.s32.totalorder %s14, 1
    %p74 = por %p72, %p73
    %p75 = scmp.ne.s32.totalorder %s66, %s67
    %p76 = scmp.eq.s32.totalorder %s14, 0
    %p77 = por %p75, %p76
    %p78 = scmp.ne.s32.totalorder %s66, %s67
    %p79 = scmp.eq.s32.totalorder %s15, 1
    %p80 = por %p78, %p79
    %p82 = scmp.ne.s32.totalorder %s67, %s81
    %p83 = scmp.eq.s32.totalorder %s15, 0
    %p84 = por %p82, %p83
    %s85 = ssub.s32 %s9, %s16
    %p86 = scmp.eq.s32.totalorder %s85, 0
    %s88 = sadd.s32 %s87, 1
    %s89 = scalar_select %p86, %s87, %s88
    %p92 = pneg %p86
    %p93 = scmp.eq.s32.totalorder %s9, 1
    %p94 = por %p92, %p93
    %p95 = scmp.ne.s32.totalorder %s87, %s90
    %p96 = scmp.eq.s32.totalorder %s9, 0
    %p97 = por %p95, %p96
    %p98 = scmp.ne.s32.totalorder %s87, %s90
    %p99 = scmp.eq.s32.totalorder %s14, 1
    %p100 = por %p98, %p99
    %p101 = scmp.ne.s32.totalorder %s90, %s91
    %p102 = scmp.eq.s32.totalorder %s14, 0
    %p103 = por %p101, %p102
    %p104 = scmp.ne.s32.totalorder %s90, %s91
    %p105 = scmp.eq.s32.totalorder %s15, 1
    %p106 = por %p104, %p105
    %p108 = scmp.ne.s32.totalorder %s91, %s107
    %p109 = scmp.eq.s32.totalorder %s15, 0
    %p110 = por %p108, %p109
    %p111 = scmp.le.s32.totalorder 1, %s9
    %p112 = scmp.lt.s32.totalorder %s9, 3
    %p113 = pnand %p111, %p112
    %p114 = pneg %p113
    // Predicated region
    $region9: #{net_forward.2} parent=5 // pred_check
      _
    $region10: #{net_forward.2} parent=5 // pred_check_branch
      %116 = sbr.rel (%p113) target = $region12
    $region11: #{net_forward.2} parent=5 // pred_region
      %s117 = ssub.s32 %s9, 1
      // Predicated region
      $region13: #{net_forward.2} parent=11 // pred_check
        %p118 = pneg %p56
      $region14: #{net_forward.2} parent=11 // pred_check_branch
        %120 = sbr.rel (%p118) target = $region16
      $region15: #{net_forward.2} parent=11 // pred_region
        _
      $region16: #{net_forward.2} parent=11 // pred_fallthru
        _
      // Predicated region
      $region17: #{net_forward.2} parent=11 // pred_check
        %p121 = pneg %p77
      $region18: #{net_forward.2} parent=11 // pred_check_branch
        %123 = sbr.rel (%p121) target = $region20
      $region19: #{net_forward.2} parent=11 // pred_region
        _
      $region20: #{net_forward.2} parent=11 // pred_fallthru
        _
    $region12: #{net_forward.2} parent=5 // pred_fallthru
      _
    %p124 = scmp.lt.s32.totalorder %s9, 2
    // Predicated region
    $region21: #{net_forward.2} parent=5 // pred_check
      %p125 = pneg %p124
    $region22: #{net_forward.2} parent=5 // pred_check_branch
      %127 = sbr.rel (%p125) target = $region24
    $region23: #{net_forward.2} parent=5 // pred_region
      // Predicated region
      $region25: #{net_forward.2} parent=23 // pred_check
        %p128 = pneg %p29
      $region26: #{net_forward.2} parent=23 // pred_check_branch
        %130 = sbr.rel (%p128) target = $region28
      $region27: #{net_forward.2} parent=23 // pred_region
        %p131 = scmp.lt.s32.totalorder %s9, 1
        %s132 = scalar_select %p131, %s9, 1
        %s133 = smul.addr %s132, 100
        %s134 = smul.addr %s133, 4
        %s135 = scalar_lea.vmem %s0, %s134
      $region28: #{net_forward.2} parent=23 // pred_fallthru
        _
    $region24: #{net_forward.2} parent=5 // pred_fallthru
      _
    %p136 = scmp.le.s32.totalorder 1, %s9
    %p137 = scmp.lt.s32.totalorder %s9, 3
    %p138 = pnand %p136, %p137
    %p139 = pneg %p138
    // Predicated region
    $region29: #{net_forward.2} parent=5 // pred_check
      _
    $region30: #{net_forward.2} parent=5 // pred_check_branch
      %141 = sbr.rel (%p138) target = $region32
    $region31: #{net_forward.2} parent=5 // pred_region
      %s142 = ssub.s32 %s9, 1
      %p143 = scmp.lt.s32.totalorder %s14, 1
      %s144 = scalar_select %p143, %s14, 1
      %s145 = smul.addr %s144, 100
      %s146 = smul.addr %s145, 4
      %s147 = scalar_lea.vmem %s0, %s146
      %p148 = pneg %p35
      %p149 = pneg %p32
      %p150 = pneg %p56
      %p151 = pneg %p53
      %p152 = pneg %p77
      %p153 = pneg %p74
      %p154 = pneg %p103
      %p155 = pneg %p100
      %p156 = scmp.lt.s32.totalorder %s14, 1
      %s157 = scalar_select %p156, %s14, 1
      %s158 = smul.addr %s157, 25
      %s159 = smul.addr %s158, 4
      %s160 = scalar_lea.vmem %s3, %s159
      %p161 = scmp.lt.s32.totalorder %s14, 1
      %s162 = scalar_select %p161, %s14, 1
      %s163 = smul.addr %s162, 100
      %s164 = smul.addr %s163, 4
      %s165 = scalar_lea.vmem %s0, %s164
      %p166 = scmp.lt.s32.totalorder %s14, 1
      %s167 = scalar_select %p166, %s14, 1
      %s168 = smul.addr %s167, 25
      %s169 = smul.addr %s168, 4
      %s170 = scalar_lea.vmem %s3, %s169
      %v172 = vld [vmem:[%s1] sm:$0xf]
      %v173 = vld [vmem:[%s1 + $0x4] sm:$0xf]
      %v174 = vld [vmem:[%s1 + $0x8] sm:$0xf]
      %v175 = vld [vmem:[%s1 + $0xc] sm:$0xf]
      %v176 = vld [vmem:[%s1 + $0x10] sm:$0xf]
      %v177 = vld [vmem:[%s1 + $0x14] sm:$0xf]
      %v178 = vld [vmem:[%s1 + $0x18] sm:$0xf]
      %v179 = vld [vmem:[%s1 + $0x1c] sm:$0xf]
      %v180 = vld [vmem:[%s1 + $0x20] sm:$0xf]
      %v181 = vld [vmem:[%s1 + $0x24] sm:$0x3]
      %v182 = vld [vmem:[%s165] sm:$0xf]
      %v183 = vld [vmem:[%s165 + $0x4] sm:$0xf]
      %v184 = vld [vmem:[%s165 + $0x8] sm:$0xf]
      %v185 = vld [vmem:[%s165 + $0xc] sm:$0xf]
      %v186 = vld [vmem:[%s165 + $0x10] sm:$0xf]
      %v187 = vld [vmem:[%s165 + $0x14] sm:$0xf]
      %v188 = vld [vmem:[%s165 + $0x18] sm:$0xf]
      %v189 = vld [vmem:[%s165 + $0x1c] sm:$0xf]
      %v190 = vld [vmem:[%s165 + $0x20] sm:$0xf]
      %v191 = vld [vmem:[%s165 + $0x24] sm:$0xf]
      %v192 = vld [vmem:[%s165 + $0x28] sm:$0xf]
      %v193 = vld [vmem:[%s165 + $0x2c] sm:$0xf]
      %v194 = vld [vmem:[%s165 + $0x30] sm:$0xf]
      %v195 = vld [vmem:[%s165 + $0x34] sm:$0xf]
      %v196 = vld [vmem:[%s165 + $0x38] sm:$0xf]
      %v197 = vld [vmem:[%s165 + $0x3c] sm:$0xf]
      %v198 = vld [vmem:[%s165 + $0x40] sm:$0xf]
      %v199 = vld [vmem:[%s165 + $0x44] sm:$0xf]
      %v200 = vld [vmem:[%s165 + $0x48] sm:$0xf]
      %v201 = vld [vmem:[%s165 + $0x4c] sm:$0xf]
      %v202 = vld [vmem:[%s165 + $0x50] sm:$0xf]
      %v203 = vld [vmem:[%s165 + $0x54] sm:$0xf]
      %v204 = vld [vmem:[%s165 + $0x58] sm:$0xf]
      %v205 = vld [vmem:[%s165 + $0x5c] sm:$0xf]
      %v206 = vld [vmem:[%s165 + $0x60] sm:$0x3]
      %v232 = vunpack.c.l.b16 %v182
      %v233 = vunpack.c.l.b16 %v183
      %v234 = vunpack.c.l.b16 %v184
      %v235 = vunpack.c.l.b16 %v185
      %v236 = vunpack.c.l.b16 %v186
      %v237 = vunpack.c.l.b16 %v187
      %v238 = vunpack.c.l.b16 %v188
      %v239 = vunpack.c.l.b16 %v189
      %v240 = vunpack.c.l.b16 %v190
      %v241 = vunpack.c.l.b16 %v191
      %v242 = vunpack.c.l.b16 %v192
      %v243 = vunpack.c.l.b16 %v193
      %v244 = vunpack.c.l.b16 %v194
      %v245 = vunpack.c.l.b16 %v195
      %v246 = vunpack.c.l.b16 %v196
      %v247 = vunpack.c.l.b16 %v197
      %v248 = vunpack.c.l.b16 %v198
      %v249 = vunpack.c.l.b16 %v199
      %v250 = vunpack.c.l.b16 %v200
      %v251 = vunpack.c.l.b16 %v201
      %v252 = vunpack.c.l.b16 %v202
      %v253 = vunpack.c.l.b16 %v203
      %v254 = vunpack.c.l.b16 %v204
      %v255 = vunpack.c.l.b16 %v205
      %v256 = vunpack.c.l.b16 %v206
      %v257 = vpack.c.b16 %v233, %v232
      %v258 = vpack.c.b16 %v235, %v234
      %v259 = vpack.c.b16 %v237, %v236
      %v260 = vpack.c.b16 %v239, %v238
      %v261 = vpack.c.b16 %v241, %v240
      %v262 = vpack.c.b16 %v243, %v242
      %v263 = vpack.c.b16 %v245, %v244
      %v264 = vpack.c.b16 %v247, %v246
      %v265 = vpack.c.b16 %v249, %v248
      %v266 = vpack.c.b16 %v251, %v250
      %v267 = vpack.c.b16 %v253, %v252
      %v268 = vpack.c.b16 %v255, %v254
      %v269 = vpack.c.b16 %v256, %v256
      %v280 = vunpack.c.l.b16 %v172
      %v281 = vunpack.c.l.b16 %v173
      %v282 = vunpack.c.l.b16 %v174
      %v283 = vunpack.c.l.b16 %v175
      %v284 = vunpack.c.l.b16 %v176
      %v285 = vunpack.c.l.b16 %v177
      %v286 = vunpack.c.l.b16 %v178
      %v287 = vunpack.c.l.b16 %v179
      %v288 = vunpack.c.l.b16 %v180
      %v289 = vunpack.c.l.b16 %v181
      %v290 = vpack.c.b16 %v281, %v280
      %v291 = vpack.c.b16 %v283, %v282
      %v292 = vpack.c.b16 %v285, %v284
      %v293 = vpack.c.b16 %v287, %v286
      %v294 = vpack.c.b16 %v289, %v288
      %vm299 = vcmask 613376
      %v301 = vsel %vm299, %v257, 0
      %v304 = vsel %vm299, %v258, 0
      %v307 = vsel %vm299, %v259, 0
      %v310 = vsel %vm299, %v260, 0
      %v313 = vsel %vm299, %v261, 0
      %v316 = vsel %vm299, %v262, 0
      %v319 = vsel %vm299, %v263, 0
      %v322 = vsel %vm299, %v264, 0
      %v325 = vsel %vm299, %v265, 0
      %v328 = vsel %vm299, %v266, 0
      %v331 = vsel %vm299, %v267, 0
      %v334 = vsel %vm299, %v268, 0
      %v337 = vsel %vm299, %v269, 0
      %vm339 = vcmask 1044480
      %vm340 = vcmask 1045504
      %v341 = vsel %vm339, 4294967295, 65535
      %v342 = vsel %vm340, %v341, 0
      %v344 = vand.u32 %v294, %v342
      %346 = vmatprep.subr.bf16.mxu0 0
      %347 = vmatpush1.bf16.msra.mxu0 %v290
      %348 = vmatprep.subr.bf16.mxu0 0
      %349 = vmatpush1.bf16.msra.mxu0 %v291
      %350 = vmatprep.subr.bf16.mxu0 0
      %351 = vmatpush1.bf16.msra.mxu0 %v292
      %352 = vmatprep.subr.bf16.mxu0 0
      %353 = vmatpush1.bf16.msra.mxu0 %v293
      %354 = vmatprep.subr.bf16.mxu0 0
      %355 = vmatpush1.bf16.msra.mxu0 %v344
      %356 = vmatprep.subr.bf16.mxu0 0
      %357 = vmatpush1.bf16.msra.mxu0 0
      %358 = vmatprep.subr.bf16.mxu0 0
      %359 = vmatpush1.bf16.msra.mxu0 0
      %360 = vmatprep.subr.bf16.mxu0 0
      %361 = vmatpush1.bf16.msra.mxu0 0
      %362 = vmatprep.subr.bf16.mxu0 0
      %363 = vmatpush1.bf16.msra.mxu0 0
      %364 = vmatprep.subr.bf16.mxu0 0
      %365 = vmatpush1.bf16.msra.mxu0 0
      %366 = vmatprep.subr.bf16.mxu0 0
      %367 = vmatpush1.bf16.msra.mxu0 0
      %368 = vmatprep.subr.bf16.mxu0 0
      %369 = vmatpush1.bf16.msra.mxu0 0
      %370 = vmatprep.subr.bf16.mxu0 0
      %371 = vmatpush1.bf16.msra.mxu0 0
      %372 = vmatprep.subr.bf16.mxu0 0
      %373 = vmatpush1.bf16.msra.mxu0 0
      %374 = vmatprep.subr.bf16.mxu0 0
      %375 = vmatpush1.bf16.msra.mxu0 0
      %376 = vmatprep.subr.bf16.mxu0 0
      %377 = vmatpush1.bf16.msra.mxu0 0
      %378 = vmatprep.mubr.bf16.mxu0 0
      %379 = vmatmul.mubr.bf16.gmra.mrb[0].mxu0 %v301
      %v380 = vpop.f32.mrb[0].mxu0
      %v381 = vadd.f32 0.0, %v380
      %v382 = vpop.f32.mrb[0].mxu0
      %v383 = vpop.f32.mrb[0].mxu0
      %v384 = vadd.f32 0.0, %v383
      %v385 = vpop.f32.mrb[0].mxu0
      %386 = vmatprep.mubr.bf16.mxu0 0
      %387 = vmatmul.mubr.bf16.gmra.mrb[0].mxu0 %v304
      %v388 = vpop.f32.mrb[0].mxu0
      %v389 = vadd.f32 0.0, %v388
      %v390 = vpop.f32.mrb[0].mxu0
      %v391 = vpop.f32.mrb[0].mxu0
      %v392 = vadd.f32 0.0, %v391
      %v393 = vpop.f32.mrb[0].mxu0
      %394 = vmatprep.mubr.bf16.mxu0 0
      %395 = vmatmul.mubr.bf16.gmra.mrb[0].mxu0 %v307
      %v396 = vpop.f32.mrb[0].mxu0
      %v397 = vadd.f32 0.0, %v396
      %v398 = vpop.f32.mrb[0].mxu0
      %v399 = vpop.f32.mrb[0].mxu0
      %v400 = vadd.f32 0.0, %v399
      %v401 = vpop.f32.mrb[0].mxu0
      %402 = vmatprep.mubr.bf16.mxu0 0
      %403 = vmatmul.mubr.bf16.gmra.mrb[0].mxu0 %v310
      %v404 = vpop.f32.mrb[0].mxu0
      %v405 = vadd.f32 0.0, %v404
      %v406 = vpop.f32.mrb[0].mxu0
      %v407 = vpop.f32.mrb[0].mxu0
      %v408 = vadd.f32 0.0, %v407
      %v409 = vpop.f32.mrb[0].mxu0
      %410 = vmatprep.mubr.bf16.mxu0 0
      %411 = vmatmul.mubr.bf16.gmra.mrb[0].mxu0 %v313
      %v412 = vpop.f32.mrb[0].mxu0
      %v413 = vadd.f32 0.0, %v412
      %v414 = vpop.f32.mrb[0].mxu0
      %v415 = vpop.f32.mrb[0].mxu0
      %v416 = vadd.f32 0.0, %v415
      %v417 = vpop.f32.mrb[0].mxu0
      %418 = vmatprep.mubr.bf16.mxu0 0
      %419 = vmatmul.mubr.bf16.gmra.mrb[0].mxu0 %v316
      %v420 = vpop.f32.mrb[0].mxu0
      %v421 = vadd.f32 0.0, %v420
      %v422 = vpop.f32.mrb[0].mxu0
      %v423 = vpop.f32.mrb[0].mxu0
      %v424 = vadd.f32 0.0, %v423
      %v425 = vpop.f32.mrb[0].mxu0
      %426 = vmatprep.mubr.bf16.mxu0 0
      %427 = vmatmul.mubr.bf16.gmra.mrb[0].mxu0 %v319
      %v428 = vpop.f32.mrb[0].mxu0
      %v429 = vadd.f32 0.0, %v428
      %v430 = vpop.f32.mrb[0].mxu0
      %v431 = vpop.f32.mrb[0].mxu0
      %v432 = vadd.f32 0.0, %v431
      %v433 = vpop.f32.mrb[0].mxu0
      %434 = vmatprep.mubr.bf16.mxu0 0
      %435 = vmatmul.mubr.bf16.gmra.mrb[0].mxu0 %v322
      %v436 = vpop.f32.mrb[0].mxu0
      %v437 = vadd.f32 0.0, %v436
      %v438 = vpop.f32.mrb[0].mxu0
      %v439 = vpop.f32.mrb[0].mxu0
      %v440 = vadd.f32 0.0, %v439
      %v441 = vpop.f32.mrb[0].mxu0
      %442 = vmatprep.mubr.bf16.mxu0 0
      %443 = vmatmul.mubr.bf16.gmra.mrb[0].mxu0 %v325
      %v444 = vpop.f32.mrb[0].mxu0
      %v445 = vadd.f32 0.0, %v444
      %v446 = vpop.f32.mrb[0].mxu0
      %v447 = vpop.f32.mrb[0].mxu0
      %v448 = vadd.f32 0.0, %v447
      %v449 = vpop.f32.mrb[0].mxu0
      %450 = vmatprep.mubr.bf16.mxu0 0
      %451 = vmatmul.mubr.bf16.gmra.mrb[0].mxu0 %v328
      %v452 = vpop.f32.mrb[0].mxu0
      %v453 = vadd.f32 0.0, %v452
      %v454 = vpop.f32.mrb[0].mxu0
      %v455 = vpop.f32.mrb[0].mxu0
      %v456 = vadd.f32 0.0, %v455
      %v457 = vpop.f32.mrb[0].mxu0
      %458 = vmatprep.mubr.bf16.mxu0 0
      %459 = vmatmul.mubr.bf16.gmra.mrb[0].mxu0 %v331
      %v460 = vpop.f32.mrb[0].mxu0
      %v461 = vadd.f32 0.0, %v460
      %v462 = vpop.f32.mrb[0].mxu0
      %v463 = vpop.f32.mrb[0].mxu0
      %v464 = vadd.f32 0.0, %v463
      %v465 = vpop.f32.mrb[0].mxu0
      %466 = vmatprep.mubr.bf16.mxu0 0
      %467 = vmatmul.mubr.bf16.gmra.mrb[0].mxu0 %v334
      %v468 = vpop.f32.mrb[0].mxu0
      %v469 = vadd.f32 0.0, %v468
      %v470 = vpop.f32.mrb[0].mxu0
      %v471 = vpop.f32.mrb[0].mxu0
      %v472 = vadd.f32 0.0, %v471
      %v473 = vpop.f32.mrb[0].mxu0
      %474 = vmatprep.mubr.bf16.mxu0 0
      %475 = vmatmul.mubr.bf16.gmra.mrb[0].mxu0 %v337
      %v476 = vpop.f32.mrb[0].mxu0
      %v477 = vadd.f32 0.0, %v476
      %v478 = vpop.f32.mrb[0].mxu0
      %v479 = vpop.f32.mrb[0].mxu0
      %v480 = vpop.f32.mrb[0].mxu0
      %481 = vdwg.mxu0
      %s482 = scalar_lea.vmem %s165, 100
      %v483 = vld [vmem:[%s482] sm:$0xf]
      %v484 = vld [vmem:[%s482 + $0x4] sm:$0xf]
      %v485 = vld [vmem:[%s482 + $0x8] sm:$0xf]
      %v486 = vld [vmem:[%s482 + $0xc] sm:$0xf]
      %v487 = vld [vmem:[%s482 + $0x10] sm:$0xf]
      %v488 = vld [vmem:[%s482 + $0x14] sm:$0xf]
      %v489 = vld [vmem:[%s482 + $0x18] sm:$0xf]
      %v490 = vld [vmem:[%s482 + $0x1c] sm:$0xf]
      %v491 = vld [vmem:[%s482 + $0x20] sm:$0xf]
      %v492 = vld [vmem:[%s482 + $0x24] sm:$0xf]
      %v493 = vld [vmem:[%s482 + $0x28] sm:$0xf]
      %v494 = vld [vmem:[%s482 + $0x2c] sm:$0xf]
      %v495 = vld [vmem:[%s482 + $0x30] sm:$0xf]
      %v496 = vld [vmem:[%s482 + $0x34] sm:$0xf]
      %v497 = vld [vmem:[%s482 + $0x38] sm:$0xf]
      %v498 = vld [vmem:[%s482 + $0x3c] sm:$0xf]
      %v499 = vld [vmem:[%s482 + $0x40] sm:$0xf]
      %v500 = vld [vmem:[%s482 + $0x44] sm:$0xf]
      %v501 = vld [vmem:[%s482 + $0x48] sm:$0xf]
      %v502 = vld [vmem:[%s482 + $0x4c] sm:$0xf]
      %v503 = vld [vmem:[%s482 + $0x50] sm:$0xf]
      %v504 = vld [vmem:[%s482 + $0x54] sm:$0xf]
      %v505 = vld [vmem:[%s482 + $0x58] sm:$0xf]
      %v506 = vld [vmem:[%s482 + $0x5c] sm:$0xf]
      %v507 = vld [vmem:[%s482 + $0x60] sm:$0x3]
      %v533 = vunpack.c.l.b16 %v483
      %v534 = vunpack.c.l.b16 %v484
      %v535 = vunpack.c.l.b16 %v485
      %v536 = vunpack.c.l.b16 %v486
      %v537 = vunpack.c.l.b16 %v487
      %v538 = vunpack.c.l.b16 %v488
      %v539 = vunpack.c.l.b16 %v489
      %v540 = vunpack.c.l.b16 %v490
      %v541 = vunpack.c.l.b16 %v491
      %v542 = vunpack.c.l.b16 %v492
      %v543 = vunpack.c.l.b16 %v493
      %v544 = vunpack.c.l.b16 %v494
      %v545 = vunpack.c.l.b16 %v495
      %v546 = vunpack.c.l.b16 %v496
      %v547 = vunpack.c.l.b16 %v497
      %v548 = vunpack.c.l.b16 %v498
      %v549 = vunpack.c.l.b16 %v499
      %v550 = vunpack.c.l.b16 %v500
      %v551 = vunpack.c.l.b16 %v501
      %v552 = vunpack.c.l.b16 %v502
      %v553 = vunpack.c.l.b16 %v503
      %v554 = vunpack.c.l.b16 %v504
      %v555 = vunpack.c.l.b16 %v505
      %v556 = vunpack.c.l.b16 %v506
      %v557 = vunpack.c.l.b16 %v507
      %v558 = vpack.c.b16 %v534, %v533
      %v559 = vpack.c.b16 %v536, %v535
      %v560 = vpack.c.b16 %v538, %v537
      %v561 = vpack.c.b16 %v540, %v539
      %v562 = vpack.c.b16 %v542, %v541
      %v563 = vpack.c.b16 %v544, %v543
      %v564 = vpack.c.b16 %v546, %v545
      %v565 = vpack.c.b16 %v548, %v547
      %v566 = vpack.c.b16 %v550, %v549
      %v567 = vpack.c.b16 %v552, %v551
      %v568 = vpack.c.b16 %v554, %v553
      %v569 = vpack.c.b16 %v556, %v555
      %v570 = vpack.c.b16 %v557, %v557
      %v572 = vsel %vm299, %v558, 0
      %v575 = vsel %vm299, %v559, 0
      %v578 = vsel %vm299, %v560, 0
      %v581 = vsel %vm299, %v561, 0
      %v584 = vsel %vm299, %v562, 0
      %v587 = vsel %vm299, %v563, 0
      %v590 = vsel %vm299, %v564, 0
      %v593 = vsel %vm299, %v565, 0
      %v596 = vsel %vm299, %v566, 0
      %v599 = vsel %vm299, %v567, 0
      %v602 = vsel %vm299, %v568, 0
      %v605 = vsel %vm299, %v569, 0
      %v608 = vsel %vm299, %v570, 0
      %610 = vmatprep.subr.bf16.mxu0 0
      %611 = vmatpush1.bf16.msra.mxu0 %v290
      %612 = vmatprep.subr.bf16.mxu0 0
      %613 = vmatpush1.bf16.msra.mxu0 %v291
      %614 = vmatprep.subr.bf16.mxu0 0
      %615 = vmatpush1.bf16.msra.mxu0 %v292
      %616 = vmatprep.subr.bf16.mxu0 0
      %617 = vmatpush1.bf16.msra.mxu0 %v293
      %618 = vmatprep.subr.bf16.mxu0 0
      %619 = vmatpush1.bf16.msra.mxu0 %v344
      %620 = vmatprep.subr.bf16.mxu0 0
      %621 = vmatpush1.bf16.msra.mxu0 0
      %622 = vmatprep.subr.bf16.mxu0 0
      %623 = vmatpush1.bf16.msra.mxu0 0
      %624 = vmatprep.subr.bf16.mxu0 0
      %625 = vmatpush1.bf16.msra.mxu0 0
      %626 = vmatprep.subr.bf16.mxu0 0
      %627 = vmatpush1.bf16.msra.mxu0 0
      %628 = vmatprep.subr.bf16.mxu0 0
      %629 = vmatpush1.bf16.msra.mxu0 0
      %630 = vmatprep.subr.bf16.mxu0 0
      %631 = vmatpush1.bf16.msra.mxu0 0
      %632 = vmatprep.subr.bf16.mxu0 0
      %633 = vmatpush1.bf16.msra.mxu0 0
      %634 = vmatprep.subr.bf16.mxu0 0
      %635 = vmatpush1.bf16.msra.mxu0 0
      %636 = vmatprep.subr.bf16.mxu0 0
      %637 = vmatpush1.bf16.msra.mxu0 0
      %638 = vmatprep.subr.bf16.mxu0 0
      %639 = vmatpush1.bf16.msra.mxu0 0
      %640 = vmatprep.subr.bf16.mxu0 0
      %641 = vmatpush1.bf16.msra.mxu0 0
      %642 = vmatprep.mubr.bf16.mxu0 0
      %643 = vmatmul.mubr.bf16.gmra.mrb[0].mxu0 %v572
      %v644 = vpop.f32.mrb[0].mxu0
      %v645 = vadd.f32 0.0, %v644
      %v646 = vpop.f32.mrb[0].mxu0
      %v647 = vpop.f32.mrb[0].mxu0
      %v648 = vadd.f32 0.0, %v647
      %v649 = vpop.f32.mrb[0].mxu0
      %650 = vmatprep.mubr.bf16.mxu0 0
      %651 = vmatmul.mubr.bf16.gmra.mrb[0].mxu0 %v575
      %v652 = vpop.f32.mrb[0].mxu0
      %v653 = vadd.f32 0.0, %v652
      %v654 = vpop.f32.mrb[0].mxu0
      %v655 = vpop.f32.mrb[0].mxu0
      %v656 = vadd.f32 0.0, %v655
      %v657 = vpop.f32.mrb[0].mxu0
      %658 = vmatprep.mubr.bf16.mxu0 0
      %659 = vmatmul.mubr.bf16.gmra.mrb[0].mxu0 %v578
      %v660 = vpop.f32.mrb[0].mxu0
      %v661 = vadd.f32 0.0, %v660
      %v662 = vpop.f32.mrb[0].mxu0
      %v663 = vpop.f32.mrb[0].mxu0
      %v664 = vadd.f32 0.0, %v663
      %v665 = vpop.f32.mrb[0].mxu0
      %666 = vmatprep.mubr.bf16.mxu0 0
      %667 = vmatmul.mubr.bf16.gmra.mrb[0].mxu0 %v581
      %v668 = vpop.f32.mrb[0].mxu0
      %v669 = vadd.f32 0.0, %v668
      %v670 = vpop.f32.mrb[0].mxu0
      %v671 = vpop.f32.mrb[0].mxu0
      %v672 = vadd.f32 0.0, %v671
      %v673 = vpop.f32.mrb[0].mxu0
      %674 = vmatprep.mubr.bf16.mxu0 0
      %675 = vmatmul.mubr.bf16.gmra.mrb[0].mxu0 %v584
      %v676 = vpop.f32.mrb[0].mxu0
      %v677 = vadd.f32 0.0, %v676
      %v678 = vpop.f32.mrb[0].mxu0
      %v679 = vpop.f32.mrb[0].mxu0
      %v680 = vadd.f32 0.0, %v679
      %v681 = vpop.f32.mrb[0].mxu0
      %682 = vmatprep.mubr.bf16.mxu0 0
      %683 = vmatmul.mubr.bf16.gmra.mrb[0].mxu0 %v587
      %v684 = vpop.f32.mrb[0].mxu0
      %v685 = vadd.f32 0.0, %v684
      %v686 = vpop.f32.mrb[0].mxu0
      %v687 = vpop.f32.mrb[0].mxu0
      %v688 = vadd.f32 0.0, %v687
      %v689 = vpop.f32.mrb[0].mxu0
      %690 = vmatprep.mubr.bf16.mxu0 0
      %691 = vmatmul.mubr.bf16.gmra.mrb[0].mxu0 %v590
      %v692 = vpop.f32.mrb[0].mxu0
      %v693 = vadd.f32 0.0, %v692
      %v694 = vpop.f32.mrb[0].mxu0
      %v695 = vpop.f32.mrb[0].mxu0
      %v696 = vadd.f32 0.0, %v695
      %v697 = vpop.f32.mrb[0].mxu0
      %698 = vmatprep.mubr.bf16.mxu0 0
      %699 = vmatmul.mubr.bf16.gmra.mrb[0].mxu0 %v593
      %v700 = vpop.f32.mrb[0].mxu0
      %v701 = vadd.f32 0.0, %v700
      %v702 = vpop.f32.mrb[0].mxu0
      %v703 = vpop.f32.mrb[0].mxu0
      %v704 = vadd.f32 0.0, %v703
      %v705 = vpop.f32.mrb[0].mxu0
      %706 = vmatprep.mubr.bf16.mxu0 0
      %707 = vmatmul.mubr.bf16.gmra.mrb[0].mxu0 %v596
      %v708 = vpop.f32.mrb[0].mxu0
      %v709 = vadd.f32 0.0, %v708
      %v710 = vpop.f32.mrb[0].mxu0
      %v711 = vpop.f32.mrb[0].mxu0
      %v712 = vadd.f32 0.0, %v711
      %v713 = vpop.f32.mrb[0].mxu0
      %714 = vmatprep.mubr.bf16.mxu0 0
      %715 = vmatmul.mubr.bf16.gmra.mrb[0].mxu0 %v599
      %v716 = vpop.f32.mrb[0].mxu0
      %v717 = vadd.f32 0.0, %v716
      %v718 = vpop.f32.mrb[0].mxu0
      %v719 = vpop.f32.mrb[0].mxu0
      %v720 = vadd.f32 0.0, %v719
      %v721 = vpop.f32.mrb[0].mxu0
      %722 = vmatprep.mubr.bf16.mxu0 0
      %723 = vmatmul.mubr.bf16.gmra.mrb[0].mxu0 %v602
      %v724 = vpop.f32.mrb[0].mxu0
      %v725 = vadd.f32 0.0, %v724
      %v726 = vpop.f32.mrb[0].mxu0
      %v727 = vpop.f32.mrb[0].mxu0
      %v728 = vadd.f32 0.0, %v727
      %v729 = vpop.f32.mrb[0].mxu0
      %730 = vmatprep.mubr.bf16.mxu0 0
      %731 = vmatmul.mubr.bf16.gmra.mrb[0].mxu0 %v605
      %v732 = vpop.f32.mrb[0].mxu0
      %v733 = vadd.f32 0.0, %v732
      %v734 = vpop.f32.mrb[0].mxu0
      %v735 = vpop.f32.mrb[0].mxu0
      %v736 = vadd.f32 0.0, %v735
      %v737 = vpop.f32.mrb[0].mxu0
      %738 = vmatprep.mubr.bf16.mxu0 0
      %739 = vmatmul.mubr.bf16.gmra.mrb[0].mxu0 %v608
      %v740 = vpop.f32.mrb[0].mxu0
      %v741 = vadd.f32 0.0, %v740
      %v742 = vpop.f32.mrb[0].mxu0
      %v743 = vpop.f32.mrb[0].mxu0
      %v744 = vpop.f32.mrb[0].mxu0
      %745 = vdwg.mxu0
      %v746 = vmax.f32 %v381, %v645
      %v747 = vmax.f32 %v384, %v648
      %v748 = vmax.f32 %v389, %v653
      %v749 = vmax.f32 %v392, %v656
      %v750 = vmax.f32 %v397, %v661
      %v751 = vmax.f32 %v400, %v664
      %v752 = vmax.f32 %v405, %v669
      %v753 = vmax.f32 %v408, %v672
      %v754 = vmax.f32 %v413, %v677
      %v755 = vmax.f32 %v416, %v680
      %v756 = vmax.f32 %v421, %v685
      %v757 = vmax.f32 %v424, %v688
      %v758 = vmax.f32 %v429, %v693
      %v759 = vmax.f32 %v432, %v696
      %v760 = vmax.f32 %v437, %v701
      %v761 = vmax.f32 %v440, %v704
      %v762 = vmax.f32 %v445, %v709
      %v763 = vmax.f32 %v448, %v712
      %v764 = vmax.f32 %v453, %v717
      %v765 = vmax.f32 %v456, %v720
      %v766 = vmax.f32 %v461, %v725
      %v767 = vmax.f32 %v464, %v728
      %v768 = vmax.f32 %v469, %v733
      %v769 = vmax.f32 %v472, %v736
      %v770 = vmax.f32 %v477, %v741
      %s771 = scalar_lea.vmem %s165, 200
      %v772 = vld [vmem:[%s771] sm:$0xf]
      %v773 = vld [vmem:[%s771 + $0x4] sm:$0xf]
      %v774 = vld [vmem:[%s771 + $0x8] sm:$0xf]
      %v775 = vld [vmem:[%s771 + $0xc] sm:$0xf]
      %v776 = vld [vmem:[%s771 + $0x10] sm:$0xf]
      %v777 = vld [vmem:[%s771 + $0x14] sm:$0xf]
      %v778 = vld [vmem:[%s771 + $0x18] sm:$0xf]
      %v779 = vld [vmem:[%s771 + $0x1c] sm:$0xf]
      %v780 = vld [vmem:[%s771 + $0x20] sm:$0xf]
      %v781 = vld [vmem:[%s771 + $0x24] sm:$0xf]
      %v782 = vld [vmem:[%s771 + $0x28] sm:$0xf]
      %v783 = vld [vmem:[%s771 + $0x2c] sm:$0xf]
      %v784 = vld [vmem:[%s771 + $0x30] sm:$0xf]
      %v785 = vld [vmem:[%s771 + $0x34] sm:$0xf]
      %v786 = vld [vmem:[%s771 + $0x38] sm:$0xf]
      %v787 = vld [vmem:[%s771 + $0x3c] sm:$0xf]
      %v788 = vld [vmem:[%s771 + $0x40] sm:$0xf]
      %v789 = vld [vmem:[%s771 + $0x44] sm:$0xf]
      %v790 = vld [vmem:[%s771 + $0x48] sm:$0xf]
      %v791 = vld [vmem:[%s771 + $0x4c] sm:$0xf]
      %v792 = vld [vmem:[%s771 + $0x50] sm:$0xf]
      %v793 = vld [vmem:[%s771 + $0x54] sm:$0xf]
      %v794 = vld [vmem:[%s771 + $0x58] sm:$0xf]
      %v795 = vld [vmem:[%s771 + $0x5c] sm:$0xf]
      %v796 = vld [vmem:[%s771 + $0x60] sm:$0x3]
      %v822 = vunpack.c.l.b16 %v772
      %v823 = vunpack.c.l.b16 %v773
      %v824 = vunpack.c.l.b16 %v774
      %v825 = vunpack.c.l.b16 %v775
      %v826 = vunpack.c.l.b16 %v776
      %v827 = vunpack.c.l.b16 %v777
      %v828 = vunpack.c.l.b16 %v778
      %v829 = vunpack.c.l.b16 %v779
      %v830 = vunpack.c.l.b16 %v780
      %v831 = vunpack.c.l.b16 %v781
      %v832 = vunpack.c.l.b16 %v782
      %v833 = vunpack.c.l.b16 %v783
      %v834 = vunpack.c.l.b16 %v784
      %v835 = vunpack.c.l.b16 %v785
      %v836 = vunpack.c.l.b16 %v786
      %v837 = vunpack.c.l.b16 %v787
      %v838 = vunpack.c.l.b16 %v788
      %v839 = vunpack.c.l.b16 %v789
      %v840 = vunpack.c.l.b16 %v790
      %v841 = vunpack.c.l.b16 %v791
      %v842 = vunpack.c.l.b16 %v792
      %v843 = vunpack.c.l.b16 %v793
      %v844 = vunpack.c.l.b16 %v794
      %v845 = vunpack.c.l.b16 %v795
      %v846 = vunpack.c.l.b16 %v796
      %v847 = vpack.c.b16 %v823, %v822
      %v848 = vpack.c.b16 %v825, %v824
      %v849 = vpack.c.b16 %v827, %v826
      %v850 = vpack.c.b16 %v829, %v828
      %v851 = vpack.c.b16 %v831, %v830
      %v852 = vpack.c.b16 %v833, %v832
      %v853 = vpack.c.b16 %v835, %v834
      %v854 = vpack.c.b16 %v837, %v836
      %v855 = vpack.c.b16 %v839, %v838
      %v856 = vpack.c.b16 %v841, %v840
      %v857 = vpack.c.b16 %v843, %v842
      %v858 = vpack.c.b16 %v845, %v844
      %v859 = vpack.c.b16 %v846, %v846
      %v861 = vsel %vm299, %v847, 0
      %v864 = vsel %vm299, %v848, 0
      %v867 = vsel %vm299, %v849, 0
      %v870 = vsel %vm299, %v850, 0
      %v873 = vsel %vm299, %v851, 0
      %v876 = vsel %vm299, %v852, 0
      %v879 = vsel %vm299, %v853, 0
      %v882 = vsel %vm299, %v854, 0
      %v885 = vsel %vm299, %v855, 0
      %v888 = vsel %vm299, %v856, 0
      %v891 = vsel %vm299, %v857, 0
      %v894 = vsel %vm299, %v858, 0
      %v897 = vsel %vm299, %v859, 0
      %899 = vmatprep.subr.bf16.mxu0 0
      %900 = vmatpush1.bf16.msra.mxu0 %v290
      %901 = vmatprep.subr.bf16.mxu0 0
      %902 = vmatpush1.bf16.msra.mxu0 %v291
      %903 = vmatprep.subr.bf16.mxu0 0
      %904 = vmatpush1.bf16.msra.mxu0 %v292
      %905 = vmatprep.subr.bf16.mxu0 0
      %906 = vmatpush1.bf16.msra.mxu0 %v293
      %907 = vmatprep.subr.bf16.mxu0 0
      %908 = vmatpush1.bf16.msra.mxu0 %v344
      %909 = vmatprep.subr.bf16.mxu0 0
      %910 = vmatpush1.bf16.msra.mxu0 0
      %911 = vmatprep.subr.bf16.mxu0 0
      %912 = vmatpush1.bf16.msra.mxu0 0
      %913 = vmatprep.subr.bf16.mxu0 0
      %914 = vmatpush1.bf16.msra.mxu0 0
      %915 = vmatprep.subr.bf16.mxu0 0
      %916 = vmatpush1.bf16.msra.mxu0 0
      %917 = vmatprep.subr.bf16.mxu0 0
      %918 = vmatpush1.bf16.msra.mxu0 0
      %919 = vmatprep.subr.bf16.mxu0 0
      %920 = vmatpush1.bf16.msra.mxu0 0
      %921 = vmatprep.subr.bf16.mxu0 0
      %922 = vmatpush1.bf16.msra.mxu0 0
      %923 = vmatprep.subr.bf16.mxu0 0
      %924 = vmatpush1.bf16.msra.mxu0 0
      %925 = vmatprep.subr.bf16.mxu0 0
      %926 = vmatpush1.bf16.msra.mxu0 0
      %927 = vmatprep.subr.bf16.mxu0 0
      %928 = vmatpush1.bf16.msra.mxu0 0
      %929 = vmatprep.subr.bf16.mxu0 0
      %930 = vmatpush1.bf16.msra.mxu0 0
      %931 = vmatprep.mubr.bf16.mxu0 0
      %932 = vmatmul.mubr.bf16.gmra.mrb[0].mxu0 %v861
      %v933 = vpop.f32.mrb[0].mxu0
      %v934 = vadd.f32 0.0, %v933
      %v935 = vpop.f32.mrb[0].mxu0
      %v936 = vpop.f32.mrb[0].mxu0
      %v937 = vadd.f32 0.0, %v936
      %v938 = vpop.f32.mrb[0].mxu0
      %939 = vmatprep.mubr.bf16.mxu0 0
      %940 = vmatmul.mubr.bf16.gmra.mrb[0].mxu0 %v864
      %v941 = vpop.f32.mrb[0].mxu0
      %v942 = vadd.f32 0.0, %v941
      %v943 = vpop.f32.mrb[0].mxu0
      %v944 = vpop.f32.mrb[0].mxu0
      %v945 = vadd.f32 0.0, %v944
      %v946 = vpop.f32.mrb[0].mxu0
      %947 = vmatprep.mubr.bf16.mxu0 0
      %948 = vmatmul.mubr.bf16.gmra.mrb[0].mxu0 %v867
      %v949 = vpop.f32.mrb[0].mxu0
      %v950 = vadd.f32 0.0, %v949
      %v951 = vpop.f32.mrb[0].mxu0
      %v952 = vpop.f32.mrb[0].mxu0
      %v953 = vadd.f32 0.0, %v952
      %v954 = vpop.f32.mrb[0].mxu0
      %955 = vmatprep.mubr.bf16.mxu0 0
      %956 = vmatmul.mubr.bf16.gmra.mrb[0].mxu0 %v870
      %v957 = vpop.f32.mrb[0].mxu0
      %v958 = vadd.f32 0.0, %v957
      %v959 = vpop.f32.mrb[0].mxu0
      %v960 = vpop.f32.mrb[0].mxu0
      %v961 = vadd.f32 0.0, %v960
      %v962 = vpop.f32.mrb[0].mxu0
      %963 = vmatprep.mubr.bf16.mxu0 0
      %964 = vmatmul.mubr.bf16.gmra.mrb[0].mxu0 %v873
      %v965 = vpop.f32.mrb[0].mxu0
      %v966 = vadd.f32 0.0, %v965
      %v967 = vpop.f32.mrb[0].mxu0
      %v968 = vpop.f32.mrb[0].mxu0
      %v969 = vadd.f32 0.0, %v968
      %v970 = vpop.f32.mrb[0].mxu0
      %971 = vmatprep.mubr.bf16.mxu0 0
      %972 = vmatmul.mubr.bf16.gmra.mrb[0].mxu0 %v876
      %v973 = vpop.f32.mrb[0].mxu0
      %v974 = vadd.f32 0.0, %v973
      %v975 = vpop.f32.mrb[0].mxu0
      %v976 = vpop.f32.mrb[0].mxu0
      %v977 = vadd.f32 0.0, %v976
      %v978 = vpop.f32.mrb[0].mxu0
      %979 = vmatprep.mubr.bf16.mxu0 0
      %980 = vmatmul.mubr.bf16.gmra.mrb[0].mxu0 %v879
      %v981 = vpop.f32.mrb[0].mxu0
      %v982 = vadd.f32 0.0, %v981
      %v983 = vpop.f32.mrb[0].mxu0
      %v984 = vpop.f32.mrb[0].mxu0
      %v985 = vadd.f32 0.0, %v984
      %v986 = vpop.f32.mrb[0].mxu0
      %987 = vmatprep.mubr.bf16.mxu0 0
      %988 = vmatmul.mubr.bf16.gmra.mrb[0].mxu0 %v882
      %v989 = vpop.f32.mrb[0].mxu0
      %v990 = vadd.f32 0.0, %v989
      %v991 = vpop.f32.mrb[0].mxu0
      %v992 = vpop.f32.mrb[0].mxu0
      %v993 = vadd.f32 0.0, %v992
      %v994 = vpop.f32.mrb[0].mxu0
      %995 = vmatprep.mubr.bf16.mxu0 0
      %996 = vmatmul.mubr.bf16.gmra.mrb[0].mxu0 %v885
      %v997 = vpop.f32.mrb[0].mxu0
      %v998 = vadd.f32 0.0, %v997
      %v999 = vpop.f32.mrb[0].mxu0
      %v1000 = vpop.f32.mrb[0].mxu0
      %v1001 = vadd.f32 0.0, %v1000
      %v1002 = vpop.f32.mrb[0].mxu0
      %1003 = vmatprep.mubr.bf16.mxu0 0
      %1004 = vmatmul.mubr.bf16.gmra.mrb[0].mxu0 %v888
      %v1005 = vpop.f32.mrb[0].mxu0
      %v1006 = vadd.f32 0.0, %v1005
      %v1007 = vpop.f32.mrb[0].mxu0
      %v1008 = vpop.f32.mrb[0].mxu0
      %v1009 = vadd.f32 0.0, %v1008
      %v1010 = vpop.f32.mrb[0].mxu0
      %1011 = vmatprep.mubr.bf16.mxu0 0
      %1012 = vmatmul.mubr.bf16.gmra.mrb[0].mxu0 %v891
      %v1013 = vpop.f32.mrb[0].mxu0
      %v1014 = vadd.f32 0.0, %v1013
      %v1015 = vpop.f32.mrb[0].mxu0
      %v1016 = vpop.f32.mrb[0].mxu0
      %v1017 = vadd.f32 0.0, %v1016
      %v1018 = vpop.f32.mrb[0].mxu0
      %1019 = vmatprep.mubr.bf16.mxu0 0
      %1020 = vmatmul.mubr.bf16.gmra.mrb[0].mxu0 %v894
      %v1021 = vpop.f32.mrb[0].mxu0
      %v1022 = vadd.f32 0.0, %v1021
      %v1023 = vpop.f32.mrb[0].mxu0
      %v1024 = vpop.f32.mrb[0].mxu0
      %v1025 = vadd.f32 0.0, %v1024
      %v1026 = vpop.f32.mrb[0].mxu0
      %1027 = vmatprep.mubr.bf16.mxu0 0
      %1028 = vmatmul.mubr.bf16.gmra.mrb[0].mxu0 %v897
      %v1029 = vpop.f32.mrb[0].mxu0
      %v1030 = vadd.f32 0.0, %v1029
      %v1031 = vpop.f32.mrb[0].mxu0
      %v1032 = vpop.f32.mrb[0].mxu0
      %v1033 = vpop.f32.mrb[0].mxu0
      %1034 = vdwg.mxu0
      %v1035 = vmax.f32 %v746, %v934
      %v1036 = vmax.f32 %v747, %v937
      %v1037 = vmax.f32 %v748, %v942
      %v1038 = vmax.f32 %v749, %v945
      %v1039 = vmax.f32 %v750, %v950
      %v1040 = vmax.f32 %v751, %v953
      %v1041 = vmax.f32 %v752, %v958
      %v1042 = vmax.f32 %v753, %v961
      %v1043 = vmax.f32 %v754, %v966
      %v1044 = vmax.f32 %v755, %v969
      %v1045 = vmax.f32 %v756, %v974
      %v1046 = vmax.f32 %v757, %v977
      %v1047 = vmax.f32 %v758, %v982
      %v1048 = vmax.f32 %v759, %v985
      %v1049 = vmax.f32 %v760, %v990
      %v1050 = vmax.f32 %v761, %v993
      %v1051 = vmax.f32 %v762, %v998
      %v1052 = vmax.f32 %v763, %v1001
      %v1053 = vmax.f32 %v764, %v1006
      %v1054 = vmax.f32 %v765, %v1009
      %v1055 = vmax.f32 %v766, %v1014
      %v1056 = vmax.f32 %v767, %v1017
      %v1057 = vmax.f32 %v768, %v1022
      %v1058 = vmax.f32 %v769, %v1025
      %v1059 = vmax.f32 %v770, %v1030
      %s1060 = scalar_lea.vmem %s165, 300
      %v1061 = vld [vmem:[%s1060] sm:$0xf]
      %v1062 = vld [vmem:[%s1060 + $0x4] sm:$0xf]
      %v1063 = vld [vmem:[%s1060 + $0x8] sm:$0xf]
      %v1064 = vld [vmem:[%s1060 + $0xc] sm:$0xf]
      %v1065 = vld [vmem:[%s1060 + $0x10] sm:$0xf]
      %v1066 = vld [vmem:[%s1060 + $0x14] sm:$0xf]
      %v1067 = vld [vmem:[%s1060 + $0x18] sm:$0xf]
      %v1068 = vld [vmem:[%s1060 + $0x1c] sm:$0xf]
      %v1069 = vld [vmem:[%s1060 + $0x20] sm:$0xf]
      %v1070 = vld [vmem:[%s1060 + $0x24] sm:$0xf]
      %v1071 = vld [vmem:[%s1060 + $0x28] sm:$0xf]
      %v1072 = vld [vmem:[%s1060 + $0x2c] sm:$0xf]
      %v1073 = vld [vmem:[%s1060 + $0x30] sm:$0xf]
      %v1074 = vld [vmem:[%s1060 + $0x34] sm:$0xf]
      %v1075 = vld [vmem:[%s1060 + $0x38] sm:$0xf]
      %v1076 = vld [vmem:[%s1060 + $0x3c] sm:$0xf]
      %v1077 = vld [vmem:[%s1060 + $0x40] sm:$0xf]
      %v1078 = vld [vmem:[%s1060 + $0x44] sm:$0xf]
      %v1079 = vld [vmem:[%s1060 + $0x48] sm:$0xf]
      %v1080 = vld [vmem:[%s1060 + $0x4c] sm:$0xf]
      %v1081 = vld [vmem:[%s1060 + $0x50] sm:$0xf]
      %v1082 = vld [vmem:[%s1060 + $0x54] sm:$0xf]
      %v1083 = vld [vmem:[%s1060 + $0x58] sm:$0xf]
      %v1084 = vld [vmem:[%s1060 + $0x5c] sm:$0xf]
      %v1085 = vld [vmem:[%s1060 + $0x60] sm:$0x3]
      %v1111 = vunpack.c.l.b16 %v1061
      %v1112 = vunpack.c.l.b16 %v1062
      %v1113 = vunpack.c.l.b16 %v1063
      %v1114 = vunpack.c.l.b16 %v1064
      %v1115 = vunpack.c.l.b16 %v1065
      %v1116 = vunpack.c.l.b16 %v1066
      %v1117 = vunpack.c.l.b16 %v1067
      %v1118 = vunpack.c.l.b16 %v1068
      %v1119 = vunpack.c.l.b16 %v1069
      %v1120 = vunpack.c.l.b16 %v1070
      %v1121 = vunpack.c.l.b16 %v1071
      %v1122 = vunpack.c.l.b16 %v1072
      %v1123 = vunpack.c.l.b16 %v1073
      %v1124 = vunpack.c.l.b16 %v1074
      %v1125 = vunpack.c.l.b16 %v1075
      %v1126 = vunpack.c.l.b16 %v1076
      %v1127 = vunpack.c.l.b16 %v1077
      %v1128 = vunpack.c.l.b16 %v1078
      %v1129 = vunpack.c.l.b16 %v1079
      %v1130 = vunpack.c.l.b16 %v1080
      %v1131 = vunpack.c.l.b16 %v1081
      %v1132 = vunpack.c.l.b16 %v1082
      %v1133 = vunpack.c.l.b16 %v1083
      %v1134 = vunpack.c.l.b16 %v1084
      %v1135 = vunpack.c.l.b16 %v1085
      %v1136 = vpack.c.b16 %v1112, %v1111
      %v1137 = vpack.c.b16 %v1114, %v1113
      %v1138 = vpack.c.b16 %v1116, %v1115
      %v1139 = vpack.c.b16 %v1118, %v1117
      %v1140 = vpack.c.b16 %v1120, %v1119
      %v1141 = vpack.c.b16 %v1122, %v1121
      %v1142 = vpack.c.b16 %v1124, %v1123
      %v1143 = vpack.c.b16 %v1126, %v1125
      %v1144 = vpack.c.b16 %v1128, %v1127
      %v1145 = vpack.c.b16 %v1130, %v1129
      %v1146 = vpack.c.b16 %v1132, %v1131
      %v1147 = vpack.c.b16 %v1134, %v1133
      %v1148 = vpack.c.b16 %v1135, %v1135
      %v1150 = vsel %vm299, %v1136, 0
      %v1153 = vsel %vm299, %v1137, 0
      %v1156 = vsel %vm299, %v1138, 0
      %v1159 = vsel %vm299, %v1139, 0
      %v1162 = vsel %vm299, %v1140, 0
      %v1165 = vsel %vm299, %v1141, 0
      %v1168 = vsel %vm299, %v1142, 0
      %v1171 = vsel %vm299, %v1143, 0
      %v1174 = vsel %vm299, %v1144, 0
      %v1177 = vsel %vm299, %v1145, 0
      %v1180 = vsel %vm299, %v1146, 0
      %v1183 = vsel %vm299, %v1147, 0
      %v1186 = vsel %vm299, %v1148, 0
      %1188 = vmatprep.subr.bf16.mxu0 0
      %1189 = vmatpush1.bf16.msra.mxu0 %v290
      %1190 = vmatprep.subr.bf16.mxu0 0
      %1191 = vmatpush1.bf16.msra.mxu0 %v291
      %1192 = vmatprep.subr.bf16.mxu0 0
      %1193 = vmatpush1.bf16.msra.mxu0 %v292
      %1194 = vmatprep.subr.bf16.mxu0 0
      %1195 = vmatpush1.bf16.msra.mxu0 %v293
      %1196 = vmatprep.subr.bf16.mxu0 0
      %1197 = vmatpush1.bf16.msra.mxu0 %v344
      %1198 = vmatprep.subr.bf16.mxu0 0
      %1199 = vmatpush1.bf16.msra.mxu0 0
      %1200 = vmatprep.subr.bf16.mxu0 0
      %1201 = vmatpush1.bf16.msra.mxu0 0
      %1202 = vmatprep.subr.bf16.mxu0 0
      %1203 = vmatpush1.bf16.msra.mxu0 0
      %1204 = vmatprep.subr.bf16.mxu0 0
      %1205 = vmatpush1.bf16.msra.mxu0 0
      %1206 = vmatprep.subr.bf16.mxu0 0
      %1207 = vmatpush1.bf16.msra.mxu0 0
      %1208 = vmatprep.subr.bf16.mxu0 0
      %1209 = vmatpush1.bf16.msra.mxu0 0
      %1210 = vmatprep.subr.bf16.mxu0 0
      %1211 = vmatpush1.bf16.msra.mxu0 0
      %1212 = vmatprep.subr.bf16.mxu0 0
      %1213 = vmatpush1.bf16.msra.mxu0 0
      %1214 = vmatprep.subr.bf16.mxu0 0
      %1215 = vmatpush1.bf16.msra.mxu0 0
      %1216 = vmatprep.subr.bf16.mxu0 0
      %1217 = vmatpush1.bf16.msra.mxu0 0
      %1218 = vmatprep.subr.bf16.mxu0 0
      %1219 = vmatpush1.bf16.msra.mxu0 0
      %1220 = vmatprep.mubr.bf16.mxu0 0
      %1221 = vmatmul.mubr.bf16.gmra.mrb[0].mxu0 %v1150
      %v1222 = vpop.f32.mrb[0].mxu0
      %v1223 = vadd.f32 0.0, %v1222
      %v1224 = vpop.f32.mrb[0].mxu0
      %v1225 = vpop.f32.mrb[0].mxu0
      %v1226 = vadd.f32 0.0, %v1225
      %v1227 = vpop.f32.mrb[0].mxu0
      %1228 = vmatprep.mubr.bf16.mxu0 0
      %1229 = vmatmul.mubr.bf16.gmra.mrb[0].mxu0 %v1153
      %v1230 = vpop.f32.mrb[0].mxu0
      %v1231 = vadd.f32 0.0, %v1230
      %v1232 = vpop.f32.mrb[0].mxu0
      %v1233 = vpop.f32.mrb[0].mxu0
      %v1234 = vadd.f32 0.0, %v1233
      %v1235 = vpop.f32.mrb[0].mxu0
      %1236 = vmatprep.mubr.bf16.mxu0 0
      %1237 = vmatmul.mubr.bf16.gmra.mrb[0].mxu0 %v1156
      %v1238 = vpop.f32.mrb[0].mxu0
      %v1239 = vadd.f32 0.0, %v1238
      %v1240 = vpop.f32.mrb[0].mxu0
      %v1241 = vpop.f32.mrb[0].mxu0
      %v1242 = vadd.f32 0.0, %v1241
      %v1243 = vpop.f32.mrb[0].mxu0
      %1244 = vmatprep.mubr.bf16.mxu0 0
      %1245 = vmatmul.mubr.bf16.gmra.mrb[0].mxu0 %v1159
      %v1246 = vpop.f32.mrb[0].mxu0
      %v1247 = vadd.f32 0.0, %v1246
      %v1248 = vpop.f32.mrb[0].mxu0
      %v1249 = vpop.f32.mrb[0].mxu0
      %v1250 = vadd.f32 0.0, %v1249
      %v1251 = vpop.f32.mrb[0].mxu0
      %1252 = vmatprep.mubr.bf16.mxu0 0
      %1253 = vmatmul.mubr.bf16.gmra.mrb[0].mxu0 %v1162
      %v1254 = vpop.f32.mrb[0].mxu0
      %v1255 = vadd.f32 0.0, %v1254
      %v1256 = vpop.f32.mrb[0].mxu0
      %v1257 = vpop.f32.mrb[0].mxu0
      %v1258 = vadd.f32 0.0, %v1257
      %v1259 = vpop.f32.mrb[0].mxu0
      %1260 = vmatprep.mubr.bf16.mxu0 0
      %1261 = vmatmul.mubr.bf16.gmra.mrb[0].mxu0 %v1165
      %v1262 = vpop.f32.mrb[0].mxu0
      %v1263 = vadd.f32 0.0, %v1262
      %v1264 = vpop.f32.mrb[0].mxu0
      %v1265 = vpop.f32.mrb[0].mxu0
      %v1266 = vadd.f32 0.0, %v1265
      %v1267 = vpop.f32.mrb[0].mxu0
      %1268 = vmatprep.mubr.bf16.mxu0 0
      %1269 = vmatmul.mubr.bf16.gmra.mrb[0].mxu0 %v1168
      %v1270 = vpop.f32.mrb[0].mxu0
      %v1271 = vadd.f32 0.0, %v1270
      %v1272 = vpop.f32.mrb[0].mxu0
      %v1273 = vpop.f32.mrb[0].mxu0
      %v1274 = vadd.f32 0.0, %v1273
      %v1275 = vpop.f32.mrb[0].mxu0
      %1276 = vmatprep.mubr.bf16.mxu0 0
      %1277 = vmatmul.mubr.bf16.gmra.mrb[0].mxu0 %v1171
      %v1278 = vpop.f32.mrb[0].mxu0
      %v1279 = vadd.f32 0.0, %v1278
      %v1280 = vpop.f32.mrb[0].mxu0
      %v1281 = vpop.f32.mrb[0].mxu0
      %v1282 = vadd.f32 0.0, %v1281
      %v1283 = vpop.f32.mrb[0].mxu0
      %1284 = vmatprep.mubr.bf16.mxu0 0
      %1285 = vmatmul.mubr.bf16.gmra.mrb[0].mxu0 %v1174
      %v1286 = vpop.f32.mrb[0].mxu0
      %v1287 = vadd.f32 0.0, %v1286
      %v1288 = vpop.f32.mrb[0].mxu0
      %v1289 = vpop.f32.mrb[0].mxu0
      %v1290 = vadd.f32 0.0, %v1289
      %v1291 = vpop.f32.mrb[0].mxu0
      %1292 = vmatprep.mubr.bf16.mxu0 0
      %1293 = vmatmul.mubr.bf16.gmra.mrb[0].mxu0 %v1177
      %v1294 = vpop.f32.mrb[0].mxu0
      %v1295 = vadd.f32 0.0, %v1294
      %v1296 = vpop.f32.mrb[0].mxu0
      %v1297 = vpop.f32.mrb[0].mxu0
      %v1298 = vadd.f32 0.0, %v1297
      %v1299 = vpop.f32.mrb[0].mxu0
      %1300 = vmatprep.mubr.bf16.mxu0 0
      %1301 = vmatmul.mubr.bf16.gmra.mrb[0].mxu0 %v1180
      %v1302 = vpop.f32.mrb[0].mxu0
      %v1303 = vadd.f32 0.0, %v1302
      %v1304 = vpop.f32.mrb[0].mxu0
      %v1305 = vpop.f32.mrb[0].mxu0
      %v1306 = vadd.f32 0.0, %v1305
      %v1307 = vpop.f32.mrb[0].mxu0
      %1308 = vmatprep.mubr.bf16.mxu0 0
      %1309 = vmatmul.mubr.bf16.gmra.mrb[0].mxu0 %v1183
      %v1310 = vpop.f32.mrb[0].mxu0
      %v1311 = vadd.f32 0.0, %v1310
      %v1312 = vpop.f32.mrb[0].mxu0
      %v1313 = vpop.f32.mrb[0].mxu0
      %v1314 = vadd.f32 0.0, %v1313
      %v1315 = vpop.f32.mrb[0].mxu0
      %1316 = vmatprep.mubr.bf16.mxu0 0
      %1317 = vmatmul.mubr.bf16.gmra.mrb[0].mxu0 %v1186
      %v1318 = vpop.f32.mrb[0].mxu0
      %v1319 = vadd.f32 0.0, %v1318
      %v1320 = vpop.f32.mrb[0].mxu0
      %v1321 = vpop.f32.mrb[0].mxu0
      %v1322 = vpop.f32.mrb[0].mxu0
      %1323 = vdwg.mxu0
      %v1324 = vmax.f32 %v1035, %v1223
      %v1325 = vmax.f32 %v1036, %v1226
      %v1326 = vmax.f32 %v1037, %v1231
      %v1327 = vmax.f32 %v1038, %v1234
      %v1328 = vmax.f32 %v1039, %v1239
      %v1329 = vmax.f32 %v1040, %v1242
      %v1330 = vmax.f32 %v1041, %v1247
      %v1331 = vmax.f32 %v1042, %v1250
      %v1332 = vmax.f32 %v1043, %v1255
      %v1333 = vmax.f32 %v1044, %v1258
      %v1334 = vmax.f32 %v1045, %v1263
      %v1335 = vmax.f32 %v1046, %v1266
      %v1336 = vmax.f32 %v1047, %v1271
      %v1337 = vmax.f32 %v1048, %v1274
      %v1338 = vmax.f32 %v1049, %v1279
      %v1339 = vmax.f32 %v1050, %v1282
      %v1340 = vmax.f32 %v1051, %v1287
      %v1341 = vmax.f32 %v1052, %v1290
      %v1342 = vmax.f32 %v1053, %v1295
      %v1343 = vmax.f32 %v1054, %v1298
      %v1344 = vmax.f32 %v1055, %v1303
      %v1345 = vmax.f32 %v1056, %v1306
      %v1346 = vmax.f32 %v1057, %v1311
      %v1347 = vmax.f32 %v1058, %v1314
      %v1348 = vmax.f32 %v1059, %v1319
      %v1349 = vld [vmem:[%s2] sm:$0x1]
      %v1351 = vlaneseq
      %v1352 = vshrl.u32 %v1351, 7
      %v1353 = vsub.s32 0, %v1352
      %v1354 = vrot.slane %v1349, %v1353
      %v1356 = vadd.f32 %v1324, %v1354
      %v1357 = vadd.f32 %v1325, %v1354
      %v1358 = vadd.f32 %v1326, %v1354
      %v1359 = vadd.f32 %v1327, %v1354
      %v1360 = vadd.f32 %v1328, %v1354
      %v1361 = vadd.f32 %v1329, %v1354
      %v1362 = vadd.f32 %v1330, %v1354
      %v1363 = vadd.f32 %v1331, %v1354
      %v1364 = vadd.f32 %v1332, %v1354
      %v1365 = vadd.f32 %v1333, %v1354
      %v1366 = vadd.f32 %v1334, %v1354
      %v1367 = vadd.f32 %v1335, %v1354
      %v1368 = vadd.f32 %v1336, %v1354
      %v1369 = vadd.f32 %v1337, %v1354
      %v1370 = vadd.f32 %v1338, %v1354
      %v1371 = vadd.f32 %v1339, %v1354
      %v1372 = vadd.f32 %v1340, %v1354
      %v1373 = vadd.f32 %v1341, %v1354
      %v1374 = vadd.f32 %v1342, %v1354
      %v1375 = vadd.f32 %v1343, %v1354
      %v1376 = vadd.f32 %v1344, %v1354
      %v1377 = vadd.f32 %v1345, %v1354
      %v1378 = vadd.f32 %v1346, %v1354
      %v1379 = vadd.f32 %v1347, %v1354
      %v1380 = vadd.f32 %v1348, %v1354
      %v1381 = vmax.f32 %v1356, 0.0
      %v1382 = vmax.f32 %v1357, 0.0
      %v1383 = vmax.f32 %v1358, 0.0
      %v1384 = vmax.f32 %v1359, 0.0
      %v1385 = vmax.f32 %v1360, 0.0
      %v1386 = vmax.f32 %v1361, 0.0
      %v1387 = vmax.f32 %v1362, 0.0
      %v1388 = vmax.f32 %v1363, 0.0
      %v1389 = vmax.f32 %v1364, 0.0
      %v1390 = vmax.f32 %v1365, 0.0
      %v1391 = vmax.f32 %v1366, 0.0
      %v1392 = vmax.f32 %v1367, 0.0
      %v1393 = vmax.f32 %v1368, 0.0
      %v1394 = vmax.f32 %v1369, 0.0
      %v1395 = vmax.f32 %v1370, 0.0
      %v1396 = vmax.f32 %v1371, 0.0
      %v1397 = vmax.f32 %v1372, 0.0
      %v1398 = vmax.f32 %v1373, 0.0
      %v1399 = vmax.f32 %v1374, 0.0
      %v1400 = vmax.f32 %v1375, 0.0
      %v1401 = vmax.f32 %v1376, 0.0
      %v1402 = vmax.f32 %v1377, 0.0
      %v1403 = vmax.f32 %v1378, 0.0
      %v1404 = vmax.f32 %v1379, 0.0
      %v1405 = vmax.f32 %v1380, 0.0
      %v1406 = vpack.c.bf16 %v1382, %v1381
      %v1407 = vpack.c.bf16 %v1384, %v1383
      %v1408 = vpack.c.bf16 %v1386, %v1385
      %v1409 = vpack.c.bf16 %v1388, %v1387
      %v1410 = vpack.c.bf16 %v1390, %v1389
      %v1411 = vpack.c.bf16 %v1392, %v1391
      %v1412 = vpack.c.bf16 %v1394, %v1393
      %v1413 = vpack.c.bf16 %v1396, %v1395
      %v1414 = vpack.c.bf16 %v1398, %v1397
      %v1415 = vpack.c.bf16 %v1400, %v1399
      %v1416 = vpack.c.bf16 %v1402, %v1401
      %v1417 = vpack.c.bf16 %v1404, %v1403
      %v1418 = vpack.c.bf16 %v1405, %v1405
      %v1432 = vunpack.c.l.b16 %v1406
      %v1433 = vunpack.c.h.b16 %v1406
      %v1434 = vunpack.c.l.b16 %v1407
      %v1435 = vunpack.c.h.b16 %v1407
      %v1436 = vunpack.c.l.b16 %v1408
      %v1437 = vunpack.c.h.b16 %v1408
      %v1438 = vunpack.c.l.b16 %v1409
      %v1439 = vunpack.c.h.b16 %v1409
      %v1440 = vunpack.c.l.b16 %v1410
      %v1441 = vunpack.c.h.b16 %v1410
      %v1442 = vunpack.c.l.b16 %v1411
      %v1443 = vunpack.c.h.b16 %v1411
      %v1444 = vunpack.c.l.b16 %v1412
      %v1445 = vunpack.c.h.b16 %v1412
      %v1446 = vunpack.c.l.b16 %v1413
      %v1447 = vunpack.c.h.b16 %v1413
      %v1448 = vunpack.c.l.b16 %v1414
      %v1449 = vunpack.c.h.b16 %v1414
      %v1450 = vunpack.c.l.b16 %v1415
      %v1451 = vunpack.c.h.b16 %v1415
      %v1452 = vunpack.c.l.b16 %v1416
      %v1453 = vunpack.c.h.b16 %v1416
      %v1454 = vunpack.c.l.b16 %v1417
      %v1455 = vunpack.c.h.b16 %v1417
      %v1456 = vunpack.c.l.b16 %v1418
      %v1457 = vpack.c.b16 %v1432, %v1432
      %v1458 = vpack.c.b16 %v1433, %v1433
      %v1459 = vpack.c.b16 %v1434, %v1434
      %v1460 = vpack.c.b16 %v1435, %v1435
      %v1461 = vpack.c.b16 %v1436, %v1436
      %v1462 = vpack.c.b16 %v1437, %v1437
      %v1463 = vpack.c.b16 %v1438, %v1438
      %v1464 = vpack.c.b16 %v1439, %v1439
      %v1465 = vpack.c.b16 %v1440, %v1440
      %v1466 = vpack.c.b16 %v1441, %v1441
      %v1467 = vpack.c.b16 %v1442, %v1442
      %v1468 = vpack.c.b16 %v1443, %v1443
      %v1469 = vpack.c.b16 %v1444, %v1444
      %v1470 = vpack.c.b16 %v1445, %v1445
      %v1471 = vpack.c.b16 %v1446, %v1446
      %v1472 = vpack.c.b16 %v1447, %v1447
      %v1473 = vpack.c.b16 %v1448, %v1448
      %v1474 = vpack.c.b16 %v1449, %v1449
      %v1475 = vpack.c.b16 %v1450, %v1450
      %v1476 = vpack.c.b16 %v1451, %v1451
      %v1477 = vpack.c.b16 %v1452, %v1452
      %v1478 = vpack.c.b16 %v1453, %v1453
      %v1479 = vpack.c.b16 %v1454, %v1454
      %v1480 = vpack.c.b16 %v1455, %v1455
      %v1481 = vpack.c.b16 %v1456, %v1456
      %1507 = vst [vmem:[%s170] sm:$0xf] %v1457
      %1508 = vst [vmem:[%s170 + $0x4] sm:$0xf] %v1458
      %1509 = vst [vmem:[%s170 + $0x8] sm:$0xf] %v1459
      %1510 = vst [vmem:[%s170 + $0xc] sm:$0xf] %v1460
      %1511 = vst [vmem:[%s170 + $0x10] sm:$0xf] %v1461
      %1512 = vst [vmem:[%s170 + $0x14] sm:$0xf] %v1462
      %1513 = vst [vmem:[%s170 + $0x18] sm:$0xf] %v1463
      %1514 = vst [vmem:[%s170 + $0x1c] sm:$0xf] %v1464
      %1515 = vst [vmem:[%s170 + $0x20] sm:$0xf] %v1465
      %1516 = vst [vmem:[%s170 + $0x24] sm:$0xf] %v1466
      %1517 = vst [vmem:[%s170 + $0x28] sm:$0xf] %v1467
      %1518 = vst [vmem:[%s170 + $0x2c] sm:$0xf] %v1468
      %1519 = vst [vmem:[%s170 + $0x30] sm:$0xf] %v1469
      %1520 = vst [vmem:[%s170 + $0x34] sm:$0xf] %v1470
      %1521 = vst [vmem:[%s170 + $0x38] sm:$0xf] %v1471
      %1522 = vst [vmem:[%s170 + $0x3c] sm:$0xf] %v1472
      %1523 = vst [vmem:[%s170 + $0x40] sm:$0xf] %v1473
      %1524 = vst [vmem:[%s170 + $0x44] sm:$0xf] %v1474
      %1525 = vst [vmem:[%s170 + $0x48] sm:$0xf] %v1475
      %1526 = vst [vmem:[%s170 + $0x4c] sm:$0xf] %v1476
      %1527 = vst [vmem:[%s170 + $0x50] sm:$0xf] %v1477
      %1528 = vst [vmem:[%s170 + $0x54] sm:$0xf] %v1478
      %1529 = vst [vmem:[%s170 + $0x58] sm:$0xf] %v1479
      %1530 = vst [vmem:[%s170 + $0x5c] sm:$0xf] %v1480
      %1531 = vst [vmem:[%s170 + $0x60] sm:$0x3] %v1481
      %p1532 = scmp.lt.s32.totalorder %s14, 1
      %s1533 = scalar_select %p1532, %s14, 1
      %s1534 = smul.addr %s1533, 25
      %s1535 = smul.addr %s1534, 4
      %s1536 = scalar_lea.vmem %s3, %s1535
      // Predicated region
      $region33: #{net_forward.2} parent=31 // pred_check
        %p1537 = pneg %p100
      $region34: #{net_forward.2} parent=31 // pred_check_branch
        %1539 = sbr.rel (%p1537) target = $region36
      $region35: #{net_forward.2} parent=31 // pred_region
        _
      $region36: #{net_forward.2} parent=31 // pred_fallthru
        _
    $region32: #{net_forward.2} parent=5 // pred_fallthru
      _
    %p1540 = scmp.le.s32.totalorder 2, %s9
    // Predicated region
    $region37: #{net_forward.2} parent=5 // pred_check
      %p1541 = pneg %p1540
    $region38: #{net_forward.2} parent=5 // pred_check_branch
      %1543 = sbr.rel (%p1541) target = $region40
    $region39: #{net_forward.2} parent=5 // pred_region
      %s1544 = ssub.s32 %s9, 2
      // Predicated region
      $region41: #{net_forward.2} parent=39 // pred_check
        %p1545 = pneg %p106
      $region42: #{net_forward.2} parent=39 // pred_check_branch
        %1547 = sbr.rel (%p1545) target = $region44
      $region43: #{net_forward.2} parent=39 // pred_region
        %p1548 = scmp.lt.s32.totalorder %s15, 1
        %s1549 = scalar_select %p1548, %s15, 1
        %s1550 = smul.addr %s1549, 25
        %s1551 = smul.addr %s1550, 4
        %s1552 = scalar_lea.vmem %s3, %s1551
      $region44: #{net_forward.2} parent=39 // pred_fallthru
        _
    $region40: #{net_forward.2} parent=5 // pred_fallthru
      _
  $region6: #{net_forward.2} parent=0 // loop_footer
    %s13 = sadd.s32 1, %s9
  $region7: #{net_forward.2} parent=0 // loop_footer_branch
    %8 = sbr.rel target = $region3
  $region8: #{net_forward.2} parent=0 // loop_exit
    _

// kernel: net_forward.3
$region0: #{net_forward.3}
  #allocation0 [shape = 'u32[]', space=smem, size = 0x4, offset = 0x4, fixed_abs, tag = 'smem constant byte address 0x4 - core index']
  #allocation1 [shape = 'u32[144,128]{1,0:T(1,128)}', space=vmem, size = 0x12000, scoped, tag = 'internal scratch']
  %s0 = inlined_call_operand.vmem [shape: bf16[2,4,25,150], index: 0, kind: input, shape index: {}]
  %s1 = inlined_call_operand.vmem [shape: bf16[150,128], index: 1, kind: input, shape index: {}]
  %s2 = inlined_call_operand.vmem [shape: f32[1,128], index: 2, kind: input, shape index: {}]
  %s3 = inlined_call_operand.vmem [shape: bf16[25,128,128], index: 3, kind: input, shape index: {}]
  %s4 = inlined_call_operand.vmem [shape: f32[1,128], index: 4, kind: input, shape index: {}]
  %s5 = inlined_call_operand.vmem [shape: bf16[128,128], index: 5, kind: input, shape index: {}]
  %s6 = inlined_call_operand.vmem [shape: f32[1,128], index: 6, kind: input, shape index: {}]
  %s7 = inlined_call_operand.vmem [shape: bf16[128,128], index: 7, kind: input, shape index: {}]
  %s8 = inlined_call_operand.vmem [shape: f32[1,128], index: 8, kind: input, shape index: {}]
  %s9 = inlined_call_operand.hbm [shape: f32[2,1,128], index: 9, kind: output, shape index: {}]
  %s10 = sld [smem:[#allocation0]]
  $region69: #{net_forward.3} parent=0
    _
  %s12 = ssub.s32 1, %s10
  %s13 = scalar_select 0, %s12, %s10
  $region1: #{net_forward.3} parent=0
    #allocation2 [shape = 'u8[1024]{0}', space=vmem, size = 0x400, scoped, tag = 'output window, operand 0']
    #allocation3 [shape = 's32[2]{0}', space=sflag, size = 0x8, scoped, tag = 'scoped memory for net_forward.3']
    %14 = vsyncpa [#allocation3], 0
    %s15 = scalar_lea.sflag [#allocation3], 1
    %16 = vsyncpa %s15, 0
    loop: start=0, step=1, limit=4
    $region2: #{net_forward.3} parent=1 // loop_pre_header
      _
    $region3: #{net_forward.3} parent=1 // loop_header
      %s18 = sphi 0, %s22
      %p19 = scmp.ge.s32.totalorder %s18, 4
      %s28 = sphi 0, %s30
      %s31 = sphi 0, %s28
      %s32 = sphi 0, %s31
      %s48 = sphi 0, %s32
      %s52 = sphi 0, %s52
      %s54 = sphi 0, %s52
      %s55 = sphi 0, %s54
      %s69 = sphi 0, %s55
      %s73 = sphi 0, %s73
      %s75 = sphi 0, %s73
      %s76 = sphi 0, %s75
      %s90 = sphi 0, %s76
      %s94 = sphi 0, %s94
      %s96 = sphi 0, %s94
      %s97 = sphi 0, %s96
      %s111 = sphi 0, %s97
      %s115 = sphi 0, %s115
      %s117 = sphi 0, %s115
      %s118 = sphi 0, %s117
      %s132 = sphi 0, %s118
      %s136 = sphi 0, %s136
      %s138 = sphi 0, %s136
      %s139 = sphi 0, %s138
      %s153 = sphi 0, %s139
      %s157 = sphi 0, %s157
      %s159 = sphi 0, %s157
      %s160 = sphi 0, %s159
      %s174 = sphi 0, %s160
      %s178 = sphi 0, %s178
      %s180 = sphi 0, %s178
      %s181 = sphi 0, %s180
      %s195 = sphi 0, %s181
      %s199 = sphi 0, %s199
      %s201 = sphi 0, %s199
      %s202 = sphi 0, %s201
      %s216 = sphi 0, %s202
      %s222 = sphi 0, %s224
      %s225 = sphi 0, %s222
      %s226 = sphi 0, %s225
      %s242 = sphi 0, %s226
    $region4: #{net_forward.3} parent=1 // loop_header_branch
      %21 = sbr.rel (%p19) target = $region8
    $region5: #{net_forward.3} parent=1 // loop_body
      %s23 = ssub.s32 %s18, 1
      %s24 = ssub.s32 %s18, 2
      %s25 = sadd.s32 %s18, 1
      %s26 = ssub.s32 %s18, %s25
      %p27 = scmp.eq.s32.totalorder %s26, 0
      %s29 = sadd.s32 %s28, 1
      %s30 = scalar_select %p27, %s28, %s29
      %p33 = pneg %p27
      %p34 = scmp.eq.s32.totalorder %s18, 1
      %p35 = por %p33, %p34
      %p36 = scmp.ne.s32.totalorder %s28, %s31
      %p37 = scmp.eq.s32.totalorder %s18, 0
      %p38 = por %p36, %p37
      %p39 = scmp.ne.s32.totalorder %s28, %s31
      %p40 = scmp.eq.s32.totalorder %s23, 1
      %p41 = por %p39, %p40
      %p42 = scmp.ne.s32.totalorder %s31, %s32
      %p43 = scmp.eq.s32.totalorder %s23, 0
      %p44 = por %p42, %p43
      %p45 = scmp.ne.s32.totalorder %s31, %s32
      %p46 = scmp.eq.s32.totalorder %s24, 1
      %p47 = por %p45, %p46
      %p49 = scmp.ne.s32.totalorder %s32, %s48
      %p50 = scmp.eq.s32.totalorder %s24, 0
      %p51 = por %p49, %p50
      %s53 = sadd.s32 %s52, 1
      %p56 = scmp.eq.s32.totalorder %s18, 1
      %p57 = scmp.ne.s32.totalorder %s52, %s54
      %p58 = scmp.eq.s32.totalorder %s18, 0
      %p59 = por %p57, %p58
      %p60 = scmp.ne.s32.totalorder %s52, %s54
      %p61 = scmp.eq.s32.totalorder %s23, 1
      %p62 = por %p60, %p61
      %p63 = scmp.ne.s32.totalorder %s54, %s55
      %p64 = scmp.eq.s32.totalorder %s23, 0
      %p65 = por %p63, %p64
      %p66 = scmp.ne.s32.totalorder %s54, %s55
      %p67 = scmp.eq.s32.totalorder %s24, 1
      %p68 = por %p66, %p67
      %p70 = scmp.ne.s32.totalorder %s55, %s69
      %p71 = scmp.eq.s32.totalorder %s24, 0
      %p72 = por %p70, %p71
      %s74 = sadd.s32 %s73, 1
      %p77 = scmp.eq.s32.totalorder %s18, 1
      %p78 = scmp.ne.s32.totalorder %s73, %s75
      %p79 = scmp.eq.s32.totalorder %s18, 0
      %p80 = por %p78, %p79
      %p81 = scmp.ne.s32.totalorder %s73, %s75
      %p82 = scmp.eq.s32.totalorder %s23, 1
      %p83 = por %p81, %p82
      %p84 = scmp.ne.s32.totalorder %s75, %s76
      %p85 = scmp.eq.s32.totalorder %s23, 0
      %p86 = por %p84, %p85
      %p87 = scmp.ne.s32.totalorder %s75, %s76
      %p88 = scmp.eq.s32.totalorder %s24, 1
      %p89 = por %p87, %p88
      %p91 = scmp.ne.s32.totalorder %s76, %s90
      %p92 = scmp.eq.s32.totalorder %s24, 0
      %p93 = por %p91, %p92
      %s95 = sadd.s32 %s94, 1
      %p98 = scmp.eq.s32.totalorder %s18, 1
      %p99 = scmp.ne.s32.totalorder %s94, %s96
      %p100 = scmp.eq.s32.totalorder %s18, 0
      %p101 = por %p99, %p100
      %p102 = scmp.ne.s32.totalorder %s94, %s96
      %p103 = scmp.eq.s32.totalorder %s23, 1
      %p104 = por %p102, %p103
      %p105 = scmp.ne.s32.totalorder %s96, %s97
      %p106 = scmp.eq.s32.totalorder %s23, 0
      %p107 = por %p105, %p106
      %p108 = scmp.ne.s32.totalorder %s96, %s97
      %p109 = scmp.eq.s32.totalorder %s24, 1
      %p110 = por %p108, %p109
      %p112 = scmp.ne.s32.totalorder %s97, %s111
      %p113 = scmp.eq.s32.totalorder %s24, 0
      %p114 = por %p112, %p113
      %s116 = sadd.s32 %s115, 1
      %p119 = scmp.eq.s32.totalorder %s18, 1
      %p120 = scmp.ne.s32.totalorder %s115, %s117
      %p121 = scmp.eq.s32.totalorder %s18, 0
      %p122 = por %p120, %p121
      %p123 = scmp.ne.s32.totalorder %s115, %s117
      %p124 = scmp.eq.s32.totalorder %s23, 1
      %p125 = por %p123, %p124
      %p126 = scmp.ne.s32.totalorder %s117, %s118
      %p127 = scmp.eq.s32.totalorder %s23, 0
      %p128 = por %p126, %p127
      %p129 = scmp.ne.s32.totalorder %s117, %s118
      %p130 = scmp.eq.s32.totalorder %s24, 1
      %p131 = por %p129, %p130
      %p133 = scmp.ne.s32.totalorder %s118, %s132
      %p134 = scmp.eq.s32.totalorder %s24, 0
      %p135 = por %p133, %p134
      %s137 = sadd.s32 %s136, 1
      %p140 = scmp.eq.s32.totalorder %s18, 1
      %p141 = scmp.ne.s32.totalorder %s136, %s138
      %p142 = scmp.eq.s32.totalorder %s18, 0
      %p143 = por %p141, %p142
      %p144 = scmp.ne.s32.totalorder %s136, %s138
      %p145 = scmp.eq.s32.totalorder %s23, 1
      %p146 = por %p144, %p145
      %p147 = scmp.ne.s32.totalorder %s138, %s139
      %p148 = scmp.eq.s32.totalorder %s23, 0
      %p149 = por %p147, %p148
      %p150 = scmp.ne.s32.totalorder %s138, %s139
      %p151 = scmp.eq.s32.totalorder %s24, 1
      %p152 = por %p150, %p151
      %p154 = scmp.ne.s32.totalorder %s139, %s153
      %p155 = scmp.eq.s32.totalorder %s24, 0
      %p156 = por %p154, %p155
      %s158 = sadd.s32 %s157, 1
      %p161 = scmp.eq.s32.totalorder %s18, 1
      %p162 = scmp.ne.s32.totalorder %s157, %s159
      %p163 = scmp.eq.s32.totalorder %s18, 0
      %p164 = por %p162, %p163
      %p165 = scmp.ne.s32.totalorder %s157, %s159
      %p166 = scmp.eq.s32.totalorder %s23, 1
      %p167 = por %p165, %p166
      %p168 = scmp.ne.s32.totalorder %s159, %s160
      %p169 = scmp.eq.s32.totalorder %s23, 0
      %p170 = por %p168, %p169
      %p171 = scmp.ne.s32.totalorder %s159, %s160
      %p172 = scmp.eq.s32.totalorder %s24, 1
      %p173 = por %p171, %p172
      %p175 = scmp.ne.s32.totalorder %s160, %s174
      %p176 = scmp.eq.s32.totalorder %s24, 0
      %p177 = por %p175, %p176
      %s179 = sadd.s32 %s178, 1
      %p182 = scmp.eq.s32.totalorder %s18, 1
      %p183 = scmp.ne.s32.totalorder %s178, %s180
      %p184 = scmp.eq.s32.totalorder %s18, 0
      %p185 = por %p183, %p184
      %p186 = scmp.ne.s32.totalorder %s178, %s180
      %p187 = scmp.eq.s32.totalorder %s23, 1
      %p188 = por %p186, %p187
      %p189 = scmp.ne.s32.totalorder %s180, %s181
      %p190 = scmp.eq.s32.totalorder %s23, 0
      %p191 = por %p189, %p190
      %p192 = scmp.ne.s32.totalorder %s180, %s181
      %p193 = scmp.eq.s32.totalorder %s24, 1
      %p194 = por %p192, %p193
      %p196 = scmp.ne.s32.totalorder %s181, %s195
      %p197 = scmp.eq.s32.totalorder %s24, 0
      %p198 = por %p196, %p197
      %s200 = sadd.s32 %s199, 1
      %p203 = scmp.eq.s32.totalorder %s18, 1
      %p204 = scmp.ne.s32.totalorder %s199, %s201
      %p205 = scmp.eq.s32.totalorder %s18, 0
      %p206 = por %p204, %p205
      %p207 = scmp.ne.s32.totalorder %s199, %s201
      %p208 = scmp.eq.s32.totalorder %s23, 1
      %p209 = por %p207, %p208
      %p210 = scmp.ne.s32.totalorder %s201, %s202
      %p211 = scmp.eq.s32.totalorder %s23, 0
      %p212 = por %p210, %p211
      %p213 = scmp.ne.s32.totalorder %s201, %s202
      %p214 = scmp.eq.s32.totalorder %s24, 1
      %p215 = por %p213, %p214
      %p217 = scmp.ne.s32.totalorder %s202, %s216
      %p218 = scmp.eq.s32.totalorder %s24, 0
      %p219 = por %p217, %p218
      %s220 = ssub.s32 %s18, %s25
      %p221 = scmp.eq.s32.totalorder %s220, 0
      %s223 = sadd.s32 %s222, 1
      %s224 = scalar_select %p221, %s222, %s223
      %p227 = pneg %p221
      %p228 = scmp.eq.s32.totalorder %s18, 1
      %p229 = por %p227, %p228
      %p230 = scmp.ne.s32.totalorder %s222, %s225
      %p231 = scmp.eq.s32.totalorder %s18, 0
      %p232 = por %p230, %p231
      %p233 = scmp.ne.s32.totalorder %s222, %s225
      %p234 = scmp.eq.s32.totalorder %s23, 1
      %p235 = por %p233, %p234
      %p236 = scmp.ne.s32.totalorder %s225, %s226
      %p237 = scmp.eq.s32.totalorder %s23, 0
      %p238 = por %p236, %p237
      %p239 = scmp.ne.s32.totalorder %s225, %s226
      %p240 = scmp.eq.s32.totalorder %s24, 1
      %p241 = por %p239, %p240
      %p243 = scmp.ne.s32.totalorder %s226, %s242
      %p244 = scmp.eq.s32.totalorder %s24, 0
      %p245 = por %p243, %p244
      %p246 = scmp.le.s32.totalorder 1, %s18
      %p247 = scmp.lt.s32.totalorder %s18, 3
      %p248 = pnand %p246, %p247
      %p249 = pneg %p248
      // Predicated region
      $region9: #{net_forward.3} parent=5 // pred_check
        _
      $region10: #{net_forward.3} parent=5 // pred_check_branch
        %251 = sbr.rel (%p248) target = $region12
      $region11: #{net_forward.3} parent=5 // pred_region
        %s252 = ssub.s32 %s18, 1
        // Predicated region
        $region13: #{net_forward.3} parent=11 // pred_check
          %p253 = pneg %p65
        $region14: #{net_forward.3} parent=11 // pred_check_branch
          %255 = sbr.rel (%p253) target = $region16
        $region15: #{net_forward.3} parent=11 // pred_region
          _
        $region16: #{net_forward.3} parent=11 // pred_fallthru
          _
        // Predicated region
        $region17: #{net_forward.3} parent=11 // pred_check
          %p256 = pneg %p86
        $region18: #{net_forward.3} parent=11 // pred_check_branch
          %258 = sbr.rel (%p256) target = $region20
        $region19: #{net_forward.3} parent=11 // pred_region
          _
        $region20: #{net_forward.3} parent=11 // pred_fallthru
          _
        // Predicated region
        $region21: #{net_forward.3} parent=11 // pred_check
          %p259 = pneg %p107
        $region22: #{net_forward.3} parent=11 // pred_check_branch
          %261 = sbr.rel (%p259) target = $region24
        $region23: #{net_forward.3} parent=11 // pred_region
          _
        $region24: #{net_forward.3} parent=11 // pred_fallthru
          _
        // Predicated region
        $region25: #{net_forward.3} parent=11 // pred_check
          %p262 = pneg %p128
        $region26: #{net_forward.3} parent=11 // pred_check_branch
          %264 = sbr.rel (%p262) target = $region28
        $region27: #{net_forward.3} parent=11 // pred_region
          _
        $region28: #{net_forward.3} parent=11 // pred_fallthru
          _
        // Predicated region
        $region29: #{net_forward.3} parent=11 // pred_check
          %p265 = pneg %p149
        $region30: #{net_forward.3} parent=11 // pred_check_branch
          %267 = sbr.rel (%p265) target = $region32
        $region31: #{net_forward.3} parent=11 // pred_region
          _
        $region32: #{net_forward.3} parent=11 // pred_fallthru
          _
        // Predicated region
        $region33: #{net_forward.3} parent=11 // pred_check
          %p268 = pneg %p170
        $region34: #{net_forward.3} parent=11 // pred_check_branch
          %270 = sbr.rel (%p268) target = $region36
        $region35: #{net_forward.3} parent=11 // pred_region
          _
        $region36: #{net_forward.3} parent=11 // pred_fallthru
          _
        // Predicated region
        $region37: #{net_forward.3} parent=11 // pred_check
          %p271 = pneg %p191
        $region38: #{net_forward.3} parent=11 // pred_check_branch
          %273 = sbr.rel (%p271) target = $region40
        $region39: #{net_forward.3} parent=11 // pred_region
          _
        $region40: #{net_forward.3} parent=11 // pred_fallthru
          _
        // Predicated region
        $region41: #{net_forward.3} parent=11 // pred_check
          %p274 = pneg %p212
        $region42: #{net_forward.3} parent=11 // pred_check_branch
          %276 = sbr.rel (%p274) target = $region44
        $region43: #{net_forward.3} parent=11 // pred_region
          _
        $region44: #{net_forward.3} parent=11 // pred_fallthru
          _
      $region12: #{net_forward.3} parent=5 // pred_fallthru
        _
      %p277 = scmp.lt.s32.totalorder %s18, 2
      // Predicated region
      $region45: #{net_forward.3} parent=5 // pred_check
        %p278 = pneg %p277
      $region46: #{net_forward.3} parent=5 // pred_check_branch
        %280 = sbr.rel (%p278) target = $region48
      $region47: #{net_forward.3} parent=5 // pred_region
        // Predicated region
        $region49: #{net_forward.3} parent=47 // pred_check
          %p281 = pneg %p38
        $region50: #{net_forward.3} parent=47 // pred_check_branch
          %283 = sbr.rel (%p281) target = $region52
        $region51: #{net_forward.3} parent=47 // pred_region
          %p284 = scmp.lt.s32.totalorder %s18, 1
          %s285 = scalar_select %p284, %s18, 1
          %s286 = smul.addr %s285, 32
          %s287 = smul.addr %s286, 4
          %s288 = scalar_lea.vmem %s0, %s287
        $region52: #{net_forward.3} parent=47 // pred_fallthru
          _
      $region48: #{net_forward.3} parent=5 // pred_fallthru
        _
      %p289 = scmp.le.s32.totalorder 1, %s18
      %p290 = scmp.lt.s32.totalorder %s18, 3
      %p291 = pnand %p289, %p290
      %p292 = pneg %p291
      // Predicated region
      $region53: #{net_forward.3} parent=5 // pred_check
        _
      $region54: #{net_forward.3} parent=5 // pred_check_branch
        %294 = sbr.rel (%p291) target = $region56
      $region55: #{net_forward.3} parent=5 // pred_region
        %s295 = ssub.s32 %s18, 1
        %p296 = scmp.lt.s32.totalorder %s23, 1
        %s297 = scalar_select %p296, %s23, 1
        %s298 = smul.addr %s297, 32
        %s299 = smul.addr %s298, 4
        %s300 = scalar_lea.vmem %s0, %s299
        %p301 = pneg %p44
        %p302 = pneg %p41
        %p303 = pneg %p65
        %p304 = pneg %p62
        %p305 = pneg %p86
        %p306 = pneg %p83
        %p307 = pneg %p107
        %p308 = pneg %p104
        %p309 = pneg %p128
        %p310 = pneg %p125
        %p311 = pneg %p149
        %p312 = pneg %p146
        %p313 = pneg %p170
        %p314 = pneg %p167
        %p315 = pneg %p191
        %p316 = pneg %p188
        %p317 = pneg %p212
        %p318 = pneg %p209
        %p319 = pneg %p238
        %p320 = pneg %p235
        %s321 = sand.u32 %s225, 1
        %s322 = scalar_lea.sflag [#allocation3], %s321
        %s323 = sand.u32 %s225, 1
        %s324 = scalar_lea.vmem [#allocation2], %s323
        %p325 = scmp.lt.s32.totalorder %s23, 1
        %s326 = scalar_select %p325, %s23, 1
        %s327 = smul.addr %s326, 32
        %s328 = smul.addr %s327, 4
        %s329 = scalar_lea.vmem %s0, %s328
        %v331 = vld [vmem:[%s1] sm:$0xf]
        %v332 = vld [vmem:[%s1 + $0x4] sm:$0xf]
        %v333 = vld [vmem:[%s1 + $0x8] sm:$0xf]
        %v334 = vld [vmem:[%s1 + $0xc] sm:$0xf]
        %v335 = vld [vmem:[%s1 + $0x10] sm:$0xf]
        %v336 = vld [vmem:[%s1 + $0x14] sm:$0xf]
        %v337 = vld [vmem:[%s1 + $0x18] sm:$0xf]
        %v338 = vld [vmem:[%s1 + $0x1c] sm:$0xf]
        %v339 = vld [vmem:[%s1 + $0x20] sm:$0xf]
        %v340 = vld [vmem:[%s1 + $0x24] sm:$0xf]
        %v341 = vld [vmem:[%s1 + $0x28] sm:$0xf]
        %v342 = vld [vmem:[%s1 + $0x2c] sm:$0xf]
        %v343 = vld [vmem:[%s1 + $0x30] sm:$0xf]
        %v344 = vld [vmem:[%s1 + $0x34] sm:$0xf]
        %v345 = vld [vmem:[%s1 + $0x38] sm:$0xf]
        %v346 = vld [vmem:[%s1 + $0x3c] sm:$0xf]
        %v347 = vld [vmem:[%s1 + $0x40] sm:$0xf]
        %v348 = vld [vmem:[%s1 + $0x44] sm:$0xf]
        %v349 = vld [vmem:[%s1 + $0x48] sm:$0x7]
        %v350 = vld [vmem:[%s329] sm:$0xff]
        %v351 = vld [vmem:[%s329 + $0x8] sm:$0xff]
        %v352 = vld [vmem:[%s329 + $0x10] sm:$0xff]
        %v353 = vld [vmem:[%s329 + $0x18] sm:$0x11]
        %v358 = vunpack.c.l.b16 %v350
        %v359 = vunpack.c.h.b16 %v350
        %v360 = vunpack.c.l.b16 %v351
        %v361 = vunpack.c.h.b16 %v351
        %v362 = vunpack.c.l.b16 %v352
        %v363 = vunpack.c.h.b16 %v352
        %v364 = vunpack.c.l.b16 %v353
        %v365 = vunpack.c.h.b16 %v353
        %v366 = vpack.c.b16 %v360, %v358
        %v367 = vpack.c.b16 %v361, %v359
        %v368 = vpack.c.b16 %v364, %v362
        %v369 = vpack.c.b16 %v365, %v363
        %v391 = vunpack.c.l.b16 %v331
        %v392 = vunpack.c.l.b16 %v332
        %v393 = vunpack.c.l.b16 %v333
        %v394 = vunpack.c.l.b16 %v334
        %v395 = vunpack.c.l.b16 %v335
        %v396 = vunpack.c.l.b16 %v336
        %v397 = vunpack.c.l.b16 %v337
        %v398 = vunpack.c.l.b16 %v338
        %v399 = vunpack.c.l.b16 %v339
        %v400 = vunpack.c.l.b16 %v340
        %v401 = vunpack.c.l.b16 %v341
        %v402 = vunpack.c.l.b16 %v342
        %v403 = vunpack.c.l.b16 %v343
        %v404 = vunpack.c.l.b16 %v344
        %v405 = vunpack.c.l.b16 %v345
        %v406 = vunpack.c.l.b16 %v346
        %v407 = vunpack.c.l.b16 %v347
        %v408 = vunpack.c.l.b16 %v348
        %v409 = vunpack.c.l.b16 %v349
        %v410 = vpack.c.b16 %v392, %v391
        %v411 = vpack.c.b16 %v394, %v393
        %v412 = vpack.c.b16 %v396, %v395
        %v413 = vpack.c.b16 %v398, %v397
        %v414 = vpack.c.b16 %v400, %v399
        %v415 = vpack.c.b16 %v402, %v401
        %v416 = vpack.c.b16 %v404, %v403
        %v417 = vpack.c.b16 %v406, %v405
        %v418 = vpack.c.b16 %v408, %v407
        %v419 = vpack.c.b16 %v409, %v409
        %vm429 = vcmask 179200
        %v431 = vsel %vm429, %v367, 0
        %v434 = vsel %vm429, %v369, 0
        %vm436 = vcmask 1042432
        %v438 = vsel %vm436, %v419, 0
        %440 = vmatprep.subr.bf16.mxu0 0
        %441 = vmatpush1.bf16.msra.mxu0 %v410
        %442 = vmatprep.subr.bf16.mxu0 0
        %443 = vmatpush1.bf16.msra.mxu0 %v411
        %444 = vmatprep.subr.bf16.mxu0 0
        %445 = vmatpush1.bf16.msra.mxu0 %v412
        %446 = vmatprep.subr.bf16.mxu0 0
        %447 = vmatpush1.bf16.msra.mxu0 %v413
        %448 = vmatprep.subr.bf16.mxu0 0
        %449 = vmatpush1.bf16.msra.mxu0 %v414
        %450 = vmatprep.subr.bf16.mxu0 0
        %451 = vmatpush1.bf16.msra.mxu0 %v415
        %452 = vmatprep.subr.bf16.mxu0 0
        %453 = vmatpush1.bf16.msra.mxu0 %v416
        %454 = vmatprep.subr.bf16.mxu0 0
        %455 = vmatpush1.bf16.msra.mxu0 %v417
        %456 = vmatprep.subr.bf16.mxu0 0
        %457 = vmatpush1.bf16.msra.mxu0 %v418
        %458 = vmatprep.subr.bf16.mxu0 0
        %459 = vmatpush1.bf16.msra.mxu0 %v438
        %460 = vmatprep.subr.bf16.mxu0 0
        %461 = vmatpush1.bf16.msra.mxu0 0
        %462 = vmatprep.subr.bf16.mxu0 0
        %463 = vmatpush1.bf16.msra.mxu0 0
        %464 = vmatprep.subr.bf16.mxu0 0
        %465 = vmatpush1.bf16.msra.mxu0 0
        %466 = vmatprep.subr.bf16.mxu0 0
        %467 = vmatpush1.bf16.msra.mxu0 0
        %468 = vmatprep.subr.bf16.mxu0 0
        %469 = vmatpush1.bf16.msra.mxu0 0
        %470 = vmatprep.subr.bf16.mxu0 0
        %471 = vmatpush1.bf16.msra.mxu0 0
        %472 = vmatprep.mubr.bf16.mxu0 %v431
        %473 = vmatmul.mubr.bf16.gmra.mrb[0].mxu0 %v366
        %v474 = vpop.f32.mrb[0].mxu0
        %v475 = vadd.f32 0.0, %v474
        %v476 = vpop.f32.mrb[0].mxu0
        %v477 = vpop.f32.mrb[0].mxu0
        %v478 = vadd.f32 0.0, %v477
        %v479 = vpop.f32.mrb[0].mxu0
        %480 = vmatprep.mubr.bf16.mxu0 %v434
        %481 = vmatmul.mubr.bf16.gmra.mrb[0].mxu0 %v368
        %v482 = vpop.f32.mrb[0].mxu0
        %v483 = vadd.f32 0.0, %v482
        %v484 = vpop.f32.mrb[0].mxu0
        %v485 = vpop.f32.mrb[0].mxu0
        %v486 = vadd.f32 0.0, %v485
        %v487 = vpop.f32.mrb[0].mxu0
        %488 = vdwg.mxu0
        %s489 = scalar_lea.vmem %s329, 32
        %v490 = vld [vmem:[%s489] sm:$0xff]
        %v491 = vld [vmem:[%s489 + $0x8] sm:$0xff]
        %v492 = vld [vmem:[%s489 + $0x10] sm:$0xff]
        %v493 = vld [vmem:[%s489 + $0x18] sm:$0x11]
        %v498 = vunpack.c.l.b16 %v490
        %v499 = vunpack.c.h.b16 %v490
        %v500 = vunpack.c.l.b16 %v491
        %v501 = vunpack.c.h.b16 %v491
        %v502 = vunpack.c.l.b16 %v492
        %v503 = vunpack.c.h.b16 %v492
        %v504 = vunpack.c.l.b16 %v493
        %v505 = vunpack.c.h.b16 %v493
        %v506 = vpack.c.b16 %v500, %v498
        %v507 = vpack.c.b16 %v501, %v499
        %v508 = vpack.c.b16 %v504, %v502
        %v509 = vpack.c.b16 %v505, %v503
        %v513 = vsel %vm429, %v507, 0
        %v516 = vsel %vm429, %v509, 0
        %518 = vmatprep.subr.bf16.mxu0 0
        %519 = vmatpush1.bf16.msra.mxu0 %v410
        %520 = vmatprep.subr.bf16.mxu0 0
        %521 = vmatpush1.bf16.msra.mxu0 %v411
        %522 = vmatprep.subr.bf16.mxu0 0
        %523 = vmatpush1.bf16.msra.mxu0 %v412
        %524 = vmatprep.subr.bf16.mxu0 0
        %525 = vmatpush1.bf16.msra.mxu0 %v413
        %526 = vmatprep.subr.bf16.mxu0 0
        %527 = vmatpush1.bf16.msra.mxu0 %v414
        %528 = vmatprep.subr.bf16.mxu0 0
        %529 = vmatpush1.bf16.msra.mxu0 %v415
        %530 = vmatprep.subr.bf16.mxu0 0
        %531 = vmatpush1.bf16.msra.mxu0 %v416
        %532 = vmatprep.subr.bf16.mxu0 0
        %533 = vmatpush1.bf16.msra.mxu0 %v417
        %534 = vmatprep.subr.bf16.mxu0 0
        %535 = vmatpush1.bf16.msra.mxu0 %v418
        %536 = vmatprep.subr.bf16.mxu0 0
        %537 = vmatpush1.bf16.msra.mxu0 %v438
        %538 = vmatprep.subr.bf16.mxu0 0
        %539 = vmatpush1.bf16.msra.mxu0 0
        %540 = vmatprep.subr.bf16.mxu0 0
        %541 = vmatpush1.bf16.msra.mxu0 0
        %542 = vmatprep.subr.bf16.mxu0 0
        %543 = vmatpush1.bf16.msra.mxu0 0
        %544 = vmatprep.subr.bf16.mxu0 0
        %545 = vmatpush1.bf16.msra.mxu0 0
        %546 = vmatprep.subr.bf16.mxu0 0
        %547 = vmatpush1.bf16.msra.mxu0 0
        %548 = vmatprep.subr.bf16.mxu0 0
        %549 = vmatpush1.bf16.msra.mxu0 0
        %550 = vmatprep.mubr.bf16.mxu0 %v513
        %551 = vmatmul.mubr.bf16.gmra.mrb[0].mxu0 %v506
        %v552 = vpop.f32.mrb[0].mxu0
        %v553 = vadd.f32 0.0, %v552
        %v554 = vpop.f32.mrb[0].mxu0
        %v555 = vpop.f32.mrb[0].mxu0
        %v556 = vadd.f32 0.0, %v555
        %v557 = vpop.f32.mrb[0].mxu0
        %558 = vmatprep.mubr.bf16.mxu0 %v516
        %559 = vmatmul.mubr.bf16.gmra.mrb[0].mxu0 %v508
        %v560 = vpop.f32.mrb[0].mxu0
        %v561 = vadd.f32 0.0, %v560
        %v562 = vpop.f32.mrb[0].mxu0
        %v563 = vpop.f32.mrb[0].mxu0
        %v564 = vadd.f32 0.0, %v563
        %v565 = vpop.f32.mrb[0].mxu0
        %566 = vdwg.mxu0
        %v567 = vmax.f32 %v475, %v553
        %v568 = vmax.f32 %v478, %v556
        %v569 = vmax.f32 %v483, %v561
        %v570 = vmax.f32 %v486, %v564
        %s571 = scalar_lea.vmem %s329, 64
        %v572 = vld [vmem:[%s571] sm:$0xff]
        %v573 = vld [vmem:[%s571 + $0x8] sm:$0xff]
        %v574 = vld [vmem:[%s571 + $0x10] sm:$0xff]
        %v575 = vld [vmem:[%s571 + $0x18] sm:$0x11]
        %v580 = vunpack.c.l.b16 %v572
        %v581 = vunpack.c.h.b16 %v572
        %v582 = vunpack.c.l.b16 %v573
        %v583 = vunpack.c.h.b16 %v573
        %v584 = vunpack.c.l.b16 %v574
        %v585 = vunpack.c.h.b16 %v574
        %v586 = vunpack.c.l.b16 %v575
        %v587 = vunpack.c.h.b16 %v575
        %v588 = vpack.c.b16 %v582, %v580
        %v589 = vpack.c.b16 %v583, %v581
        %v590 = vpack.c.b16 %v586, %v584
        %v591 = vpack.c.b16 %v587, %v585
        %v595 = vsel %vm429, %v589, 0
        %v598 = vsel %vm429, %v591, 0
        %600 = vmatprep.subr.bf16.mxu0 0
        %601 = vmatpush1.bf16.msra.mxu0 %v410
        %602 = vmatprep.subr.bf16.mxu0 0
        %603 = vmatpush1.bf16.msra.mxu0 %v411
        %604 = vmatprep.subr.bf16.mxu0 0
        %605 = vmatpush1.bf16.msra.mxu0 %v412
        %606 = vmatprep.subr.bf16.mxu0 0
        %607 = vmatpush1.bf16.msra.mxu0 %v413
        %608 = vmatprep.subr.bf16.mxu0 0
        %609 = vmatpush1.bf16.msra.mxu0 %v414
        %610 = vmatprep.subr.bf16.mxu0 0
        %611 = vmatpush1.bf16.msra.mxu0 %v415
        %612 = vmatprep.subr.bf16.mxu0 0
        %613 = vmatpush1.bf16.msra.mxu0 %v416
        %614 = vmatprep.subr.bf16.mxu0 0
        %615 = vmatpush1.bf16.msra.mxu0 %v417
        %616 = vmatprep.subr.bf16.mxu0 0
        %617 = vmatpush1.bf16.msra.mxu0 %v418
        %618 = vmatprep.subr.bf16.mxu0 0
        %619 = vmatpush1.bf16.msra.mxu0 %v438
        %620 = vmatprep.subr.bf16.mxu0 0
        %621 = vmatpush1.bf16.msra.mxu0 0
        %622 = vmatprep.subr.bf16.mxu0 0
        %623 = vmatpush1.bf16.msra.mxu0 0
        %624 = vmatprep.subr.bf16.mxu0 0
        %625 = vmatpush1.bf16.msra.mxu0 0
        %626 = vmatprep.subr.bf16.mxu0 0
        %627 = vmatpush1.bf16.msra.mxu0 0
        %628 = vmatprep.subr.bf16.mxu0 0
        %629 = vmatpush1.bf16.msra.mxu0 0
        %630 = vmatprep.subr.bf16.mxu0 0
        %631 = vmatpush1.bf16.msra.mxu0 0
        %632 = vmatprep.mubr.bf16.mxu0 %v595
        %633 = vmatmul.mubr.bf16.gmra.mrb[0].mxu0 %v588
        %v634 = vpop.f32.mrb[0].mxu0
        %v635 = vadd.f32 0.0, %v634
        %v636 = vpop.f32.mrb[0].mxu0
        %v637 = vpop.f32.mrb[0].mxu0
        %v638 = vadd.f32 0.0, %v637
        %v639 = vpop.f32.mrb[0].mxu0
        %640 = vmatprep.mubr.bf16.mxu0 %v598
        %641 = vmatmul.mubr.bf16.gmra.mrb[0].mxu0 %v590
        %v642 = vpop.f32.mrb[0].mxu0
        %v643 = vadd.f32 0.0, %v642
        %v644 = vpop.f32.mrb[0].mxu0
        %v645 = vpop.f32.mrb[0].mxu0
        %v646 = vadd.f32 0.0, %v645
        %v647 = vpop.f32.mrb[0].mxu0
        %648 = vdwg.mxu0
        %v649 = vmax.f32 %v567, %v635
        %v650 = vmax.f32 %v568, %v638
        %v651 = vmax.f32 %v569, %v643
        %v652 = vmax.f32 %v570, %v646
        %s653 = scalar_lea.vmem %s329, 96
        %v654 = vld [vmem:[%s653] sm:$0xff]
        %v655 = vld [vmem:[%s653 + $0x8] sm:$0xff]
        %v656 = vld [vmem:[%s653 + $0x10] sm:$0xff]
        %v657 = vld [vmem:[%s653 + $0x18] sm:$0x11]
        %v662 = vunpack.c.l.b16 %v654
        %v663 = vunpack.c.h.b16 %v654
        %v664 = vunpack.c.l.b16 %v655
        %v665 = vunpack.c.h.b16 %v655
        %v666 = vunpack.c.l.b16 %v656
        %v667 = vunpack.c.h.b16 %v656
        %v668 = vunpack.c.l.b16 %v657
        %v669 = vunpack.c.h.b16 %v657
        %v670 = vpack.c.b16 %v664, %v662
        %v671 = vpack.c.b16 %v665, %v663
        %v672 = vpack.c.b16 %v668, %v666
        %v673 = vpack.c.b16 %v669, %v667
        %v677 = vsel %vm429, %v671, 0
        %v680 = vsel %vm429, %v673, 0
        %682 = vmatprep.subr.bf16.mxu0 0
        %683 = vmatpush1.bf16.msra.mxu0 %v410
        %684 = vmatprep.subr.bf16.mxu0 0
        %685 = vmatpush1.bf16.msra.mxu0 %v411
        %686 = vmatprep.subr.bf16.mxu0 0
        %687 = vmatpush1.bf16.msra.mxu0 %v412
        %688 = vmatprep.subr.bf16.mxu0 0
        %689 = vmatpush1.bf16.msra.mxu0 %v413
        %690 = vmatprep.subr.bf16.mxu0 0
        %691 = vmatpush1.bf16.msra.mxu0 %v414
        %692 = vmatprep.subr.bf16.mxu0 0
        %693 = vmatpush1.bf16.msra.mxu0 %v415
        %694 = vmatprep.subr.bf16.mxu0 0
        %695 = vmatpush1.bf16.msra.mxu0 %v416
        %696 = vmatprep.subr.bf16.mxu0 0
        %697 = vmatpush1.bf16.msra.mxu0 %v417
        %698 = vmatprep.subr.bf16.mxu0 0
        %699 = vmatpush1.bf16.msra.mxu0 %v418
        %700 = vmatprep.subr.bf16.mxu0 0
        %701 = vmatpush1.bf16.msra.mxu0 %v438
        %702 = vmatprep.subr.bf16.mxu0 0
        %703 = vmatpush1.bf16.msra.mxu0 0
        %704 = vmatprep.subr.bf16.mxu0 0
        %705 = vmatpush1.bf16.msra.mxu0 0
        %706 = vmatprep.subr.bf16.mxu0 0
        %707 = vmatpush1.bf16.msra.mxu0 0
        %708 = vmatprep.subr.bf16.mxu0 0
        %709 = vmatpush1.bf16.msra.mxu0 0
        %710 = vmatprep.subr.bf16.mxu0 0
        %711 = vmatpush1.bf16.msra.mxu0 0
        %712 = vmatprep.subr.bf16.mxu0 0
        %713 = vmatpush1.bf16.msra.mxu0 0
        %714 = vmatprep.mubr.bf16.mxu0 %v677
        %715 = vmatmul.mubr.bf16.gmra.mrb[0].mxu0 %v670
        %v716 = vpop.f32.mrb[0].mxu0
        %v717 = vadd.f32 0.0, %v716
        %v718 = vpop.f32.mrb[0].mxu0
        %v719 = vpop.f32.mrb[0].mxu0
        %v720 = vadd.f32 0.0, %v719
        %v721 = vpop.f32.mrb[0].mxu0
        %722 = vmatprep.mubr.bf16.mxu0 %v680
        %723 = vmatmul.mubr.bf16.gmra.mrb[0].mxu0 %v672
        %v724 = vpop.f32.mrb[0].mxu0
        %v725 = vadd.f32 0.0, %v724
        %v726 = vpop.f32.mrb[0].mxu0
        %v727 = vpop.f32.mrb[0].mxu0
        %v728 = vadd.f32 0.0, %v727
        %v729 = vpop.f32.mrb[0].mxu0
        %730 = vdwg.mxu0
        %v731 = vmax.f32 %v649, %v717
        %v732 = vmax.f32 %v650, %v720
        %v733 = vmax.f32 %v651, %v725
        %v734 = vmax.f32 %v652, %v728
        %v735 = vld [vmem:[%s2] sm:$0x1]
        %v737 = vlaneseq
        %v738 = vshrl.u32 %v737, 7
        %v739 = vsub.s32 0, %v738
        %v740 = vrot.slane %v735, %v739
        %v742 = vadd.f32 %v731, %v740
        %v743 = vadd.f32 %v732, %v740
        %v744 = vadd.f32 %v733, %v740
        %v745 = vadd.f32 %v734, %v740
        %v746 = vmax.f32 %v742, 0.0
        %v747 = vmax.f32 %v743, 0.0
        %v748 = vmax.f32 %v744, 0.0
        %v749 = vmax.f32 %v745, 0.0
        %v750 = vpack.c.bf16 %v747, %v746
        %v751 = vpack.c.bf16 %v749, %v748
        %v752 = vld [vmem:[%s3] sm:$0xf]
        %v753 = vld [vmem:[%s3 + $0x4] sm:$0xf]
        %v754 = vld [vmem:[%s3 + $0x8] sm:$0xf]
        %v755 = vld [vmem:[%s3 + $0xc] sm:$0xf]
        %v756 = vld [vmem:[%s3 + $0x10] sm:$0xf]
        %v757 = vld [vmem:[%s3 + $0x14] sm:$0xf]
        %v758 = vld [vmem:[%s3 + $0x18] sm:$0xf]
        %v759 = vld [vmem:[%s3 + $0x1c] sm:$0xf]
        %v760 = vld [vmem:[%s3 + $0x20] sm:$0xf]
        %v761 = vld [vmem:[%s3 + $0x24] sm:$0xf]
        %v762 = vld [vmem:[%s3 + $0x28] sm:$0xf]
        %v763 = vld [vmem:[%s3 + $0x2c] sm:$0xf]
        %v764 = vld [vmem:[%s3 + $0x30] sm:$0xf]
        %v765 = vld [vmem:[%s3 + $0x34] sm:$0xf]
        %v766 = vld [vmem:[%s3 + $0x38] sm:$0xf]
        %v767 = vld [vmem:[%s3 + $0x3c] sm:$0xf]
        %s768 = scalar_lea.vmem %s3, 64
        %v769 = vld [vmem:[%s768] sm:$0xf]
        %v770 = vld [vmem:[%s768 + $0x4] sm:$0xf]
        %v771 = vld [vmem:[%s768 + $0x8] sm:$0xf]
        %v772 = vld [vmem:[%s768 + $0xc] sm:$0xf]
        %v773 = vld [vmem:[%s768 + $0x10] sm:$0xf]
        %v774 = vld [vmem:[%s768 + $0x14] sm:$0xf]
        %v775 = vld [vmem:[%s768 + $0x18] sm:$0xf]
        %v776 = vld [vmem:[%s768 + $0x1c] sm:$0xf]
        %v777 = vld [vmem:[%s768 + $0x20] sm:$0xf]
        %v778 = vld [vmem:[%s768 + $0x24] sm:$0xf]
        %v779 = vld [vmem:[%s768 + $0x28] sm:$0xf]
        %v780 = vld [vmem:[%s768 + $0x2c] sm:$0xf]
        %v781 = vld [vmem:[%s768 + $0x30] sm:$0xf]
        %v782 = vld [vmem:[%s768 + $0x34] sm:$0xf]
        %v783 = vld [vmem:[%s768 + $0x38] sm:$0xf]
        %v784 = vld [vmem:[%s768 + $0x3c] sm:$0xf]
        %v786 = vshrl.u32 %v750, 16
        %v805 = vunpack.c.l.b16 %v769
        %v806 = vunpack.c.l.b16 %v770
        %v807 = vunpack.c.l.b16 %v771
        %v808 = vunpack.c.l.b16 %v772
        %v809 = vunpack.c.l.b16 %v773
        %v810 = vunpack.c.l.b16 %v774
        %v811 = vunpack.c.l.b16 %v775
        %v812 = vunpack.c.l.b16 %v776
        %v813 = vunpack.c.l.b16 %v777
        %v814 = vunpack.c.l.b16 %v778
        %v815 = vunpack.c.l.b16 %v779
        %v816 = vunpack.c.l.b16 %v780
        %v817 = vunpack.c.l.b16 %v781
        %v818 = vunpack.c.l.b16 %v782
        %v819 = vunpack.c.l.b16 %v783
        %v820 = vunpack.c.l.b16 %v784
        %v821 = vpack.c.b16 %v806, %v805
        %v822 = vpack.c.b16 %v808, %v807
        %v823 = vpack.c.b16 %v810, %v809
        %v824 = vpack.c.b16 %v812, %v811
        %v825 = vpack.c.b16 %v814, %v813
        %v826 = vpack.c.b16 %v816, %v815
        %v827 = vpack.c.b16 %v818, %v817
        %v828 = vpack.c.b16 %v820, %v819
        %837 = vmatprep.subr.bf16.mxu0 0
        %838 = vmatpush1.bf16.msra.mxu0 %v821
        %839 = vmatprep.subr.bf16.mxu0 0
        %840 = vmatpush1.bf16.msra.mxu0 %v822
        %841 = vmatprep.subr.bf16.mxu0 0
        %842 = vmatpush1.bf16.msra.mxu0 %v823
        %843 = vmatprep.subr.bf16.mxu0 0
        %844 = vmatpush1.bf16.msra.mxu0 %v824
        %845 = vmatprep.subr.bf16.mxu0 0
        %846 = vmatpush1.bf16.msra.mxu0 %v825
        %847 = vmatprep.subr.bf16.mxu0 0
        %848 = vmatpush1.bf16.msra.mxu0 %v826
        %849 = vmatprep.subr.bf16.mxu0 0
        %850 = vmatpush1.bf16.msra.mxu0 %v827
        %851 = vmatprep.subr.bf16.mxu0 0
        %852 = vmatpush1.bf16.msra.mxu0 %v828
        %853 = vmatprep.subr.bf16.mxu0 0
        %854 = vmatpush1.bf16.msra.mxu0 0
        %855 = vmatprep.subr.bf16.mxu0 0
        %856 = vmatpush1.bf16.msra.mxu0 0
        %857 = vmatprep.subr.bf16.mxu0 0
        %858 = vmatpush1.bf16.msra.mxu0 0
        %859 = vmatprep.subr.bf16.mxu0 0
        %860 = vmatpush1.bf16.msra.mxu0 0
        %861 = vmatprep.subr.bf16.mxu0 0
        %862 = vmatpush1.bf16.msra.mxu0 0
        %863 = vmatprep.subr.bf16.mxu0 0
        %864 = vmatpush1.bf16.msra.mxu0 0
        %865 = vmatprep.subr.bf16.mxu0 0
        %866 = vmatpush1.bf16.msra.mxu0 0
        %867 = vmatprep.subr.bf16.mxu0 0
        %868 = vmatpush1.bf16.msra.mxu0 0
        %869 = vmatprep.mubr.bf16.mxu0 0
        %870 = vmatmul.mubr.bf16.gmra.mrb[0].mxu0 %v786
        %v871 = vpop.f32.mrb[0].mxu0
        %v872 = vadd.f32 0.0, %v871
        %v873 = vpop.f32.mrb[0].mxu0
        %v874 = vpop.f32.mrb[0].mxu0
        %v875 = vpop.f32.mrb[0].mxu0
        %876 = vdwg.mxu0
        %v893 = vunpack.c.l.b16 %v752
        %v894 = vunpack.c.l.b16 %v753
        %v895 = vunpack.c.l.b16 %v754
        %v896 = vunpack.c.l.b16 %v755
        %v897 = vunpack.c.l.b16 %v756
        %v898 = vunpack.c.l.b16 %v757
        %v899 = vunpack.c.l.b16 %v758
        %v900 = vunpack.c.l.b16 %v759
        %v901 = vunpack.c.l.b16 %v760
        %v902 = vunpack.c.l.b16 %v761
        %v903 = vunpack.c.l.b16 %v762
        %v904 = vunpack.c.l.b16 %v763
        %v905 = vunpack.c.l.b16 %v764
        %v906 = vunpack.c.l.b16 %v765
        %v907 = vunpack.c.l.b16 %v766
        %v908 = vunpack.c.l.b16 %v767
        %v909 = vpack.c.b16 %v894, %v893
        %v910 = vpack.c.b16 %v896, %v895
        %v911 = vpack.c.b16 %v898, %v897
        %v912 = vpack.c.b16 %v900, %v899
        %v913 = vpack.c.b16 %v902, %v901
        %v914 = vpack.c.b16 %v904, %v903
        %v915 = vpack.c.b16 %v906, %v905
        %v916 = vpack.c.b16 %v908, %v907
        %925 = vmatprep.subr.bf16.mxu0 0
        %926 = vmatpush1.bf16.msra.mxu0 %v909
        %927 = vmatprep.subr.bf16.mxu0 0
        %928 = vmatpush1.bf16.msra.mxu0 %v910
        %929 = vmatprep.subr.bf16.mxu0 0
        %930 = vmatpush1.bf16.msra.mxu0 %v911
        %931 = vmatprep.subr.bf16.mxu0 0
        %932 = vmatpush1.bf16.msra.mxu0 %v912
        %933 = vmatprep.subr.bf16.mxu0 0
        %934 = vmatpush1.bf16.msra.mxu0 %v913
        %935 = vmatprep.subr.bf16.mxu0 0
        %936 = vmatpush1.bf16.msra.mxu0 %v914
        %937 = vmatprep.subr.bf16.mxu0 0
        %938 = vmatpush1.bf16.msra.mxu0 %v915
        %939 = vmatprep.subr.bf16.mxu0 0
        %940 = vmatpush1.bf16.msra.mxu0 %v916
        %941 = vmatprep.subr.bf16.mxu0 0
        %942 = vmatpush1.bf16.msra.mxu0 0
        %943 = vmatprep.subr.bf16.mxu0 0
        %944 = vmatpush1.bf16.msra.mxu0 0
        %945 = vmatprep.subr.bf16.mxu0 0
        %946 = vmatpush1.bf16.msra.mxu0 0
        %947 = vmatprep.subr.bf16.mxu0 0
        %948 = vmatpush1.bf16.msra.mxu0 0
        %949 = vmatprep.subr.bf16.mxu0 0
        %950 = vmatpush1.bf16.msra.mxu0 0
        %951 = vmatprep.subr.bf16.mxu0 0
        %952 = vmatpush1.bf16.msra.mxu0 0
        %953 = vmatprep.subr.bf16.mxu0 0
        %954 = vmatpush1.bf16.msra.mxu0 0
        %955 = vmatprep.subr.bf16.mxu0 0
        %956 = vmatpush1.bf16.msra.mxu0 0
        %957 = vmatprep.mubr.bf16.mxu0 0
        %958 = vmatmul.mubr.bf16.gmra.mrb[0].mxu0 %v750
        %v959 = vpop.f32.mrb[0].mxu0
        %v960 = vadd.f32 %v872, %v959
        %v961 = vpop.f32.mrb[0].mxu0
        %v962 = vpop.f32.mrb[0].mxu0
        %v963 = vpop.f32.mrb[0].mxu0
        %964 = vdwg.mxu0
        %s965 = scalar_lea.vmem %s3, 128
        %v966 = vld [vmem:[%s965] sm:$0xf]
        %v967 = vld [vmem:[%s965 + $0x4] sm:$0xf]
        %v968 = vld [vmem:[%s965 + $0x8] sm:$0xf]
        %v969 = vld [vmem:[%s965 + $0xc] sm:$0xf]
        %v970 = vld [vmem:[%s965 + $0x10] sm:$0xf]
        %v971 = vld [vmem:[%s965 + $0x14] sm:$0xf]
        %v972 = vld [vmem:[%s965 + $0x18] sm:$0xf]
        %v973 = vld [vmem:[%s965 + $0x1c] sm:$0xf]
        %v974 = vld [vmem:[%s965 + $0x20] sm:$0xf]
        %v975 = vld [vmem:[%s965 + $0x24] sm:$0xf]
        %v976 = vld [vmem:[%s965 + $0x28] sm:$0xf]
        %v977 = vld [vmem:[%s965 + $0x2c] sm:$0xf]
        %v978 = vld [vmem:[%s965 + $0x30] sm:$0xf]
        %v979 = vld [vmem:[%s965 + $0x34] sm:$0xf]
        %v980 = vld [vmem:[%s965 + $0x38] sm:$0xf]
        %v981 = vld [vmem:[%s965 + $0x3c] sm:$0xf]
        %v983 = vrot.slane %v750, 1
        %v1001 = vunpack.c.l.b16 %v966
        %v1002 = vunpack.c.l.b16 %v967
        %v1003 = vunpack.c.l.b16 %v968
        %v1004 = vunpack.c.l.b16 %v969
        %v1005 = vunpack.c.l.b16 %v970
        %v1006 = vunpack.c.l.b16 %v971
        %v1007 = vunpack.c.l.b16 %v972
        %v1008 = vunpack.c.l.b16 %v973
        %v1009 = vunpack.c.l.b16 %v974
        %v1010 = vunpack.c.l.b16 %v975
        %v1011 = vunpack.c.l.b16 %v976
        %v1012 = vunpack.c.l.b16 %v977
        %v1013 = vunpack.c.l.b16 %v978
        %v1014 = vunpack.c.l.b16 %v979
        %v1015 = vunpack.c.l.b16 %v980
        %v1016 = vunpack.c.l.b16 %v981
        %v1017 = vpack.c.b16 %v1002, %v1001
        %v1018 = vpack.c.b16 %v1004, %v1003
        %v1019 = vpack.c.b16 %v1006, %v1005
        %v1020 = vpack.c.b16 %v1008, %v1007
        %v1021 = vpack.c.b16 %v1010, %v1009
        %v1022 = vpack.c.b16 %v1012, %v1011
        %v1023 = vpack.c.b16 %v1014, %v1013
        %v1024 = vpack.c.b16 %v1016, %v1015
        %1033 = vmatprep.subr.bf16.mxu0 0
        %1034 = vmatpush1.bf16.msra.mxu0 %v1017
        %1035 = vmatprep.subr.bf16.mxu0 0
        %1036 = vmatpush1.bf16.msra.mxu0 %v1018
        %1037 = vmatprep.subr.bf16.mxu0 0
        %1038 = vmatpush1.bf16.msra.mxu0 %v1019
        %1039 = vmatprep.subr.bf16.mxu0 0
        %1040 = vmatpush1.bf16.msra.mxu0 %v1020
        %1041 = vmatprep.subr.bf16.mxu0 0
        %1042 = vmatpush1.bf16.msra.mxu0 %v1021
        %1043 = vmatprep.subr.bf16.mxu0 0
        %1044 = vmatpush1.bf16.msra.mxu0 %v1022
        %1045 = vmatprep.subr.bf16.mxu0 0
        %1046 = vmatpush1.bf16.msra.mxu0 %v1023
        %1047 = vmatprep.subr.bf16.mxu0 0
        %1048 = vmatpush1.bf16.msra.mxu0 %v1024
        %1049 = vmatprep.subr.bf16.mxu0 0
        %1050 = vmatpush1.bf16.msra.mxu0 0
        %1051 = vmatprep.subr.bf16.mxu0 0
        %1052 = vmatpush1.bf16.msra.mxu0 0
        %1053 = vmatprep.subr.bf16.mxu0 0
        %1054 = vmatpush1.bf16.msra.mxu0 0
        %1055 = vmatprep.subr.bf16.mxu0 0
        %1056 = vmatpush1.bf16.msra.mxu0 0
        %1057 = vmatprep.subr.bf16.mxu0 0
        %1058 = vmatpush1.bf16.msra.mxu0 0
        %1059 = vmatprep.subr.bf16.mxu0 0
        %1060 = vmatpush1.bf16.msra.mxu0 0
        %1061 = vmatprep.subr.bf16.mxu0 0
        %1062 = vmatpush1.bf16.msra.mxu0 0
        %1063 = vmatprep.subr.bf16.mxu0 0
        %1064 = vmatpush1.bf16.msra.mxu0 0
        %1065 = vmatprep.mubr.bf16.mxu0 0
        %1066 = vmatmul.mubr.bf16.gmra.mrb[0].mxu0 %v983
        %v1067 = vpop.f32.mrb[0].mxu0
        %v1068 = vadd.f32 0.0, %v1067
        %v1069 = vpop.f32.mrb[0].mxu0
        %v1070 = vpop.f32.mrb[0].mxu0
        %v1071 = vpop.f32.mrb[0].mxu0
        %1072 = vdwg.mxu0
        %v1073 = vadd.f32 %v960, %v1068
        %s1074 = scalar_lea.vmem %s3, 192
        %v1075 = vld [vmem:[%s1074] sm:$0xf]
        %v1076 = vld [vmem:[%s1074 + $0x4] sm:$0xf]
        %v1077 = vld [vmem:[%s1074 + $0x8] sm:$0xf]
        %v1078 = vld [vmem:[%s1074 + $0xc] sm:$0xf]
        %v1079 = vld [vmem:[%s1074 + $0x10] sm:$0xf]
        %v1080 = vld [vmem:[%s1074 + $0x14] sm:$0xf]
        %v1081 = vld [vmem:[%s1074 + $0x18] sm:$0xf]
        %v1082 = vld [vmem:[%s1074 + $0x1c] sm:$0xf]
        %v1083 = vld [vmem:[%s1074 + $0x20] sm:$0xf]
        %v1084 = vld [vmem:[%s1074 + $0x24] sm:$0xf]
        %v1085 = vld [vmem:[%s1074 + $0x28] sm:$0xf]
        %v1086 = vld [vmem:[%s1074 + $0x2c] sm:$0xf]
        %v1087 = vld [vmem:[%s1074 + $0x30] sm:$0xf]
        %v1088 = vld [vmem:[%s1074 + $0x34] sm:$0xf]
        %v1089 = vld [vmem:[%s1074 + $0x38] sm:$0xf]
        %v1090 = vld [vmem:[%s1074 + $0x3c] sm:$0xf]
        %v1091 = vrot.slane %v786, 1
        %v1109 = vunpack.c.l.b16 %v1075
        %v1110 = vunpack.c.l.b16 %v1076
        %v1111 = vunpack.c.l.b16 %v1077
        %v1112 = vunpack.c.l.b16 %v1078
        %v1113 = vunpack.c.l.b16 %v1079
        %v1114 = vunpack.c.l.b16 %v1080
        %v1115 = vunpack.c.l.b16 %v1081
        %v1116 = vunpack.c.l.b16 %v1082
        %v1117 = vunpack.c.l.b16 %v1083
        %v1118 = vunpack.c.l.b16 %v1084
        %v1119 = vunpack.c.l.b16 %v1085
        %v1120 = vunpack.c.l.b16 %v1086
        %v1121 = vunpack.c.l.b16 %v1087
        %v1122 = vunpack.c.l.b16 %v1088
        %v1123 = vunpack.c.l.b16 %v1089
        %v1124 = vunpack.c.l.b16 %v1090
        %v1125 = vpack.c.b16 %v1110, %v1109
        %v1126 = vpack.c.b16 %v1112, %v1111
        %v1127 = vpack.c.b16 %v1114, %v1113
        %v1128 = vpack.c.b16 %v1116, %v1115
        %v1129 = vpack.c.b16 %v1118, %v1117
        %v1130 = vpack.c.b16 %v1120, %v1119
        %v1131 = vpack.c.b16 %v1122, %v1121
        %v1132 = vpack.c.b16 %v1124, %v1123
        %1141 = vmatprep.subr.bf16.mxu0 0
        %1142 = vmatpush1.bf16.msra.mxu0 %v1125
        %1143 = vmatprep.subr.bf16.mxu0 0
        %1144 = vmatpush1.bf16.msra.mxu0 %v1126
        %1145 = vmatprep.subr.bf16.mxu0 0
        %1146 = vmatpush1.bf16.msra.mxu0 %v1127
        %1147 = vmatprep.subr.bf16.mxu0 0
        %1148 = vmatpush1.bf16.msra.mxu0 %v1128
        %1149 = vmatprep.subr.bf16.mxu0 0
        %1150 = vmatpush1.bf16.msra.mxu0 %v1129
        %1151 = vmatprep.subr.bf16.mxu0 0
        %1152 = vmatpush1.bf16.msra.mxu0 %v1130
        %1153 = vmatprep.subr.bf16.mxu0 0
        %1154 = vmatpush1.bf16.msra.mxu0 %v1131
        %1155 = vmatprep.subr.bf16.mxu0 0
        %1156 = vmatpush1.bf16.msra.mxu0 %v1132
        %1157 = vmatprep.subr.bf16.mxu0 0
        %1158 = vmatpush1.bf16.msra.mxu0 0
        %1159 = vmatprep.subr.bf16.mxu0 0
        %1160 = vmatpush1.bf16.msra.mxu0 0
        %1161 = vmatprep.subr.bf16.mxu0 0
        %1162 = vmatpush1.bf16.msra.mxu0 0
        %1163 = vmatprep.subr.bf16.mxu0 0
        %1164 = vmatpush1.bf16.msra.mxu0 0
        %1165 = vmatprep.subr.bf16.mxu0 0
        %1166 = vmatpush1.bf16.msra.mxu0 0
        %1167 = vmatprep.subr.bf16.mxu0 0
        %1168 = vmatpush1.bf16.msra.mxu0 0
        %1169 = vmatprep.subr.bf16.mxu0 0
        %1170 = vmatpush1.bf16.msra.mxu0 0
        %1171 = vmatprep.subr.bf16.mxu0 0
        %1172 = vmatpush1.bf16.msra.mxu0 0
        %1173 = vmatprep.mubr.bf16.mxu0 0
        %1174 = vmatmul.mubr.bf16.gmra.mrb[0].mxu0 %v1091
        %v1175 = vpop.f32.mrb[0].mxu0
        %v1176 = vadd.f32 0.0, %v1175
        %v1177 = vpop.f32.mrb[0].mxu0
        %v1178 = vpop.f32.mrb[0].mxu0
        %v1179 = vpop.f32.mrb[0].mxu0
        %1180 = vdwg.mxu0
        %v1181 = vadd.f32 %v1073, %v1176
        %s1182 = scalar_lea.vmem %s3, 256
        %v1183 = vld [vmem:[%s1182] sm:$0xf]
        %v1184 = vld [vmem:[%s1182 + $0x4] sm:$0xf]
        %v1185 = vld [vmem:[%s1182 + $0x8] sm:$0xf]
        %v1186 = vld [vmem:[%s1182 + $0xc] sm:$0xf]
        %v1187 = vld [vmem:[%s1182 + $0x10] sm:$0xf]
        %v1188 = vld [vmem:[%s1182 + $0x14] sm:$0xf]
        %v1189 = vld [vmem:[%s1182 + $0x18] sm:$0xf]
        %v1190 = vld [vmem:[%s1182 + $0x1c] sm:$0xf]
        %v1191 = vld [vmem:[%s1182 + $0x20] sm:$0xf]
        %v1192 = vld [vmem:[%s1182 + $0x24] sm:$0xf]
        %v1193 = vld [vmem:[%s1182 + $0x28] sm:$0xf]
        %v1194 = vld [vmem:[%s1182 + $0x2c] sm:$0xf]
        %v1195 = vld [vmem:[%s1182 + $0x30] sm:$0xf]
        %v1196 = vld [vmem:[%s1182 + $0x34] sm:$0xf]
        %v1197 = vld [vmem:[%s1182 + $0x38] sm:$0xf]
        %v1198 = vld [vmem:[%s1182 + $0x3c] sm:$0xf]
        %v1199 = vrot.slane %v750, 2
        %v1217 = vunpack.c.l.b16 %v1183
        %v1218 = vunpack.c.l.b16 %v1184
        %v1219 = vunpack.c.l.b16 %v1185
        %v1220 = vunpack.c.l.b16 %v1186
        %v1221 = vunpack.c.l.b16 %v1187
        %v1222 = vunpack.c.l.b16 %v1188
        %v1223 = vunpack.c.l.b16 %v1189
        %v1224 = vunpack.c.l.b16 %v1190
        %v1225 = vunpack.c.l.b16 %v1191
        %v1226 = vunpack.c.l.b16 %v1192
        %v1227 = vunpack.c.l.b16 %v1193
        %v1228 = vunpack.c.l.b16 %v1194
        %v1229 = vunpack.c.l.b16 %v1195
        %v1230 = vunpack.c.l.b16 %v1196
        %v1231 = vunpack.c.l.b16 %v1197
        %v1232 = vunpack.c.l.b16 %v1198
        %v1233 = vpack.c.b16 %v1218, %v1217
        %v1234 = vpack.c.b16 %v1220, %v1219
        %v1235 = vpack.c.b16 %v1222, %v1221
        %v1236 = vpack.c.b16 %v1224, %v1223
        %v1237 = vpack.c.b16 %v1226, %v1225
        %v1238 = vpack.c.b16 %v1228, %v1227
        %v1239 = vpack.c.b16 %v1230, %v1229
        %v1240 = vpack.c.b16 %v1232, %v1231
        %1249 = vmatprep.subr.bf16.mxu0 0
        %1250 = vmatpush1.bf16.msra.mxu0 %v1233
        %1251 = vmatprep.subr.bf16.mxu0 0
        %1252 = vmatpush1.bf16.msra.mxu0 %v1234
        %1253 = vmatprep.subr.bf16.mxu0 0
        %1254 = vmatpush1.bf16.msra.mxu0 %v1235
        %1255 = vmatprep.subr.bf16.mxu0 0
        %1256 = vmatpush1.bf16.msra.mxu0 %v1236
        %1257 = vmatprep.subr.bf16.mxu0 0
        %1258 = vmatpush1.bf16.msra.mxu0 %v1237
        %1259 = vmatprep.subr.bf16.mxu0 0
        %1260 = vmatpush1.bf16.msra.mxu0 %v1238
        %1261 = vmatprep.subr.bf16.mxu0 0
        %1262 = vmatpush1.bf16.msra.mxu0 %v1239
        %1263 = vmatprep.subr.bf16.mxu0 0
        %1264 = vmatpush1.bf16.msra.mxu0 %v1240
        %1265 = vmatprep.subr.bf16.mxu0 0
        %1266 = vmatpush1.bf16.msra.mxu0 0
        %1267 = vmatprep.subr.bf16.mxu0 0
        %1268 = vmatpush1.bf16.msra.mxu0 0
        %1269 = vmatprep.subr.bf16.mxu0 0
        %1270 = vmatpush1.bf16.msra.mxu0 0
        %1271 = vmatprep.subr.bf16.mxu0 0
        %1272 = vmatpush1.bf16.msra.mxu0 0
        %1273 = vmatprep.subr.bf16.mxu0 0
        %1274 = vmatpush1.bf16.msra.mxu0 0
        %1275 = vmatprep.subr.bf16.mxu0 0
        %1276 = vmatpush1.bf16.msra.mxu0 0
        %1277 = vmatprep.subr.bf16.mxu0 0
        %1278 = vmatpush1.bf16.msra.mxu0 0
        %1279 = vmatprep.subr.bf16.mxu0 0
        %1280 = vmatpush1.bf16.msra.mxu0 0
        %1281 = vmatprep.mubr.bf16.mxu0 0
        %1282 = vmatmul.mubr.bf16.gmra.mrb[0].mxu0 %v1199
        %v1283 = vpop.f32.mrb[0].mxu0
        %v1284 = vadd.f32 0.0, %v1283
        %v1285 = vpop.f32.mrb[0].mxu0
        %v1286 = vpop.f32.mrb[0].mxu0
        %v1287 = vpop.f32.mrb[0].mxu0
        %1288 = vdwg.mxu0
        %v1289 = vadd.f32 %v1181, %v1284
        %s1290 = scalar_lea.vmem %s3, 320
        %v1291 = vld [vmem:[%s1290] sm:$0xf]
        %v1292 = vld [vmem:[%s1290 + $0x4] sm:$0xf]
        %v1293 = vld [vmem:[%s1290 + $0x8] sm:$0xf]
        %v1294 = vld [vmem:[%s1290 + $0xc] sm:$0xf]
        %v1295 = vld [vmem:[%s1290 + $0x10] sm:$0xf]
        %v1296 = vld [vmem:[%s1290 + $0x14] sm:$0xf]
        %v1297 = vld [vmem:[%s1290 + $0x18] sm:$0xf]
        %v1298 = vld [vmem:[%s1290 + $0x1c] sm:$0xf]
        %v1299 = vld [vmem:[%s1290 + $0x20] sm:$0xf]
        %v1300 = vld [vmem:[%s1290 + $0x24] sm:$0xf]
        %v1301 = vld [vmem:[%s1290 + $0x28] sm:$0xf]
        %v1302 = vld [vmem:[%s1290 + $0x2c] sm:$0xf]
        %v1303 = vld [vmem:[%s1290 + $0x30] sm:$0xf]
        %v1304 = vld [vmem:[%s1290 + $0x34] sm:$0xf]
        %v1305 = vld [vmem:[%s1290 + $0x38] sm:$0xf]
        %v1306 = vld [vmem:[%s1290 + $0x3c] sm:$0xf]
        %v1307 = vrot.slane %v786, 2
        %v1325 = vunpack.c.l.b16 %v1291
        %v1326 = vunpack.c.l.b16 %v1292
        %v1327 = vunpack.c.l.b16 %v1293
        %v1328 = vunpack.c.l.b16 %v1294
        %v1329 = vunpack.c.l.b16 %v1295
        %v1330 = vunpack.c.l.b16 %v1296
        %v1331 = vunpack.c.l.b16 %v1297
        %v1332 = vunpack.c.l.b16 %v1298
        %v1333 = vunpack.c.l.b16 %v1299
        %v1334 = vunpack.c.l.b16 %v1300
        %v1335 = vunpack.c.l.b16 %v1301
        %v1336 = vunpack.c.l.b16 %v1302
        %v1337 = vunpack.c.l.b16 %v1303
        %v1338 = vunpack.c.l.b16 %v1304
        %v1339 = vunpack.c.l.b16 %v1305
        %v1340 = vunpack.c.l.b16 %v1306
        %v1341 = vpack.c.b16 %v1326, %v1325
        %v1342 = vpack.c.b16 %v1328, %v1327
        %v1343 = vpack.c.b16 %v1330, %v1329
        %v1344 = vpack.c.b16 %v1332, %v1331
        %v1345 = vpack.c.b16 %v1334, %v1333
        %v1346 = vpack.c.b16 %v1336, %v1335
        %v1347 = vpack.c.b16 %v1338, %v1337
        %v1348 = vpack.c.b16 %v1340, %v1339
        %1357 = vmatprep.subr.bf16.mxu0 0
        %1358 = vmatpush1.bf16.msra.mxu0 %v1341
        %1359 = vmatprep.subr.bf16.mxu0 0
        %1360 = vmatpush1.bf16.msra.mxu0 %v1342
        %1361 = vmatprep.subr.bf16.mxu0 0
        %1362 = vmatpush1.bf16.msra.mxu0 %v1343
        %1363 = vmatprep.subr.bf16.mxu0 0
        %1364 = vmatpush1.bf16.msra.mxu0 %v1344
        %1365 = vmatprep.subr.bf16.mxu0 0
        %1366 = vmatpush1.bf16.msra.mxu0 %v1345
        %1367 = vmatprep.subr.bf16.mxu0 0
        %1368 = vmatpush1.bf16.msra.mxu0 %v1346
        %1369 = vmatprep.subr.bf16.mxu0 0
        %1370 = vmatpush1.bf16.msra.mxu0 %v1347
        %1371 = vmatprep.subr.bf16.mxu0 0
        %1372 = vmatpush1.bf16.msra.mxu0 %v1348
        %1373 = vmatprep.subr.bf16.mxu0 0
        %1374 = vmatpush1.bf16.msra.mxu0 0
        %1375 = vmatprep.subr.bf16.mxu0 0
        %1376 = vmatpush1.bf16.msra.mxu0 0
        %1377 = vmatprep.subr.bf16.mxu0 0
        %1378 = vmatpush1.bf16.msra.mxu0 0
        %1379 = vmatprep.subr.bf16.mxu0 0
        %1380 = vmatpush1.bf16.msra.mxu0 0
        %1381 = vmatprep.subr.bf16.mxu0 0
        %1382 = vmatpush1.bf16.msra.mxu0 0
        %1383 = vmatprep.subr.bf16.mxu0 0
        %1384 = vmatpush1.bf16.msra.mxu0 0
        %1385 = vmatprep.subr.bf16.mxu0 0
        %1386 = vmatpush1.bf16.msra.mxu0 0
        %1387 = vmatprep.subr.bf16.mxu0 0
        %1388 = vmatpush1.bf16.msra.mxu0 0
        %1389 = vmatprep.mubr.bf16.mxu0 0
        %1390 = vmatmul.mubr.bf16.gmra.mrb[0].mxu0 %v1307
        %v1391 = vpop.f32.mrb[0].mxu0
        %v1392 = vadd.f32 0.0, %v1391
        %v1393 = vpop.f32.mrb[0].mxu0
        %v1394 = vpop.f32.mrb[0].mxu0
        %v1395 = vpop.f32.mrb[0].mxu0
        %1396 = vdwg.mxu0
        %v1397 = vadd.f32 %v1289, %v1392
        %s1398 = scalar_lea.vmem %s3, 384
        %v1399 = vld [vmem:[%s1398] sm:$0xf]
        %v1400 = vld [vmem:[%s1398 + $0x4] sm:$0xf]
        %v1401 = vld [vmem:[%s1398 + $0x8] sm:$0xf]
        %v1402 = vld [vmem:[%s1398 + $0xc] sm:$0xf]
        %v1403 = vld [vmem:[%s1398 + $0x10] sm:$0xf]
        %v1404 = vld [vmem:[%s1398 + $0x14] sm:$0xf]
        %v1405 = vld [vmem:[%s1398 + $0x18] sm:$0xf]
        %v1406 = vld [vmem:[%s1398 + $0x1c] sm:$0xf]
        %v1407 = vld [vmem:[%s1398 + $0x20] sm:$0xf]
        %v1408 = vld [vmem:[%s1398 + $0x24] sm:$0xf]
        %v1409 = vld [vmem:[%s1398 + $0x28] sm:$0xf]
        %v1410 = vld [vmem:[%s1398 + $0x2c] sm:$0xf]
        %v1411 = vld [vmem:[%s1398 + $0x30] sm:$0xf]
        %v1412 = vld [vmem:[%s1398 + $0x34] sm:$0xf]
        %v1413 = vld [vmem:[%s1398 + $0x38] sm:$0xf]
        %v1414 = vld [vmem:[%s1398 + $0x3c] sm:$0xf]
        %v1415 = vrot.slane %v750, 3
        %v1433 = vunpack.c.l.b16 %v1399
        %v1434 = vunpack.c.l.b16 %v1400
        %v1435 = vunpack.c.l.b16 %v1401
        %v1436 = vunpack.c.l.b16 %v1402
        %v1437 = vunpack.c.l.b16 %v1403
        %v1438 = vunpack.c.l.b16 %v1404
        %v1439 = vunpack.c.l.b16 %v1405
        %v1440 = vunpack.c.l.b16 %v1406
        %v1441 = vunpack.c.l.b16 %v1407
        %v1442 = vunpack.c.l.b16 %v1408
        %v1443 = vunpack.c.l.b16 %v1409
        %v1444 = vunpack.c.l.b16 %v1410
        %v1445 = vunpack.c.l.b16 %v1411
        %v1446 = vunpack.c.l.b16 %v1412
        %v1447 = vunpack.c.l.b16 %v1413
        %v1448 = vunpack.c.l.b16 %v1414
        %v1449 = vpack.c.b16 %v1434, %v1433
        %v1450 = vpack.c.b16 %v1436, %v1435
        %v1451 = vpack.c.b16 %v1438, %v1437
        %v1452 = vpack.c.b16 %v1440, %v1439
        %v1453 = vpack.c.b16 %v1442, %v1441
        %v1454 = vpack.c.b16 %v1444, %v1443
        %v1455 = vpack.c.b16 %v1446, %v1445
        %v1456 = vpack.c.b16 %v1448, %v1447
        %1465 = vmatprep.subr.bf16.mxu0 0
        %1466 = vmatpush1.bf16.msra.mxu0 %v1449
        %1467 = vmatprep.subr.bf16.mxu0 0
        %1468 = vmatpush1.bf16.msra.mxu0 %v1450
        %1469 = vmatprep.subr.bf16.mxu0 0
        %1470 = vmatpush1.bf16.msra.mxu0 %v1451
        %1471 = vmatprep.subr.bf16.mxu0 0
        %1472 = vmatpush1.bf16.msra.mxu0 %v1452
        %1473 = vmatprep.subr.bf16.mxu0 0
        %1474 = vmatpush1.bf16.msra.mxu0 %v1453
        %1475 = vmatprep.subr.bf16.mxu0 0
        %1476 = vmatpush1.bf16.msra.mxu0 %v1454
        %1477 = vmatprep.subr.bf16.mxu0 0
        %1478 = vmatpush1.bf16.msra.mxu0 %v1455
        %1479 = vmatprep.subr.bf16.mxu0 0
        %1480 = vmatpush1.bf16.msra.mxu0 %v1456
        %1481 = vmatprep.subr.bf16.mxu0 0
        %1482 = vmatpush1.bf16.msra.mxu0 0
        %1483 = vmatprep.subr.bf16.mxu0 0
        %1484 = vmatpush1.bf16.msra.mxu0 0
        %1485 = vmatprep.subr.bf16.mxu0 0
        %1486 = vmatpush1.bf16.msra.mxu0 0
        %1487 = vmatprep.subr.bf16.mxu0 0
        %1488 = vmatpush1.bf16.msra.mxu0 0
        %1489 = vmatprep.subr.bf16.mxu0 0
        %1490 = vmatpush1.bf16.msra.mxu0 0
        %1491 = vmatprep.subr.bf16.mxu0 0
        %1492 = vmatpush1.bf16.msra.mxu0 0
        %1493 = vmatprep.subr.bf16.mxu0 0
        %1494 = vmatpush1.bf16.msra.mxu0 0
        %1495 = vmatprep.subr.bf16.mxu0 0
        %1496 = vmatpush1.bf16.msra.mxu0 0
        %1497 = vmatprep.mubr.bf16.mxu0 0
        %1498 = vmatmul.mubr.bf16.gmra.mrb[0].mxu0 %v1415
        %v1499 = vpop.f32.mrb[0].mxu0
        %v1500 = vadd.f32 0.0, %v1499
        %v1501 = vpop.f32.mrb[0].mxu0
        %v1502 = vpop.f32.mrb[0].mxu0
        %v1503 = vpop.f32.mrb[0].mxu0
        %1504 = vdwg.mxu0
        %v1505 = vadd.f32 %v1397, %v1500
        %s1506 = scalar_lea.vmem %s3, 448
        %v1507 = vld [vmem:[%s1506] sm:$0xf]
        %v1508 = vld [vmem:[%s1506 + $0x4] sm:$0xf]
        %v1509 = vld [vmem:[%s1506 + $0x8] sm:$0xf]
        %v1510 = vld [vmem:[%s1506 + $0xc] sm:$0xf]
        %v1511 = vld [vmem:[%s1506 + $0x10] sm:$0xf]
        %v1512 = vld [vmem:[%s1506 + $0x14] sm:$0xf]
        %v1513 = vld [vmem:[%s1506 + $0x18] sm:$0xf]
        %v1514 = vld [vmem:[%s1506 + $0x1c] sm:$0xf]
        %v1515 = vld [vmem:[%s1506 + $0x20] sm:$0xf]
        %v1516 = vld [vmem:[%s1506 + $0x24] sm:$0xf]
        %v1517 = vld [vmem:[%s1506 + $0x28] sm:$0xf]
        %v1518 = vld [vmem:[%s1506 + $0x2c] sm:$0xf]
        %v1519 = vld [vmem:[%s1506 + $0x30] sm:$0xf]
        %v1520 = vld [vmem:[%s1506 + $0x34] sm:$0xf]
        %v1521 = vld [vmem:[%s1506 + $0x38] sm:$0xf]
        %v1522 = vld [vmem:[%s1506 + $0x3c] sm:$0xf]
        %v1523 = vrot.slane %v786, 3
        %v1541 = vunpack.c.l.b16 %v1507
        %v1542 = vunpack.c.l.b16 %v1508
        %v1543 = vunpack.c.l.b16 %v1509
        %v1544 = vunpack.c.l.b16 %v1510
        %v1545 = vunpack.c.l.b16 %v1511
        %v1546 = vunpack.c.l.b16 %v1512
        %v1547 = vunpack.c.l.b16 %v1513
        %v1548 = vunpack.c.l.b16 %v1514
        %v1549 = vunpack.c.l.b16 %v1515
        %v1550 = vunpack.c.l.b16 %v1516
        %v1551 = vunpack.c.l.b16 %v1517
        %v1552 = vunpack.c.l.b16 %v1518
        %v1553 = vunpack.c.l.b16 %v1519
        %v1554 = vunpack.c.l.b16 %v1520
        %v1555 = vunpack.c.l.b16 %v1521
        %v1556 = vunpack.c.l.b16 %v1522
        %v1557 = vpack.c.b16 %v1542, %v1541
        %v1558 = vpack.c.b16 %v1544, %v1543
        %v1559 = vpack.c.b16 %v1546, %v1545
        %v1560 = vpack.c.b16 %v1548, %v1547
        %v1561 = vpack.c.b16 %v1550, %v1549
        %v1562 = vpack.c.b16 %v1552, %v1551
        %v1563 = vpack.c.b16 %v1554, %v1553
        %v1564 = vpack.c.b16 %v1556, %v1555
        %1573 = vmatprep.subr.bf16.mxu0 0
        %1574 = vmatpush1.bf16.msra.mxu0 %v1557
        %1575 = vmatprep.subr.bf16.mxu0 0
        %1576 = vmatpush1.bf16.msra.mxu0 %v1558
        %1577 = vmatprep.subr.bf16.mxu0 0
        %1578 = vmatpush1.bf16.msra.mxu0 %v1559
        %1579 = vmatprep.subr.bf16.mxu0 0
        %1580 = vmatpush1.bf16.msra.mxu0 %v1560
        %1581 = vmatprep.subr.bf16.mxu0 0
        %1582 = vmatpush1.bf16.msra.mxu0 %v1561
        %1583 = vmatprep.subr.bf16.mxu0 0
        %1584 = vmatpush1.bf16.msra.mxu0 %v1562
        %1585 = vmatprep.subr.bf16.mxu0 0
        %1586 = vmatpush1.bf16.msra.mxu0 %v1563
        %1587 = vmatprep.subr.bf16.mxu0 0
        %1588 = vmatpush1.bf16.msra.mxu0 %v1564
        %1589 = vmatprep.subr.bf16.mxu0 0
        %1590 = vmatpush1.bf16.msra.mxu0 0
        %1591 = vmatprep.subr.bf16.mxu0 0
        %1592 = vmatpush1.bf16.msra.mxu0 0
        %1593 = vmatprep.subr.bf16.mxu0 0
        %1594 = vmatpush1.bf16.msra.mxu0 0
        %1595 = vmatprep.subr.bf16.mxu0 0
        %1596 = vmatpush1.bf16.msra.mxu0 0
        %1597 = vmatprep.subr.bf16.mxu0 0
        %1598 = vmatpush1.bf16.msra.mxu0 0
        %1599 = vmatprep.subr.bf16.mxu0 0
        %1600 = vmatpush1.bf16.msra.mxu0 0
        %1601 = vmatprep.subr.bf16.mxu0 0
        %1602 = vmatpush1.bf16.msra.mxu0 0
        %1603 = vmatprep.subr.bf16.mxu0 0
        %1604 = vmatpush1.bf16.msra.mxu0 0
        %1605 = vmatprep.mubr.bf16.mxu0 0
        %1606 = vmatmul.mubr.bf16.gmra.mrb[0].mxu0 %v1523
        %v1607 = vpop.f32.mrb[0].mxu0
        %v1608 = vadd.f32 0.0, %v1607
        %v1609 = vpop.f32.mrb[0].mxu0
        %v1610 = vpop.f32.mrb[0].mxu0
        %v1611 = vpop.f32.mrb[0].mxu0
        %1612 = vdwg.mxu0
        %v1613 = vadd.f32 %v1505, %v1608
        %s1614 = scalar_lea.vmem %s3, 512
        %v1615 = vld [vmem:[%s1614] sm:$0xf]
        %v1616 = vld [vmem:[%s1614 + $0x4] sm:$0xf]
        %v1617 = vld [vmem:[%s1614 + $0x8] sm:$0xf]
        %v1618 = vld [vmem:[%s1614 + $0xc] sm:$0xf]
        %v1619 = vld [vmem:[%s1614 + $0x10] sm:$0xf]
        %v1620 = vld [vmem:[%s1614 + $0x14] sm:$0xf]
        %v1621 = vld [vmem:[%s1614 + $0x18] sm:$0xf]
        %v1622 = vld [vmem:[%s1614 + $0x1c] sm:$0xf]
        %v1623 = vld [vmem:[%s1614 + $0x20] sm:$0xf]
        %v1624 = vld [vmem:[%s1614 + $0x24] sm:$0xf]
        %v1625 = vld [vmem:[%s1614 + $0x28] sm:$0xf]
        %v1626 = vld [vmem:[%s1614 + $0x2c] sm:$0xf]
        %v1627 = vld [vmem:[%s1614 + $0x30] sm:$0xf]
        %v1628 = vld [vmem:[%s1614 + $0x34] sm:$0xf]
        %v1629 = vld [vmem:[%s1614 + $0x38] sm:$0xf]
        %v1630 = vld [vmem:[%s1614 + $0x3c] sm:$0xf]
        %v1631 = vrot.slane %v750, 4
        %v1649 = vunpack.c.l.b16 %v1615
        %v1650 = vunpack.c.l.b16 %v1616
        %v1651 = vunpack.c.l.b16 %v1617
        %v1652 = vunpack.c.l.b16 %v1618
        %v1653 = vunpack.c.l.b16 %v1619
        %v1654 = vunpack.c.l.b16 %v1620
        %v1655 = vunpack.c.l.b16 %v1621
        %v1656 = vunpack.c.l.b16 %v1622
        %v1657 = vunpack.c.l.b16 %v1623
        %v1658 = vunpack.c.l.b16 %v1624
        %v1659 = vunpack.c.l.b16 %v1625
        %v1660 = vunpack.c.l.b16 %v1626
        %v1661 = vunpack.c.l.b16 %v1627
        %v1662 = vunpack.c.l.b16 %v1628
        %v1663 = vunpack.c.l.b16 %v1629
        %v1664 = vunpack.c.l.b16 %v1630
        %v1665 = vpack.c.b16 %v1650, %v1649
        %v1666 = vpack.c.b16 %v1652, %v1651
        %v1667 = vpack.c.b16 %v1654, %v1653
        %v1668 = vpack.c.b16 %v1656, %v1655
        %v1669 = vpack.c.b16 %v1658, %v1657
        %v1670 = vpack.c.b16 %v1660, %v1659
        %v1671 = vpack.c.b16 %v1662, %v1661
        %v1672 = vpack.c.b16 %v1664, %v1663
        %1681 = vmatprep.subr.bf16.mxu0 0
        %1682 = vmatpush1.bf16.msra.mxu0 %v1665
        %1683 = vmatprep.subr.bf16.mxu0 0
        %1684 = vmatpush1.bf16.msra.mxu0 %v1666
        %1685 = vmatprep.subr.bf16.mxu0 0
        %1686 = vmatpush1.bf16.msra.mxu0 %v1667
        %1687 = vmatprep.subr.bf16.mxu0 0
        %1688 = vmatpush1.bf16.msra.mxu0 %v1668
        %1689 = vmatprep.subr.bf16.mxu0 0
        %1690 = vmatpush1.bf16.msra.mxu0 %v1669
        %1691 = vmatprep.subr.bf16.mxu0 0
        %1692 = vmatpush1.bf16.msra.mxu0 %v1670
        %1693 = vmatprep.subr.bf16.mxu0 0
        %1694 = vmatpush1.bf16.msra.mxu0 %v1671
        %1695 = vmatprep.subr.bf16.mxu0 0
        %1696 = vmatpush1.bf16.msra.mxu0 %v1672
        %1697 = vmatprep.subr.bf16.mxu0 0
        %1698 = vmatpush1.bf16.msra.mxu0 0
        %1699 = vmatprep.subr.bf16.mxu0 0
        %1700 = vmatpush1.bf16.msra.mxu0 0
        %1701 = vmatprep.subr.bf16.mxu0 0
        %1702 = vmatpush1.bf16.msra.mxu0 0
        %1703 = vmatprep.subr.bf16.mxu0 0
        %1704 = vmatpush1.bf16.msra.mxu0 0
        %1705 = vmatprep.subr.bf16.mxu0 0
        %1706 = vmatpush1.bf16.msra.mxu0 0
        %1707 = vmatprep.subr.bf16.mxu0 0
        %1708 = vmatpush1.bf16.msra.mxu0 0
        %1709 = vmatprep.subr.bf16.mxu0 0
        %1710 = vmatpush1.bf16.msra.mxu0 0
        %1711 = vmatprep.subr.bf16.mxu0 0
        %1712 = vmatpush1.bf16.msra.mxu0 0
        %1713 = vmatprep.mubr.bf16.mxu0 0
        %1714 = vmatmul.mubr.bf16.gmra.mrb[0].mxu0 %v1631
        %v1715 = vpop.f32.mrb[0].mxu0
        %v1716 = vadd.f32 0.0, %v1715
        %v1717 = vpop.f32.mrb[0].mxu0
        %v1718 = vpop.f32.mrb[0].mxu0
        %v1719 = vpop.f32.mrb[0].mxu0
        %1720 = vdwg.mxu0
        %v1721 = vadd.f32 %v1613, %v1716
        %s1722 = scalar_lea.vmem %s3, 576
        %v1723 = vld [vmem:[%s1722] sm:$0xf]
        %v1724 = vld [vmem:[%s1722 + $0x4] sm:$0xf]
        %v1725 = vld [vmem:[%s1722 + $0x8] sm:$0xf]
        %v1726 = vld [vmem:[%s1722 + $0xc] sm:$0xf]
        %v1727 = vld [vmem:[%s1722 + $0x10] sm:$0xf]
        %v1728 = vld [vmem:[%s1722 + $0x14] sm:$0xf]
        %v1729 = vld [vmem:[%s1722 + $0x18] sm:$0xf]
        %v1730 = vld [vmem:[%s1722 + $0x1c] sm:$0xf]
        %v1731 = vld [vmem:[%s1722 + $0x20] sm:$0xf]
        %v1732 = vld [vmem:[%s1722 + $0x24] sm:$0xf]
        %v1733 = vld [vmem:[%s1722 + $0x28] sm:$0xf]
        %v1734 = vld [vmem:[%s1722 + $0x2c] sm:$0xf]
        %v1735 = vld [vmem:[%s1722 + $0x30] sm:$0xf]
        %v1736 = vld [vmem:[%s1722 + $0x34] sm:$0xf]
        %v1737 = vld [vmem:[%s1722 + $0x38] sm:$0xf]
        %v1738 = vld [vmem:[%s1722 + $0x3c] sm:$0xf]
        %v1739 = vrot.slane %v786, 4
        %v1757 = vunpack.c.l.b16 %v1723
        %v1758 = vunpack.c.l.b16 %v1724
        %v1759 = vunpack.c.l.b16 %v1725
        %v1760 = vunpack.c.l.b16 %v1726
        %v1761 = vunpack.c.l.b16 %v1727
        %v1762 = vunpack.c.l.b16 %v1728
        %v1763 = vunpack.c.l.b16 %v1729
        %v1764 = vunpack.c.l.b16 %v1730
        %v1765 = vunpack.c.l.b16 %v1731
        %v1766 = vunpack.c.l.b16 %v1732
        %v1767 = vunpack.c.l.b16 %v1733
        %v1768 = vunpack.c.l.b16 %v1734
        %v1769 = vunpack.c.l.b16 %v1735
        %v1770 = vunpack.c.l.b16 %v1736
        %v1771 = vunpack.c.l.b16 %v1737
        %v1772 = vunpack.c.l.b16 %v1738
        %v1773 = vpack.c.b16 %v1758, %v1757
        %v1774 = vpack.c.b16 %v1760, %v1759
        %v1775 = vpack.c.b16 %v1762, %v1761
        %v1776 = vpack.c.b16 %v1764, %v1763
        %v1777 = vpack.c.b16 %v1766, %v1765
        %v1778 = vpack.c.b16 %v1768, %v1767
        %v1779 = vpack.c.b16 %v1770, %v1769
        %v1780 = vpack.c.b16 %v1772, %v1771
        %1789 = vmatprep.subr.bf16.mxu0 0
        %1790 = vmatpush1.bf16.msra.mxu0 %v1773
        %1791 = vmatprep.subr.bf16.mxu0 0
        %1792 = vmatpush1.bf16.msra.mxu0 %v1774
        %1793 = vmatprep.subr.bf16.mxu0 0
        %1794 = vmatpush1.bf16.msra.mxu0 %v1775
        %1795 = vmatprep.subr.bf16.mxu0 0
        %1796 = vmatpush1.bf16.msra.mxu0 %v1776
        %1797 = vmatprep.subr.bf16.mxu0 0
        %1798 = vmatpush1.bf16.msra.mxu0 %v1777
        %1799 = vmatprep.subr.bf16.mxu0 0
        %1800 = vmatpush1.bf16.msra.mxu0 %v1778
        %1801 = vmatprep.subr.bf16.mxu0 0
        %1802 = vmatpush1.bf16.msra.mxu0 %v1779
        %1803 = vmatprep.subr.bf16.mxu0 0
        %1804 = vmatpush1.bf16.msra.mxu0 %v1780
        %1805 = vmatprep.subr.bf16.mxu0 0
        %1806 = vmatpush1.bf16.msra.mxu0 0
        %1807 = vmatprep.subr.bf16.mxu0 0
        %1808 = vmatpush1.bf16.msra.mxu0 0
        %1809 = vmatprep.subr.bf16.mxu0 0
        %1810 = vmatpush1.bf16.msra.mxu0 0
        %1811 = vmatprep.subr.bf16.mxu0 0
        %1812 = vmatpush1.bf16.msra.mxu0 0
        %1813 = vmatprep.subr.bf16.mxu0 0
        %1814 = vmatpush1.bf16.msra.mxu0 0
        %1815 = vmatprep.subr.bf16.mxu0 0
        %1816 = vmatpush1.bf16.msra.mxu0 0
        %1817 = vmatprep.subr.bf16.mxu0 0
        %1818 = vmatpush1.bf16.msra.mxu0 0
        %1819 = vmatprep.subr.bf16.mxu0 0
        %1820 = vmatpush1.bf16.msra.mxu0 0
        %1821 = vmatprep.mubr.bf16.mxu0 0
        %1822 = vmatmul.mubr.bf16.gmra.mrb[0].mxu0 %v1739
        %v1823 = vpop.f32.mrb[0].mxu0
        %v1824 = vadd.f32 0.0, %v1823
        %v1825 = vpop.f32.mrb[0].mxu0
        %v1826 = vpop.f32.mrb[0].mxu0
        %v1827 = vpop.f32.mrb[0].mxu0
        %1828 = vdwg.mxu0
        %v1829 = vadd.f32 %v1721, %v1824
        %s1830 = scalar_lea.vmem %s3, 640
        %v1831 = vld [vmem:[%s1830] sm:$0xf]
        %v1832 = vld [vmem:[%s1830 + $0x4] sm:$0xf]
        %v1833 = vld [vmem:[%s1830 + $0x8] sm:$0xf]
        %v1834 = vld [vmem:[%s1830 + $0xc] sm:$0xf]
        %v1835 = vld [vmem:[%s1830 + $0x10] sm:$0xf]
        %v1836 = vld [vmem:[%s1830 + $0x14] sm:$0xf]
        %v1837 = vld [vmem:[%s1830 + $0x18] sm:$0xf]
        %v1838 = vld [vmem:[%s1830 + $0x1c] sm:$0xf]
        %v1839 = vld [vmem:[%s1830 + $0x20] sm:$0xf]
        %v1840 = vld [vmem:[%s1830 + $0x24] sm:$0xf]
        %v1841 = vld [vmem:[%s1830 + $0x28] sm:$0xf]
        %v1842 = vld [vmem:[%s1830 + $0x2c] sm:$0xf]
        %v1843 = vld [vmem:[%s1830 + $0x30] sm:$0xf]
        %v1844 = vld [vmem:[%s1830 + $0x34] sm:$0xf]
        %v1845 = vld [vmem:[%s1830 + $0x38] sm:$0xf]
        %v1846 = vld [vmem:[%s1830 + $0x3c] sm:$0xf]
        %v1847 = vrot.slane %v750, 5
        %v1865 = vunpack.c.l.b16 %v1831
        %v1866 = vunpack.c.l.b16 %v1832
        %v1867 = vunpack.c.l.b16 %v1833
        %v1868 = vunpack.c.l.b16 %v1834
        %v1869 = vunpack.c.l.b16 %v1835
        %v1870 = vunpack.c.l.b16 %v1836
        %v1871 = vunpack.c.l.b16 %v1837
        %v1872 = vunpack.c.l.b16 %v1838
        %v1873 = vunpack.c.l.b16 %v1839
        %v1874 = vunpack.c.l.b16 %v1840
        %v1875 = vunpack.c.l.b16 %v1841
        %v1876 = vunpack.c.l.b16 %v1842
        %v1877 = vunpack.c.l.b16 %v1843
        %v1878 = vunpack.c.l.b16 %v1844
        %v1879 = vunpack.c.l.b16 %v1845
        %v1880 = vunpack.c.l.b16 %v1846
        %v1881 = vpack.c.b16 %v1866, %v1865
        %v1882 = vpack.c.b16 %v1868, %v1867
        %v1883 = vpack.c.b16 %v1870, %v1869
        %v1884 = vpack.c.b16 %v1872, %v1871
        %v1885 = vpack.c.b16 %v1874, %v1873
        %v1886 = vpack.c.b16 %v1876, %v1875
        %v1887 = vpack.c.b16 %v1878, %v1877
        %v1888 = vpack.c.b16 %v1880, %v1879
        %1897 = vmatprep.subr.bf16.mxu0 0
        %1898 = vmatpush1.bf16.msra.mxu0 %v1881
        %1899 = vmatprep.subr.bf16.mxu0 0
        %1900 = vmatpush1.bf16.msra.mxu0 %v1882
        %1901 = vmatprep.subr.bf16.mxu0 0
        %1902 = vmatpush1.bf16.msra.mxu0 %v1883
        %1903 = vmatprep.subr.bf16.mxu0 0
        %1904 = vmatpush1.bf16.msra.mxu0 %v1884
        %1905 = vmatprep.subr.bf16.mxu0 0
        %1906 = vmatpush1.bf16.msra.mxu0 %v1885
        %1907 = vmatprep.subr.bf16.mxu0 0
        %1908 = vmatpush1.bf16.msra.mxu0 %v1886
        %1909 = vmatprep.subr.bf16.mxu0 0
        %1910 = vmatpush1.bf16.msra.mxu0 %v1887
        %1911 = vmatprep.subr.bf16.mxu0 0
        %1912 = vmatpush1.bf16.msra.mxu0 %v1888
        %1913 = vmatprep.subr.bf16.mxu0 0
        %1914 = vmatpush1.bf16.msra.mxu0 0
        %1915 = vmatprep.subr.bf16.mxu0 0
        %1916 = vmatpush1.bf16.msra.mxu0 0
        %1917 = vmatprep.subr.bf16.mxu0 0
        %1918 = vmatpush1.bf16.msra.mxu0 0
        %1919 = vmatprep.subr.bf16.mxu0 0
        %1920 = vmatpush1.bf16.msra.mxu0 0
        %1921 = vmatprep.subr.bf16.mxu0 0
        %1922 = vmatpush1.bf16.msra.mxu0 0
        %1923 = vmatprep.subr.bf16.mxu0 0
        %1924 = vmatpush1.bf16.msra.mxu0 0
        %1925 = vmatprep.subr.bf16.mxu0 0
        %1926 = vmatpush1.bf16.msra.mxu0 0
        %1927 = vmatprep.subr.bf16.mxu0 0
        %1928 = vmatpush1.bf16.msra.mxu0 0
        %1929 = vmatprep.mubr.bf16.mxu0 0
        %1930 = vmatmul.mubr.bf16.gmra.mrb[0].mxu0 %v1847
        %v1931 = vpop.f32.mrb[0].mxu0
        %v1932 = vadd.f32 0.0, %v1931
        %v1933 = vpop.f32.mrb[0].mxu0
        %v1934 = vpop.f32.mrb[0].mxu0
        %v1935 = vpop.f32.mrb[0].mxu0
        %1936 = vdwg.mxu0
        %v1937 = vadd.f32 %v1829, %v1932
        %s1938 = scalar_lea.vmem %s3, 704
        %v1939 = vld [vmem:[%s1938] sm:$0xf]
        %v1940 = vld [vmem:[%s1938 + $0x4] sm:$0xf]
        %v1941 = vld [vmem:[%s1938 + $0x8] sm:$0xf]
        %v1942 = vld [vmem:[%s1938 + $0xc] sm:$0xf]
        %v1943 = vld [vmem:[%s1938 + $0x10] sm:$0xf]
        %v1944 = vld [vmem:[%s1938 + $0x14] sm:$0xf]
        %v1945 = vld [vmem:[%s1938 + $0x18] sm:$0xf]
        %v1946 = vld [vmem:[%s1938 + $0x1c] sm:$0xf]
        %v1947 = vld [vmem:[%s1938 + $0x20] sm:$0xf]
        %v1948 = vld [vmem:[%s1938 + $0x24] sm:$0xf]
        %v1949 = vld [vmem:[%s1938 + $0x28] sm:$0xf]
        %v1950 = vld [vmem:[%s1938 + $0x2c] sm:$0xf]
        %v1951 = vld [vmem:[%s1938 + $0x30] sm:$0xf]
        %v1952 = vld [vmem:[%s1938 + $0x34] sm:$0xf]
        %v1953 = vld [vmem:[%s1938 + $0x38] sm:$0xf]
        %v1954 = vld [vmem:[%s1938 + $0x3c] sm:$0xf]
        %v1955 = vrot.slane %v786, 5
        %v1973 = vunpack.c.l.b16 %v1939
        %v1974 = vunpack.c.l.b16 %v1940
        %v1975 = vunpack.c.l.b16 %v1941
        %v1976 = vunpack.c.l.b16 %v1942
        %v1977 = vunpack.c.l.b16 %v1943
        %v1978 = vunpack.c.l.b16 %v1944
        %v1979 = vunpack.c.l.b16 %v1945
        %v1980 = vunpack.c.l.b16 %v1946
        %v1981 = vunpack.c.l.b16 %v1947
        %v1982 = vunpack.c.l.b16 %v1948
        %v1983 = vunpack.c.l.b16 %v1949
        %v1984 = vunpack.c.l.b16 %v1950
        %v1985 = vunpack.c.l.b16 %v1951
        %v1986 = vunpack.c.l.b16 %v1952
        %v1987 = vunpack.c.l.b16 %v1953
        %v1988 = vunpack.c.l.b16 %v1954
        %v1989 = vpack.c.b16 %v1974, %v1973
        %v1990 = vpack.c.b16 %v1976, %v1975
        %v1991 = vpack.c.b16 %v1978, %v1977
        %v1992 = vpack.c.b16 %v1980, %v1979
        %v1993 = vpack.c.b16 %v1982, %v1981
        %v1994 = vpack.c.b16 %v1984, %v1983
        %v1995 = vpack.c.b16 %v1986, %v1985
        %v1996 = vpack.c.b16 %v1988, %v1987
        %2005 = vmatprep.subr.bf16.mxu0 0
        %2006 = vmatpush1.bf16.msra.mxu0 %v1989
        %2007 = vmatprep.subr.bf16.mxu0 0
        %2008 = vmatpush1.bf16.msra.mxu0 %v1990
        %2009 = vmatprep.subr.bf16.mxu0 0
        %2010 = vmatpush1.bf16.msra.mxu0 %v1991
        %2011 = vmatprep.subr.bf16.mxu0 0
        %2012 = vmatpush1.bf16.msra.mxu0 %v1992
        %2013 = vmatprep.subr.bf16.mxu0 0
        %2014 = vmatpush1.bf16.msra.mxu0 %v1993
        %2015 = vmatprep.subr.bf16.mxu0 0
        %2016 = vmatpush1.bf16.msra.mxu0 %v1994
        %2017 = vmatprep.subr.bf16.mxu0 0
        %2018 = vmatpush1.bf16.msra.mxu0 %v1995
        %2019 = vmatprep.subr.bf16.mxu0 0
        %2020 = vmatpush1.bf16.msra.mxu0 %v1996
        %2021 = vmatprep.subr.bf16.mxu0 0
        %2022 = vmatpush1.bf16.msra.mxu0 0
        %2023 = vmatprep.subr.bf16.mxu0 0
        %2024 = vmatpush1.bf16.msra.mxu0 0
        %2025 = vmatprep.subr.bf16.mxu0 0
        %2026 = vmatpush1.bf16.msra.mxu0 0
        %2027 = vmatprep.subr.bf16.mxu0 0
        %2028 = vmatpush1.bf16.msra.mxu0 0
        %2029 = vmatprep.subr.bf16.mxu0 0
        %2030 = vmatpush1.bf16.msra.mxu0 0
        %2031 = vmatprep.subr.bf16.mxu0 0
        %2032 = vmatpush1.bf16.msra.mxu0 0
        %2033 = vmatprep.subr.bf16.mxu0 0
        %2034 = vmatpush1.bf16.msra.mxu0 0
        %2035 = vmatprep.subr.bf16.mxu0 0
        %2036 = vmatpush1.bf16.msra.mxu0 0
        %2037 = vmatprep.mubr.bf16.mxu0 0
        %2038 = vmatmul.mubr.bf16.gmra.mrb[0].mxu0 %v1955
        %v2039 = vpop.f32.mrb[0].mxu0
        %v2040 = vadd.f32 0.0, %v2039
        %v2041 = vpop.f32.mrb[0].mxu0
        %v2042 = vpop.f32.mrb[0].mxu0
        %v2043 = vpop.f32.mrb[0].mxu0
        %2044 = vdwg.mxu0
        %v2045 = vadd.f32 %v1937, %v2040
        %s2046 = scalar_lea.vmem %s3, 768
        %v2047 = vld [vmem:[%s2046] sm:$0xf]
        %v2048 = vld [vmem:[%s2046 + $0x4] sm:$0xf]
        %v2049 = vld [vmem:[%s2046 + $0x8] sm:$0xf]
        %v2050 = vld [vmem:[%s2046 + $0xc] sm:$0xf]
        %v2051 = vld [vmem:[%s2046 + $0x10] sm:$0xf]
        %v2052 = vld [vmem:[%s2046 + $0x14] sm:$0xf]
        %v2053 = vld [vmem:[%s2046 + $0x18] sm:$0xf]
        %v2054 = vld [vmem:[%s2046 + $0x1c] sm:$0xf]
        %v2055 = vld [vmem:[%s2046 + $0x20] sm:$0xf]
        %v2056 = vld [vmem:[%s2046 + $0x24] sm:$0xf]
        %v2057 = vld [vmem:[%s2046 + $0x28] sm:$0xf]
        %v2058 = vld [vmem:[%s2046 + $0x2c] sm:$0xf]
        %v2059 = vld [vmem:[%s2046 + $0x30] sm:$0xf]
        %v2060 = vld [vmem:[%s2046 + $0x34] sm:$0xf]
        %v2061 = vld [vmem:[%s2046 + $0x38] sm:$0xf]
        %v2062 = vld [vmem:[%s2046 + $0x3c] sm:$0xf]
        %v2063 = vrot.slane %v750, 6
        %v2081 = vunpack.c.l.b16 %v2047
        %v2082 = vunpack.c.l.b16 %v2048
        %v2083 = vunpack.c.l.b16 %v2049
        %v2084 = vunpack.c.l.b16 %v2050
        %v2085 = vunpack.c.l.b16 %v2051
        %v2086 = vunpack.c.l.b16 %v2052
        %v2087 = vunpack.c.l.b16 %v2053
        %v2088 = vunpack.c.l.b16 %v2054
        %v2089 = vunpack.c.l.b16 %v2055
        %v2090 = vunpack.c.l.b16 %v2056
        %v2091 = vunpack.c.l.b16 %v2057
        %v2092 = vunpack.c.l.b16 %v2058
        %v2093 = vunpack.c.l.b16 %v2059
        %v2094 = vunpack.c.l.b16 %v2060
        %v2095 = vunpack.c.l.b16 %v2061
        %v2096 = vunpack.c.l.b16 %v2062
        %v2097 = vpack.c.b16 %v2082, %v2081
        %v2098 = vpack.c.b16 %v2084, %v2083
        %v2099 = vpack.c.b16 %v2086, %v2085
        %v2100 = vpack.c.b16 %v2088, %v2087
        %v2101 = vpack.c.b16 %v2090, %v2089
        %v2102 = vpack.c.b16 %v2092, %v2091
        %v2103 = vpack.c.b16 %v2094, %v2093
        %v2104 = vpack.c.b16 %v2096, %v2095
        %2113 = vmatprep.subr.bf16.mxu0 0
        %2114 = vmatpush1.bf16.msra.mxu0 %v2097
        %2115 = vmatprep.subr.bf16.mxu0 0
        %2116 = vmatpush1.bf16.msra.mxu0 %v2098
        %2117 = vmatprep.subr.bf16.mxu0 0
        %2118 = vmatpush1.bf16.msra.mxu0 %v2099
        %2119 = vmatprep.subr.bf16.mxu0 0
        %2120 = vmatpush1.bf16.msra.mxu0 %v2100
        %2121 = vmatprep.subr.bf16.mxu0 0
        %2122 = vmatpush1.bf16.msra.mxu0 %v2101
        %2123 = vmatprep.subr.bf16.mxu0 0
        %2124 = vmatpush1.bf16.msra.mxu0 %v2102
        %2125 = vmatprep.subr.bf16.mxu0 0
        %2126 = vmatpush1.bf16.msra.mxu0 %v2103
        %2127 = vmatprep.subr.bf16.mxu0 0
        %2128 = vmatpush1.bf16.msra.mxu0 %v2104
        %2129 = vmatprep.subr.bf16.mxu0 0
        %2130 = vmatpush1.bf16.msra.mxu0 0
        %2131 = vmatprep.subr.bf16.mxu0 0
        %2132 = vmatpush1.bf16.msra.mxu0 0
        %2133 = vmatprep.subr.bf16.mxu0 0
        %2134 = vmatpush1.bf16.msra.mxu0 0
        %2135 = vmatprep.subr.bf16.mxu0 0
        %2136 = vmatpush1.bf16.msra.mxu0 0
        %2137 = vmatprep.subr.bf16.mxu0 0
        %2138 = vmatpush1.bf16.msra.mxu0 0
        %2139 = vmatprep.subr.bf16.mxu0 0
        %2140 = vmatpush1.bf16.msra.mxu0 0
        %2141 = vmatprep.subr.bf16.mxu0 0
        %2142 = vmatpush1.bf16.msra.mxu0 0
        %2143 = vmatprep.subr.bf16.mxu0 0
        %2144 = vmatpush1.bf16.msra.mxu0 0
        %2145 = vmatprep.mubr.bf16.mxu0 0
        %2146 = vmatmul.mubr.bf16.gmra.mrb[0].mxu0 %v2063
        %v2147 = vpop.f32.mrb[0].mxu0
        %v2148 = vadd.f32 0.0, %v2147
        %v2149 = vpop.f32.mrb[0].mxu0
        %v2150 = vpop.f32.mrb[0].mxu0
        %v2151 = vpop.f32.mrb[0].mxu0
        %2152 = vdwg.mxu0
        %v2153 = vadd.f32 %v2045, %v2148
        %s2154 = scalar_lea.vmem %s3, 832
        %v2155 = vld [vmem:[%s2154] sm:$0xf]
        %v2156 = vld [vmem:[%s2154 + $0x4] sm:$0xf]
        %v2157 = vld [vmem:[%s2154 + $0x8] sm:$0xf]
        %v2158 = vld [vmem:[%s2154 + $0xc] sm:$0xf]
        %v2159 = vld [vmem:[%s2154 + $0x10] sm:$0xf]
        %v2160 = vld [vmem:[%s2154 + $0x14] sm:$0xf]
        %v2161 = vld [vmem:[%s2154 + $0x18] sm:$0xf]
        %v2162 = vld [vmem:[%s2154 + $0x1c] sm:$0xf]
        %v2163 = vld [vmem:[%s2154 + $0x20] sm:$0xf]
        %v2164 = vld [vmem:[%s2154 + $0x24] sm:$0xf]
        %v2165 = vld [vmem:[%s2154 + $0x28] sm:$0xf]
        %v2166 = vld [vmem:[%s2154 + $0x2c] sm:$0xf]
        %v2167 = vld [vmem:[%s2154 + $0x30] sm:$0xf]
        %v2168 = vld [vmem:[%s2154 + $0x34] sm:$0xf]
        %v2169 = vld [vmem:[%s2154 + $0x38] sm:$0xf]
        %v2170 = vld [vmem:[%s2154 + $0x3c] sm:$0xf]
        %v2171 = vrot.slane %v786, 6
        %v2189 = vunpack.c.l.b16 %v2155
        %v2190 = vunpack.c.l.b16 %v2156
        %v2191 = vunpack.c.l.b16 %v2157
        %v2192 = vunpack.c.l.b16 %v2158
        %v2193 = vunpack.c.l.b16 %v2159
        %v2194 = vunpack.c.l.b16 %v2160
        %v2195 = vunpack.c.l.b16 %v2161
        %v2196 = vunpack.c.l.b16 %v2162
        %v2197 = vunpack.c.l.b16 %v2163
        %v2198 = vunpack.c.l.b16 %v2164
        %v2199 = vunpack.c.l.b16 %v2165
        %v2200 = vunpack.c.l.b16 %v2166
        %v2201 = vunpack.c.l.b16 %v2167
        %v2202 = vunpack.c.l.b16 %v2168
        %v2203 = vunpack.c.l.b16 %v2169
        %v2204 = vunpack.c.l.b16 %v2170
        %v2205 = vpack.c.b16 %v2190, %v2189
        %v2206 = vpack.c.b16 %v2192, %v2191
        %v2207 = vpack.c.b16 %v2194, %v2193
        %v2208 = vpack.c.b16 %v2196, %v2195
        %v2209 = vpack.c.b16 %v2198, %v2197
        %v2210 = vpack.c.b16 %v2200, %v2199
        %v2211 = vpack.c.b16 %v2202, %v2201
        %v2212 = vpack.c.b16 %v2204, %v2203
        %2221 = vmatprep.subr.bf16.mxu0 0
        %2222 = vmatpush1.bf16.msra.mxu0 %v2205
        %2223 = vmatprep.subr.bf16.mxu0 0
        %2224 = vmatpush1.bf16.msra.mxu0 %v2206
        %2225 = vmatprep.subr.bf16.mxu0 0
        %2226 = vmatpush1.bf16.msra.mxu0 %v2207
        %2227 = vmatprep.subr.bf16.mxu0 0
        %2228 = vmatpush1.bf16.msra.mxu0 %v2208
        %2229 = vmatprep.subr.bf16.mxu0 0
        %2230 = vmatpush1.bf16.msra.mxu0 %v2209
        %2231 = vmatprep.subr.bf16.mxu0 0
        %2232 = vmatpush1.bf16.msra.mxu0 %v2210
        %2233 = vmatprep.subr.bf16.mxu0 0
        %2234 = vmatpush1.bf16.msra.mxu0 %v2211
        %2235 = vmatprep.subr.bf16.mxu0 0
        %2236 = vmatpush1.bf16.msra.mxu0 %v2212
        %2237 = vmatprep.subr.bf16.mxu0 0
        %2238 = vmatpush1.bf16.msra.mxu0 0
        %2239 = vmatprep.subr.bf16.mxu0 0
        %2240 = vmatpush1.bf16.msra.mxu0 0
        %2241 = vmatprep.subr.bf16.mxu0 0
        %2242 = vmatpush1.bf16.msra.mxu0 0
        %2243 = vmatprep.subr.bf16.mxu0 0
        %2244 = vmatpush1.bf16.msra.mxu0 0
        %2245 = vmatprep.subr.bf16.mxu0 0
        %2246 = vmatpush1.bf16.msra.mxu0 0
        %2247 = vmatprep.subr.bf16.mxu0 0
        %2248 = vmatpush1.bf16.msra.mxu0 0
        %2249 = vmatprep.subr.bf16.mxu0 0
        %2250 = vmatpush1.bf16.msra.mxu0 0
        %2251 = vmatprep.subr.bf16.mxu0 0
        %2252 = vmatpush1.bf16.msra.mxu0 0
        %2253 = vmatprep.mubr.bf16.mxu0 0
        %2254 = vmatmul.mubr.bf16.gmra.mrb[0].mxu0 %v2171
        %v2255 = vpop.f32.mrb[0].mxu0
        %v2256 = vadd.f32 0.0, %v2255
        %v2257 = vpop.f32.mrb[0].mxu0
        %v2258 = vpop.f32.mrb[0].mxu0
        %v2259 = vpop.f32.mrb[0].mxu0
        %2260 = vdwg.mxu0
        %v2261 = vadd.f32 %v2153, %v2256
        %s2262 = scalar_lea.vmem %s3, 896
        %v2263 = vld [vmem:[%s2262] sm:$0xf]
        %v2264 = vld [vmem:[%s2262 + $0x4] sm:$0xf]
        %v2265 = vld [vmem:[%s2262 + $0x8] sm:$0xf]
        %v2266 = vld [vmem:[%s2262 + $0xc] sm:$0xf]
        %v2267 = vld [vmem:[%s2262 + $0x10] sm:$0xf]
        %v2268 = vld [vmem:[%s2262 + $0x14] sm:$0xf]
        %v2269 = vld [vmem:[%s2262 + $0x18] sm:$0xf]
        %v2270 = vld [vmem:[%s2262 + $0x1c] sm:$0xf]
        %v2271 = vld [vmem:[%s2262 + $0x20] sm:$0xf]
        %v2272 = vld [vmem:[%s2262 + $0x24] sm:$0xf]
        %v2273 = vld [vmem:[%s2262 + $0x28] sm:$0xf]
        %v2274 = vld [vmem:[%s2262 + $0x2c] sm:$0xf]
        %v2275 = vld [vmem:[%s2262 + $0x30] sm:$0xf]
        %v2276 = vld [vmem:[%s2262 + $0x34] sm:$0xf]
        %v2277 = vld [vmem:[%s2262 + $0x38] sm:$0xf]
        %v2278 = vld [vmem:[%s2262 + $0x3c] sm:$0xf]
        %v2279 = vrot.slane %v750, 7
        %v2297 = vunpack.c.l.b16 %v2263
        %v2298 = vunpack.c.l.b16 %v2264
        %v2299 = vunpack.c.l.b16 %v2265
        %v2300 = vunpack.c.l.b16 %v2266
        %v2301 = vunpack.c.l.b16 %v2267
        %v2302 = vunpack.c.l.b16 %v2268
        %v2303 = vunpack.c.l.b16 %v2269
        %v2304 = vunpack.c.l.b16 %v2270
        %v2305 = vunpack.c.l.b16 %v2271
        %v2306 = vunpack.c.l.b16 %v2272
        %v2307 = vunpack.c.l.b16 %v2273
        %v2308 = vunpack.c.l.b16 %v2274
        %v2309 = vunpack.c.l.b16 %v2275
        %v2310 = vunpack.c.l.b16 %v2276
        %v2311 = vunpack.c.l.b16 %v2277
        %v2312 = vunpack.c.l.b16 %v2278
        %v2313 = vpack.c.b16 %v2298, %v2297
        %v2314 = vpack.c.b16 %v2300, %v2299
        %v2315 = vpack.c.b16 %v2302, %v2301
        %v2316 = vpack.c.b16 %v2304, %v2303
        %v2317 = vpack.c.b16 %v2306, %v2305
        %v2318 = vpack.c.b16 %v2308, %v2307
        %v2319 = vpack.c.b16 %v2310, %v2309
        %v2320 = vpack.c.b16 %v2312, %v2311
        %2329 = vmatprep.subr.bf16.mxu0 0
        %2330 = vmatpush1.bf16.msra.mxu0 %v2313
        %2331 = vmatprep.subr.bf16.mxu0 0
        %2332 = vmatpush1.bf16.msra.mxu0 %v2314
        %2333 = vmatprep.subr.bf16.mxu0 0
        %2334 = vmatpush1.bf16.msra.mxu0 %v2315
        %2335 = vmatprep.subr.bf16.mxu0 0
        %2336 = vmatpush1.bf16.msra.mxu0 %v2316
        %2337 = vmatprep.subr.bf16.mxu0 0
        %2338 = vmatpush1.bf16.msra.mxu0 %v2317
        %2339 = vmatprep.subr.bf16.mxu0 0
        %2340 = vmatpush1.bf16.msra.mxu0 %v2318
        %2341 = vmatprep.subr.bf16.mxu0 0
        %2342 = vmatpush1.bf16.msra.mxu0 %v2319
        %2343 = vmatprep.subr.bf16.mxu0 0
        %2344 = vmatpush1.bf16.msra.mxu0 %v2320
        %2345 = vmatprep.subr.bf16.mxu0 0
        %2346 = vmatpush1.bf16.msra.mxu0 0
        %2347 = vmatprep.subr.bf16.mxu0 0
        %2348 = vmatpush1.bf16.msra.mxu0 0
        %2349 = vmatprep.subr.bf16.mxu0 0
        %2350 = vmatpush1.bf16.msra.mxu0 0
        %2351 = vmatprep.subr.bf16.mxu0 0
        %2352 = vmatpush1.bf16.msra.mxu0 0
        %2353 = vmatprep.subr.bf16.mxu0 0
        %2354 = vmatpush1.bf16.msra.mxu0 0
        %2355 = vmatprep.subr.bf16.mxu0 0
        %2356 = vmatpush1.bf16.msra.mxu0 0
        %2357 = vmatprep.subr.bf16.mxu0 0
        %2358 = vmatpush1.bf16.msra.mxu0 0
        %2359 = vmatprep.subr.bf16.mxu0 0
        %2360 = vmatpush1.bf16.msra.mxu0 0
        %2361 = vmatprep.mubr.bf16.mxu0 0
        %2362 = vmatmul.mubr.bf16.gmra.mrb[0].mxu0 %v2279
        %v2363 = vpop.f32.mrb[0].mxu0
        %v2364 = vadd.f32 0.0, %v2363
        %v2365 = vpop.f32.mrb[0].mxu0
        %v2366 = vpop.f32.mrb[0].mxu0
        %v2367 = vpop.f32.mrb[0].mxu0
        %2368 = vdwg.mxu0
        %v2369 = vadd.f32 %v2261, %v2364
        %s2370 = scalar_lea.vmem %s3, 960
        %v2371 = vld [vmem:[%s2370] sm:$0xf]
        %v2372 = vld [vmem:[%s2370 + $0x4] sm:$0xf]
        %v2373 = vld [vmem:[%s2370 + $0x8] sm:$0xf]
        %v2374 = vld [vmem:[%s2370 + $0xc] sm:$0xf]
        %v2375 = vld [vmem:[%s2370 + $0x10] sm:$0xf]
        %v2376 = vld [vmem:[%s2370 + $0x14] sm:$0xf]
        %v2377 = vld [vmem:[%s2370 + $0x18] sm:$0xf]
        %v2378 = vld [vmem:[%s2370 + $0x1c] sm:$0xf]
        %v2379 = vld [vmem:[%s2370 + $0x20] sm:$0xf]
        %v2380 = vld [vmem:[%s2370 + $0x24] sm:$0xf]
        %v2381 = vld [vmem:[%s2370 + $0x28] sm:$0xf]
        %v2382 = vld [vmem:[%s2370 + $0x2c] sm:$0xf]
        %v2383 = vld [vmem:[%s2370 + $0x30] sm:$0xf]
        %v2384 = vld [vmem:[%s2370 + $0x34] sm:$0xf]
        %v2385 = vld [vmem:[%s2370 + $0x38] sm:$0xf]
        %v2386 = vld [vmem:[%s2370 + $0x3c] sm:$0xf]
        %v2387 = vrot.slane %v786, 7
        %v2405 = vunpack.c.l.b16 %v2371
        %v2406 = vunpack.c.l.b16 %v2372
        %v2407 = vunpack.c.l.b16 %v2373
        %v2408 = vunpack.c.l.b16 %v2374
        %v2409 = vunpack.c.l.b16 %v2375
        %v2410 = vunpack.c.l.b16 %v2376
        %v2411 = vunpack.c.l.b16 %v2377
        %v2412 = vunpack.c.l.b16 %v2378
        %v2413 = vunpack.c.l.b16 %v2379
        %v2414 = vunpack.c.l.b16 %v2380
        %v2415 = vunpack.c.l.b16 %v2381
        %v2416 = vunpack.c.l.b16 %v2382
        %v2417 = vunpack.c.l.b16 %v2383
        %v2418 = vunpack.c.l.b16 %v2384
        %v2419 = vunpack.c.l.b16 %v2385
        %v2420 = vunpack.c.l.b16 %v2386
        %v2421 = vpack.c.b16 %v2406, %v2405
        %v2422 = vpack.c.b16 %v2408, %v2407
        %v2423 = vpack.c.b16 %v2410, %v2409
        %v2424 = vpack.c.b16 %v2412, %v2411
        %v2425 = vpack.c.b16 %v2414, %v2413
        %v2426 = vpack.c.b16 %v2416, %v2415
        %v2427 = vpack.c.b16 %v2418, %v2417
        %v2428 = vpack.c.b16 %v2420, %v2419
        %2437 = vmatprep.subr.bf16.mxu0 0
        %2438 = vmatpush1.bf16.msra.mxu0 %v2421
        %2439 = vmatprep.subr.bf16.mxu0 0
        %2440 = vmatpush1.bf16.msra.mxu0 %v2422
        %2441 = vmatprep.subr.bf16.mxu0 0
        %2442 = vmatpush1.bf16.msra.mxu0 %v2423
        %2443 = vmatprep.subr.bf16.mxu0 0
        %2444 = vmatpush1.bf16.msra.mxu0 %v2424
        %2445 = vmatprep.subr.bf16.mxu0 0
        %2446 = vmatpush1.bf16.msra.mxu0 %v2425
        %2447 = vmatprep.subr.bf16.mxu0 0
        %2448 = vmatpush1.bf16.msra.mxu0 %v2426
        %2449 = vmatprep.subr.bf16.mxu0 0
        %2450 = vmatpush1.bf16.msra.mxu0 %v2427
        %2451 = vmatprep.subr.bf16.mxu0 0
        %2452 = vmatpush1.bf16.msra.mxu0 %v2428
        %2453 = vmatprep.subr.bf16.mxu0 0
        %2454 = vmatpush1.bf16.msra.mxu0 0
        %2455 = vmatprep.subr.bf16.mxu0 0
        %2456 = vmatpush1.bf16.msra.mxu0 0
        %2457 = vmatprep.subr.bf16.mxu0 0
        %2458 = vmatpush1.bf16.msra.mxu0 0
        %2459 = vmatprep.subr.bf16.mxu0 0
        %2460 = vmatpush1.bf16.msra.mxu0 0
        %2461 = vmatprep.subr.bf16.mxu0 0
        %2462 = vmatpush1.bf16.msra.mxu0 0
        %2463 = vmatprep.subr.bf16.mxu0 0
        %2464 = vmatpush1.bf16.msra.mxu0 0
        %2465 = vmatprep.subr.bf16.mxu0 0
        %2466 = vmatpush1.bf16.msra.mxu0 0
        %2467 = vmatprep.subr.bf16.mxu0 0
        %2468 = vmatpush1.bf16.msra.mxu0 0
        %2469 = vmatprep.mubr.bf16.mxu0 0
        %2470 = vmatmul.mubr.bf16.gmra.mrb[0].mxu0 %v2387
        %v2471 = vpop.f32.mrb[0].mxu0
        %v2472 = vadd.f32 0.0, %v2471
        %v2473 = vpop.f32.mrb[0].mxu0
        %v2474 = vpop.f32.mrb[0].mxu0
        %v2475 = vpop.f32.mrb[0].mxu0
        %2476 = vdwg.mxu0
        %v2477 = vadd.f32 %v2369, %v2472
        %s2478 = scalar_lea.vmem %s3, 1024
        %v2479 = vld [vmem:[%s2478] sm:$0xf]
        %v2480 = vld [vmem:[%s2478 + $0x4] sm:$0xf]
        %v2481 = vld [vmem:[%s2478 + $0x8] sm:$0xf]
        %v2482 = vld [vmem:[%s2478 + $0xc] sm:$0xf]
        %v2483 = vld [vmem:[%s2478 + $0x10] sm:$0xf]
        %v2484 = vld [vmem:[%s2478 + $0x14] sm:$0xf]
        %v2485 = vld [vmem:[%s2478 + $0x18] sm:$0xf]
        %v2486 = vld [vmem:[%s2478 + $0x1c] sm:$0xf]
        %v2487 = vld [vmem:[%s2478 + $0x20] sm:$0xf]
        %v2488 = vld [vmem:[%s2478 + $0x24] sm:$0xf]
        %v2489 = vld [vmem:[%s2478 + $0x28] sm:$0xf]
        %v2490 = vld [vmem:[%s2478 + $0x2c] sm:$0xf]
        %v2491 = vld [vmem:[%s2478 + $0x30] sm:$0xf]
        %v2492 = vld [vmem:[%s2478 + $0x34] sm:$0xf]
        %v2493 = vld [vmem:[%s2478 + $0x38] sm:$0xf]
        %v2494 = vld [vmem:[%s2478 + $0x3c] sm:$0xf]
        %v2511 = vunpack.c.l.b16 %v2479
        %v2512 = vunpack.c.l.b16 %v2480
        %v2513 = vunpack.c.l.b16 %v2481
        %v2514 = vunpack.c.l.b16 %v2482
        %v2515 = vunpack.c.l.b16 %v2483
        %v2516 = vunpack.c.l.b16 %v2484
        %v2517 = vunpack.c.l.b16 %v2485
        %v2518 = vunpack.c.l.b16 %v2486
        %v2519 = vunpack.c.l.b16 %v2487
        %v2520 = vunpack.c.l.b16 %v2488
        %v2521 = vunpack.c.l.b16 %v2489
        %v2522 = vunpack.c.l.b16 %v2490
        %v2523 = vunpack.c.l.b16 %v2491
        %v2524 = vunpack.c.l.b16 %v2492
        %v2525 = vunpack.c.l.b16 %v2493
        %v2526 = vunpack.c.l.b16 %v2494
        %v2527 = vpack.c.b16 %v2512, %v2511
        %v2528 = vpack.c.b16 %v2514, %v2513
        %v2529 = vpack.c.b16 %v2516, %v2515
        %v2530 = vpack.c.b16 %v2518, %v2517
        %v2531 = vpack.c.b16 %v2520, %v2519
        %v2532 = vpack.c.b16 %v2522, %v2521
        %v2533 = vpack.c.b16 %v2524, %v2523
        %v2534 = vpack.c.b16 %v2526, %v2525
        %2543 = vmatprep.subr.bf16.mxu0 0
        %2544 = vmatpush1.bf16.msra.mxu0 %v2527
        %2545 = vmatprep.subr.bf16.mxu0 0
        %2546 = vmatpush1.bf16.msra.mxu0 %v2528
        %2547 = vmatprep.subr.bf16.mxu0 0
        %2548 = vmatpush1.bf16.msra.mxu0 %v2529
        %2549 = vmatprep.subr.bf16.mxu0 0
        %2550 = vmatpush1.bf16.msra.mxu0 %v2530
        %2551 = vmatprep.subr.bf16.mxu0 0
        %2552 = vmatpush1.bf16.msra.mxu0 %v2531
        %2553 = vmatprep.subr.bf16.mxu0 0
        %2554 = vmatpush1.bf16.msra.mxu0 %v2532
        %2555 = vmatprep.subr.bf16.mxu0 0
        %2556 = vmatpush1.bf16.msra.mxu0 %v2533
        %2557 = vmatprep.subr.bf16.mxu0 0
        %2558 = vmatpush1.bf16.msra.mxu0 %v2534
        %2559 = vmatprep.subr.bf16.mxu0 0
        %2560 = vmatpush1.bf16.msra.mxu0 0
        %2561 = vmatprep.subr.bf16.mxu0 0
        %2562 = vmatpush1.bf16.msra.mxu0 0
        %2563 = vmatprep.subr.bf16.mxu0 0
        %2564 = vmatpush1.bf16.msra.mxu0 0
        %2565 = vmatprep.subr.bf16.mxu0 0
        %2566 = vmatpush1.bf16.msra.mxu0 0
        %2567 = vmatprep.subr.bf16.mxu0 0
        %2568 = vmatpush1.bf16.msra.mxu0 0
        %2569 = vmatprep.subr.bf16.mxu0 0
        %2570 = vmatpush1.bf16.msra.mxu0 0
        %2571 = vmatprep.subr.bf16.mxu0 0
        %2572 = vmatpush1.bf16.msra.mxu0 0
        %2573 = vmatprep.subr.bf16.mxu0 0
        %2574 = vmatpush1.bf16.msra.mxu0 0
        %2575 = vmatprep.mubr.bf16.mxu0 0
        %2576 = vmatmul.mubr.bf16.gmra.mrb[0].mxu0 %v751
        %v2577 = vpop.f32.mrb[0].mxu0
        %v2578 = vadd.f32 0.0, %v2577
        %v2579 = vpop.f32.mrb[0].mxu0
        %v2580 = vpop.f32.mrb[0].mxu0
        %v2581 = vpop.f32.mrb[0].mxu0
        %2582 = vdwg.mxu0
        %v2583 = vadd.f32 %v2477, %v2578
        %s2584 = scalar_lea.vmem %s3, 1088
        %v2585 = vld [vmem:[%s2584] sm:$0xf]
        %v2586 = vld [vmem:[%s2584 + $0x4] sm:$0xf]
        %v2587 = vld [vmem:[%s2584 + $0x8] sm:$0xf]
        %v2588 = vld [vmem:[%s2584 + $0xc] sm:$0xf]
        %v2589 = vld [vmem:[%s2584 + $0x10] sm:$0xf]
        %v2590 = vld [vmem:[%s2584 + $0x14] sm:$0xf]
        %v2591 = vld [vmem:[%s2584 + $0x18] sm:$0xf]
        %v2592 = vld [vmem:[%s2584 + $0x1c] sm:$0xf]
        %v2593 = vld [vmem:[%s2584 + $0x20] sm:$0xf]
        %v2594 = vld [vmem:[%s2584 + $0x24] sm:$0xf]
        %v2595 = vld [vmem:[%s2584 + $0x28] sm:$0xf]
        %v2596 = vld [vmem:[%s2584 + $0x2c] sm:$0xf]
        %v2597 = vld [vmem:[%s2584 + $0x30] sm:$0xf]
        %v2598 = vld [vmem:[%s2584 + $0x34] sm:$0xf]
        %v2599 = vld [vmem:[%s2584 + $0x38] sm:$0xf]
        %v2600 = vld [vmem:[%s2584 + $0x3c] sm:$0xf]
        %v2602 = vshrl.u32 %v751, 16
        %v2621 = vunpack.c.l.b16 %v2585
        %v2622 = vunpack.c.l.b16 %v2586
        %v2623 = vunpack.c.l.b16 %v2587
        %v2624 = vunpack.c.l.b16 %v2588
        %v2625 = vunpack.c.l.b16 %v2589
        %v2626 = vunpack.c.l.b16 %v2590
        %v2627 = vunpack.c.l.b16 %v2591
        %v2628 = vunpack.c.l.b16 %v2592
        %v2629 = vunpack.c.l.b16 %v2593
        %v2630 = vunpack.c.l.b16 %v2594
        %v2631 = vunpack.c.l.b16 %v2595
        %v2632 = vunpack.c.l.b16 %v2596
        %v2633 = vunpack.c.l.b16 %v2597
        %v2634 = vunpack.c.l.b16 %v2598
        %v2635 = vunpack.c.l.b16 %v2599
        %v2636 = vunpack.c.l.b16 %v2600
        %v2637 = vpack.c.b16 %v2622, %v2621
        %v2638 = vpack.c.b16 %v2624, %v2623
        %v2639 = vpack.c.b16 %v2626, %v2625
        %v2640 = vpack.c.b16 %v2628, %v2627
        %v2641 = vpack.c.b16 %v2630, %v2629
        %v2642 = vpack.c.b16 %v2632, %v2631
        %v2643 = vpack.c.b16 %v2634, %v2633
        %v2644 = vpack.c.b16 %v2636, %v2635
        %2653 = vmatprep.subr.bf16.mxu0 0
        %2654 = vmatpush1.bf16.msra.mxu0 %v2637
        %2655 = vmatprep.subr.bf16.mxu0 0
        %2656 = vmatpush1.bf16.msra.mxu0 %v2638
        %2657 = vmatprep.subr.bf16.mxu0 0
        %2658 = vmatpush1.bf16.msra.mxu0 %v2639
        %2659 = vmatprep.subr.bf16.mxu0 0
        %2660 = vmatpush1.bf16.msra.mxu0 %v2640
        %2661 = vmatprep.subr.bf16.mxu0 0
        %2662 = vmatpush1.bf16.msra.mxu0 %v2641
        %2663 = vmatprep.subr.bf16.mxu0 0
        %2664 = vmatpush1.bf16.msra.mxu0 %v2642
        %2665 = vmatprep.subr.bf16.mxu0 0
        %2666 = vmatpush1.bf16.msra.mxu0 %v2643
        %2667 = vmatprep.subr.bf16.mxu0 0
        %2668 = vmatpush1.bf16.msra.mxu0 %v2644
        %2669 = vmatprep.subr.bf16.mxu0 0
        %2670 = vmatpush1.bf16.msra.mxu0 0
        %2671 = vmatprep.subr.bf16.mxu0 0
        %2672 = vmatpush1.bf16.msra.mxu0 0
        %2673 = vmatprep.subr.bf16.mxu0 0
        %2674 = vmatpush1.bf16.msra.mxu0 0
        %2675 = vmatprep.subr.bf16.mxu0 0
        %2676 = vmatpush1.bf16.msra.mxu0 0
        %2677 = vmatprep.subr.bf16.mxu0 0
        %2678 = vmatpush1.bf16.msra.mxu0 0
        %2679 = vmatprep.subr.bf16.mxu0 0
        %2680 = vmatpush1.bf16.msra.mxu0 0
        %2681 = vmatprep.subr.bf16.mxu0 0
        %2682 = vmatpush1.bf16.msra.mxu0 0
        %2683 = vmatprep.subr.bf16.mxu0 0
        %2684 = vmatpush1.bf16.msra.mxu0 0
        %2685 = vmatprep.mubr.bf16.mxu0 0
        %2686 = vmatmul.mubr.bf16.gmra.mrb[0].mxu0 %v2602
        %v2687 = vpop.f32.mrb[0].mxu0
        %v2688 = vadd.f32 0.0, %v2687
        %v2689 = vpop.f32.mrb[0].mxu0
        %v2690 = vpop.f32.mrb[0].mxu0
        %v2691 = vpop.f32.mrb[0].mxu0
        %2692 = vdwg.mxu0
        %v2693 = vadd.f32 %v2583, %v2688
        %s2694 = scalar_lea.vmem %s3, 1152
        %v2695 = vld [vmem:[%s2694] sm:$0xf]
        %v2696 = vld [vmem:[%s2694 + $0x4] sm:$0xf]
        %v2697 = vld [vmem:[%s2694 + $0x8] sm:$0xf]
        %v2698 = vld [vmem:[%s2694 + $0xc] sm:$0xf]
        %v2699 = vld [vmem:[%s2694 + $0x10] sm:$0xf]
        %v2700 = vld [vmem:[%s2694 + $0x14] sm:$0xf]
        %v2701 = vld [vmem:[%s2694 + $0x18] sm:$0xf]
        %v2702 = vld [vmem:[%s2694 + $0x1c] sm:$0xf]
        %v2703 = vld [vmem:[%s2694 + $0x20] sm:$0xf]
        %v2704 = vld [vmem:[%s2694 + $0x24] sm:$0xf]
        %v2705 = vld [vmem:[%s2694 + $0x28] sm:$0xf]
        %v2706 = vld [vmem:[%s2694 + $0x2c] sm:$0xf]
        %v2707 = vld [vmem:[%s2694 + $0x30] sm:$0xf]
        %v2708 = vld [vmem:[%s2694 + $0x34] sm:$0xf]
        %v2709 = vld [vmem:[%s2694 + $0x38] sm:$0xf]
        %v2710 = vld [vmem:[%s2694 + $0x3c] sm:$0xf]
        %v2712 = vrot.slane %v751, 1
        %v2730 = vunpack.c.l.b16 %v2695
        %v2731 = vunpack.c.l.b16 %v2696
        %v2732 = vunpack.c.l.b16 %v2697
        %v2733 = vunpack.c.l.b16 %v2698
        %v2734 = vunpack.c.l.b16 %v2699
        %v2735 = vunpack.c.l.b16 %v2700
        %v2736 = vunpack.c.l.b16 %v2701
        %v2737 = vunpack.c.l.b16 %v2702
        %v2738 = vunpack.c.l.b16 %v2703
        %v2739 = vunpack.c.l.b16 %v2704
        %v2740 = vunpack.c.l.b16 %v2705
        %v2741 = vunpack.c.l.b16 %v2706
        %v2742 = vunpack.c.l.b16 %v2707
        %v2743 = vunpack.c.l.b16 %v2708
        %v2744 = vunpack.c.l.b16 %v2709
        %v2745 = vunpack.c.l.b16 %v2710
        %v2746 = vpack.c.b16 %v2731, %v2730
        %v2747 = vpack.c.b16 %v2733, %v2732
        %v2748 = vpack.c.b16 %v2735, %v2734
        %v2749 = vpack.c.b16 %v2737, %v2736
        %v2750 = vpack.c.b16 %v2739, %v2738
        %v2751 = vpack.c.b16 %v2741, %v2740
        %v2752 = vpack.c.b16 %v2743, %v2742
        %v2753 = vpack.c.b16 %v2745, %v2744
        %2762 = vmatprep.subr.bf16.mxu0 0
        %2763 = vmatpush1.bf16.msra.mxu0 %v2746
        %2764 = vmatprep.subr.bf16.mxu0 0
        %2765 = vmatpush1.bf16.msra.mxu0 %v2747
        %2766 = vmatprep.subr.bf16.mxu0 0
        %2767 = vmatpush1.bf16.msra.mxu0 %v2748
        %2768 = vmatprep.subr.bf16.mxu0 0
        %2769 = vmatpush1.bf16.msra.mxu0 %v2749
        %2770 = vmatprep.subr.bf16.mxu0 0
        %2771 = vmatpush1.bf16.msra.mxu0 %v2750
        %2772 = vmatprep.subr.bf16.mxu0 0
        %2773 = vmatpush1.bf16.msra.mxu0 %v2751
        %2774 = vmatprep.subr.bf16.mxu0 0
        %2775 = vmatpush1.bf16.msra.mxu0 %v2752
        %2776 = vmatprep.subr.bf16.mxu0 0
        %2777 = vmatpush1.bf16.msra.mxu0 %v2753
        %2778 = vmatprep.subr.bf16.mxu0 0
        %2779 = vmatpush1.bf16.msra.mxu0 0
        %2780 = vmatprep.subr.bf16.mxu0 0
        %2781 = vmatpush1.bf16.msra.mxu0 0
        %2782 = vmatprep.subr.bf16.mxu0 0
        %2783 = vmatpush1.bf16.msra.mxu0 0
        %2784 = vmatprep.subr.bf16.mxu0 0
        %2785 = vmatpush1.bf16.msra.mxu0 0
        %2786 = vmatprep.subr.bf16.mxu0 0
        %2787 = vmatpush1.bf16.msra.mxu0 0
        %2788 = vmatprep.subr.bf16.mxu0 0
        %2789 = vmatpush1.bf16.msra.mxu0 0
        %2790 = vmatprep.subr.bf16.mxu0 0
        %2791 = vmatpush1.bf16.msra.mxu0 0
        %2792 = vmatprep.subr.bf16.mxu0 0
        %2793 = vmatpush1.bf16.msra.mxu0 0
        %2794 = vmatprep.mubr.bf16.mxu0 0
        %2795 = vmatmul.mubr.bf16.gmra.mrb[0].mxu0 %v2712
        %v2796 = vpop.f32.mrb[0].mxu0
        %v2797 = vadd.f32 0.0, %v2796
        %v2798 = vpop.f32.mrb[0].mxu0
        %v2799 = vpop.f32.mrb[0].mxu0
        %v2800 = vpop.f32.mrb[0].mxu0
        %2801 = vdwg.mxu0
        %v2802 = vadd.f32 %v2693, %v2797
        %s2803 = scalar_lea.vmem %s3, 1216
        %v2804 = vld [vmem:[%s2803] sm:$0xf]
        %v2805 = vld [vmem:[%s2803 + $0x4] sm:$0xf]
        %v2806 = vld [vmem:[%s2803 + $0x8] sm:$0xf]
        %v2807 = vld [vmem:[%s2803 + $0xc] sm:$0xf]
        %v2808 = vld [vmem:[%s2803 + $0x10] sm:$0xf]
        %v2809 = vld [vmem:[%s2803 + $0x14] sm:$0xf]
        %v2810 = vld [vmem:[%s2803 + $0x18] sm:$0xf]
        %v2811 = vld [vmem:[%s2803 + $0x1c] sm:$0xf]
        %v2812 = vld [vmem:[%s2803 + $0x20] sm:$0xf]
        %v2813 = vld [vmem:[%s2803 + $0x24] sm:$0xf]
        %v2814 = vld [vmem:[%s2803 + $0x28] sm:$0xf]
        %v2815 = vld [vmem:[%s2803 + $0x2c] sm:$0xf]
        %v2816 = vld [vmem:[%s2803 + $0x30] sm:$0xf]
        %v2817 = vld [vmem:[%s2803 + $0x34] sm:$0xf]
        %v2818 = vld [vmem:[%s2803 + $0x38] sm:$0xf]
        %v2819 = vld [vmem:[%s2803 + $0x3c] sm:$0xf]
        %v2820 = vrot.slane %v2602, 1
        %v2838 = vunpack.c.l.b16 %v2804
        %v2839 = vunpack.c.l.b16 %v2805
        %v2840 = vunpack.c.l.b16 %v2806
        %v2841 = vunpack.c.l.b16 %v2807
        %v2842 = vunpack.c.l.b16 %v2808
        %v2843 = vunpack.c.l.b16 %v2809
        %v2844 = vunpack.c.l.b16 %v2810
        %v2845 = vunpack.c.l.b16 %v2811
        %v2846 = vunpack.c.l.b16 %v2812
        %v2847 = vunpack.c.l.b16 %v2813
        %v2848 = vunpack.c.l.b16 %v2814
        %v2849 = vunpack.c.l.b16 %v2815
        %v2850 = vunpack.c.l.b16 %v2816
        %v2851 = vunpack.c.l.b16 %v2817
        %v2852 = vunpack.c.l.b16 %v2818
        %v2853 = vunpack.c.l.b16 %v2819
        %v2854 = vpack.c.b16 %v2839, %v2838
        %v2855 = vpack.c.b16 %v2841, %v2840
        %v2856 = vpack.c.b16 %v2843, %v2842
        %v2857 = vpack.c.b16 %v2845, %v2844
        %v2858 = vpack.c.b16 %v2847, %v2846
        %v2859 = vpack.c.b16 %v2849, %v2848
        %v2860 = vpack.c.b16 %v2851, %v2850
        %v2861 = vpack.c.b16 %v2853, %v2852
        %2870 = vmatprep.subr.bf16.mxu0 0
        %2871 = vmatpush1.bf16.msra.mxu0 %v2854
        %2872 = vmatprep.subr.bf16.mxu0 0
        %2873 = vmatpush1.bf16.msra.mxu0 %v2855
        %2874 = vmatprep.subr.bf16.mxu0 0
        %2875 = vmatpush1.bf16.msra.mxu0 %v2856
        %2876 = vmatprep.subr.bf16.mxu0 0
        %2877 = vmatpush1.bf16.msra.mxu0 %v2857
        %2878 = vmatprep.subr.bf16.mxu0 0
        %2879 = vmatpush1.bf16.msra.mxu0 %v2858
        %2880 = vmatprep.subr.bf16.mxu0 0
        %2881 = vmatpush1.bf16.msra.mxu0 %v2859
        %2882 = vmatprep.subr.bf16.mxu0 0
        %2883 = vmatpush1.bf16.msra.mxu0 %v2860
        %2884 = vmatprep.subr.bf16.mxu0 0
        %2885 = vmatpush1.bf16.msra.mxu0 %v2861
        %2886 = vmatprep.subr.bf16.mxu0 0
        %2887 = vmatpush1.bf16.msra.mxu0 0
        %2888 = vmatprep.subr.bf16.mxu0 0
        %2889 = vmatpush1.bf16.msra.mxu0 0
        %2890 = vmatprep.subr.bf16.mxu0 0
        %2891 = vmatpush1.bf16.msra.mxu0 0
        %2892 = vmatprep.subr.bf16.mxu0 0
        %2893 = vmatpush1.bf16.msra.mxu0 0
        %2894 = vmatprep.subr.bf16.mxu0 0
        %2895 = vmatpush1.bf16.msra.mxu0 0
        %2896 = vmatprep.subr.bf16.mxu0 0
        %2897 = vmatpush1.bf16.msra.mxu0 0
        %2898 = vmatprep.subr.bf16.mxu0 0
        %2899 = vmatpush1.bf16.msra.mxu0 0
        %2900 = vmatprep.subr.bf16.mxu0 0
        %2901 = vmatpush1.bf16.msra.mxu0 0
        %2902 = vmatprep.mubr.bf16.mxu0 0
        %2903 = vmatmul.mubr.bf16.gmra.mrb[0].mxu0 %v2820
        %v2904 = vpop.f32.mrb[0].mxu0
        %v2905 = vadd.f32 0.0, %v2904
        %v2906 = vpop.f32.mrb[0].mxu0
        %v2907 = vpop.f32.mrb[0].mxu0
        %v2908 = vpop.f32.mrb[0].mxu0
        %2909 = vdwg.mxu0
        %v2910 = vadd.f32 %v2802, %v2905
        %s2911 = scalar_lea.vmem %s3, 1280
        %v2912 = vld [vmem:[%s2911] sm:$0xf]
        %v2913 = vld [vmem:[%s2911 + $0x4] sm:$0xf]
        %v2914 = vld [vmem:[%s2911 + $0x8] sm:$0xf]
        %v2915 = vld [vmem:[%s2911 + $0xc] sm:$0xf]
        %v2916 = vld [vmem:[%s2911 + $0x10] sm:$0xf]
        %v2917 = vld [vmem:[%s2911 + $0x14] sm:$0xf]
        %v2918 = vld [vmem:[%s2911 + $0x18] sm:$0xf]
        %v2919 = vld [vmem:[%s2911 + $0x1c] sm:$0xf]
        %v2920 = vld [vmem:[%s2911 + $0x20] sm:$0xf]
        %v2921 = vld [vmem:[%s2911 + $0x24] sm:$0xf]
        %v2922 = vld [vmem:[%s2911 + $0x28] sm:$0xf]
        %v2923 = vld [vmem:[%s2911 + $0x2c] sm:$0xf]
        %v2924 = vld [vmem:[%s2911 + $0x30] sm:$0xf]
        %v2925 = vld [vmem:[%s2911 + $0x34] sm:$0xf]
        %v2926 = vld [vmem:[%s2911 + $0x38] sm:$0xf]
        %v2927 = vld [vmem:[%s2911 + $0x3c] sm:$0xf]
        %v2928 = vrot.slane %v751, 2
        %v2946 = vunpack.c.l.b16 %v2912
        %v2947 = vunpack.c.l.b16 %v2913
        %v2948 = vunpack.c.l.b16 %v2914
        %v2949 = vunpack.c.l.b16 %v2915
        %v2950 = vunpack.c.l.b16 %v2916
        %v2951 = vunpack.c.l.b16 %v2917
        %v2952 = vunpack.c.l.b16 %v2918
        %v2953 = vunpack.c.l.b16 %v2919
        %v2954 = vunpack.c.l.b16 %v2920
        %v2955 = vunpack.c.l.b16 %v2921
        %v2956 = vunpack.c.l.b16 %v2922
        %v2957 = vunpack.c.l.b16 %v2923
        %v2958 = vunpack.c.l.b16 %v2924
        %v2959 = vunpack.c.l.b16 %v2925
        %v2960 = vunpack.c.l.b16 %v2926
        %v2961 = vunpack.c.l.b16 %v2927
        %v2962 = vpack.c.b16 %v2947, %v2946
        %v2963 = vpack.c.b16 %v2949, %v2948
        %v2964 = vpack.c.b16 %v2951, %v2950
        %v2965 = vpack.c.b16 %v2953, %v2952
        %v2966 = vpack.c.b16 %v2955, %v2954
        %v2967 = vpack.c.b16 %v2957, %v2956
        %v2968 = vpack.c.b16 %v2959, %v2958
        %v2969 = vpack.c.b16 %v2961, %v2960
        %2978 = vmatprep.subr.bf16.mxu0 0
        %2979 = vmatpush1.bf16.msra.mxu0 %v2962
        %2980 = vmatprep.subr.bf16.mxu0 0
        %2981 = vmatpush1.bf16.msra.mxu0 %v2963
        %2982 = vmatprep.subr.bf16.mxu0 0
        %2983 = vmatpush1.bf16.msra.mxu0 %v2964
        %2984 = vmatprep.subr.bf16.mxu0 0
        %2985 = vmatpush1.bf16.msra.mxu0 %v2965
        %2986 = vmatprep.subr.bf16.mxu0 0
        %2987 = vmatpush1.bf16.msra.mxu0 %v2966
        %2988 = vmatprep.subr.bf16.mxu0 0
        %2989 = vmatpush1.bf16.msra.mxu0 %v2967
        %2990 = vmatprep.subr.bf16.mxu0 0
        %2991 = vmatpush1.bf16.msra.mxu0 %v2968
        %2992 = vmatprep.subr.bf16.mxu0 0
        %2993 = vmatpush1.bf16.msra.mxu0 %v2969
        %2994 = vmatprep.subr.bf16.mxu0 0
        %2995 = vmatpush1.bf16.msra.mxu0 0
        %2996 = vmatprep.subr.bf16.mxu0 0
        %2997 = vmatpush1.bf16.msra.mxu0 0
        %2998 = vmatprep.subr.bf16.mxu0 0
        %2999 = vmatpush1.bf16.msra.mxu0 0
        %3000 = vmatprep.subr.bf16.mxu0 0
        %3001 = vmatpush1.bf16.msra.mxu0 0
        %3002 = vmatprep.subr.bf16.mxu0 0
        %3003 = vmatpush1.bf16.msra.mxu0 0
        %3004 = vmatprep.subr.bf16.mxu0 0
        %3005 = vmatpush1.bf16.msra.mxu0 0
        %3006 = vmatprep.subr.bf16.mxu0 0
        %3007 = vmatpush1.bf16.msra.mxu0 0
        %3008 = vmatprep.subr.bf16.mxu0 0
        %3009 = vmatpush1.bf16.msra.mxu0 0
        %3010 = vmatprep.mubr.bf16.mxu0 0
        %3011 = vmatmul.mubr.bf16.gmra.mrb[0].mxu0 %v2928
        %v3012 = vpop.f32.mrb[0].mxu0
        %v3013 = vadd.f32 0.0, %v3012
        %v3014 = vpop.f32.mrb[0].mxu0
        %v3015 = vpop.f32.mrb[0].mxu0
        %v3016 = vpop.f32.mrb[0].mxu0
        %3017 = vdwg.mxu0
        %v3018 = vadd.f32 %v2910, %v3013
        %s3019 = scalar_lea.vmem %s3, 1344
        %v3020 = vld [vmem:[%s3019] sm:$0xf]
        %v3021 = vld [vmem:[%s3019 + $0x4] sm:$0xf]
        %v3022 = vld [vmem:[%s3019 + $0x8] sm:$0xf]
        %v3023 = vld [vmem:[%s3019 + $0xc] sm:$0xf]
        %v3024 = vld [vmem:[%s3019 + $0x10] sm:$0xf]
        %v3025 = vld [vmem:[%s3019 + $0x14] sm:$0xf]
        %v3026 = vld [vmem:[%s3019 + $0x18] sm:$0xf]
        %v3027 = vld [vmem:[%s3019 + $0x1c] sm:$0xf]
        %v3028 = vld [vmem:[%s3019 + $0x20] sm:$0xf]
        %v3029 = vld [vmem:[%s3019 + $0x24] sm:$0xf]
        %v3030 = vld [vmem:[%s3019 + $0x28] sm:$0xf]
        %v3031 = vld [vmem:[%s3019 + $0x2c] sm:$0xf]
        %v3032 = vld [vmem:[%s3019 + $0x30] sm:$0xf]
        %v3033 = vld [vmem:[%s3019 + $0x34] sm:$0xf]
        %v3034 = vld [vmem:[%s3019 + $0x38] sm:$0xf]
        %v3035 = vld [vmem:[%s3019 + $0x3c] sm:$0xf]
        %v3036 = vrot.slane %v2602, 2
        %v3054 = vunpack.c.l.b16 %v3020
        %v3055 = vunpack.c.l.b16 %v3021
        %v3056 = vunpack.c.l.b16 %v3022
        %v3057 = vunpack.c.l.b16 %v3023
        %v3058 = vunpack.c.l.b16 %v3024
        %v3059 = vunpack.c.l.b16 %v3025
        %v3060 = vunpack.c.l.b16 %v3026
        %v3061 = vunpack.c.l.b16 %v3027
        %v3062 = vunpack.c.l.b16 %v3028
        %v3063 = vunpack.c.l.b16 %v3029
        %v3064 = vunpack.c.l.b16 %v3030
        %v3065 = vunpack.c.l.b16 %v3031
        %v3066 = vunpack.c.l.b16 %v3032
        %v3067 = vunpack.c.l.b16 %v3033
        %v3068 = vunpack.c.l.b16 %v3034
        %v3069 = vunpack.c.l.b16 %v3035
        %v3070 = vpack.c.b16 %v3055, %v3054
        %v3071 = vpack.c.b16 %v3057, %v3056
        %v3072 = vpack.c.b16 %v3059, %v3058
        %v3073 = vpack.c.b16 %v3061, %v3060
        %v3074 = vpack.c.b16 %v3063, %v3062
        %v3075 = vpack.c.b16 %v3065, %v3064
        %v3076 = vpack.c.b16 %v3067, %v3066
        %v3077 = vpack.c.b16 %v3069, %v3068
        %3086 = vmatprep.subr.bf16.mxu0 0
        %3087 = vmatpush1.bf16.msra.mxu0 %v3070
        %3088 = vmatprep.subr.bf16.mxu0 0
        %3089 = vmatpush1.bf16.msra.mxu0 %v3071
        %3090 = vmatprep.subr.bf16.mxu0 0
        %3091 = vmatpush1.bf16.msra.mxu0 %v3072
        %3092 = vmatprep.subr.bf16.mxu0 0
        %3093 = vmatpush1.bf16.msra.mxu0 %v3073
        %3094 = vmatprep.subr.bf16.mxu0 0
        %3095 = vmatpush1.bf16.msra.mxu0 %v3074
        %3096 = vmatprep.subr.bf16.mxu0 0
        %3097 = vmatpush1.bf16.msra.mxu0 %v3075
        %3098 = vmatprep.subr.bf16.mxu0 0
        %3099 = vmatpush1.bf16.msra.mxu0 %v3076
        %3100 = vmatprep.subr.bf16.mxu0 0
        %3101 = vmatpush1.bf16.msra.mxu0 %v3077
        %3102 = vmatprep.subr.bf16.mxu0 0
        %3103 = vmatpush1.bf16.msra.mxu0 0
        %3104 = vmatprep.subr.bf16.mxu0 0
        %3105 = vmatpush1.bf16.msra.mxu0 0
        %3106 = vmatprep.subr.bf16.mxu0 0
        %3107 = vmatpush1.bf16.msra.mxu0 0
        %3108 = vmatprep.subr.bf16.mxu0 0
        %3109 = vmatpush1.bf16.msra.mxu0 0
        %3110 = vmatprep.subr.bf16.mxu0 0
        %3111 = vmatpush1.bf16.msra.mxu0 0
        %3112 = vmatprep.subr.bf16.mxu0 0
        %3113 = vmatpush1.bf16.msra.mxu0 0
        %3114 = vmatprep.subr.bf16.mxu0 0
        %3115 = vmatpush1.bf16.msra.mxu0 0
        %3116 = vmatprep.subr.bf16.mxu0 0
        %3117 = vmatpush1.bf16.msra.mxu0 0
        %3118 = vmatprep.mubr.bf16.mxu0 0
        %3119 = vmatmul.mubr.bf16.gmra.mrb[0].mxu0 %v3036
        %v3120 = vpop.f32.mrb[0].mxu0
        %v3121 = vadd.f32 0.0, %v3120
        %v3122 = vpop.f32.mrb[0].mxu0
        %v3123 = vpop.f32.mrb[0].mxu0
        %v3124 = vpop.f32.mrb[0].mxu0
        %3125 = vdwg.mxu0
        %v3126 = vadd.f32 %v3018, %v3121
        %s3127 = scalar_lea.vmem %s3, 1408
        %v3128 = vld [vmem:[%s3127] sm:$0xf]
        %v3129 = vld [vmem:[%s3127 + $0x4] sm:$0xf]
        %v3130 = vld [vmem:[%s3127 + $0x8] sm:$0xf]
        %v3131 = vld [vmem:[%s3127 + $0xc] sm:$0xf]
        %v3132 = vld [vmem:[%s3127 + $0x10] sm:$0xf]
        %v3133 = vld [vmem:[%s3127 + $0x14] sm:$0xf]
        %v3134 = vld [vmem:[%s3127 + $0x18] sm:$0xf]
        %v3135 = vld [vmem:[%s3127 + $0x1c] sm:$0xf]
        %v3136 = vld [vmem:[%s3127 + $0x20] sm:$0xf]
        %v3137 = vld [vmem:[%s3127 + $0x24] sm:$0xf]
        %v3138 = vld [vmem:[%s3127 + $0x28] sm:$0xf]
        %v3139 = vld [vmem:[%s3127 + $0x2c] sm:$0xf]
        %v3140 = vld [vmem:[%s3127 + $0x30] sm:$0xf]
        %v3141 = vld [vmem:[%s3127 + $0x34] sm:$0xf]
        %v3142 = vld [vmem:[%s3127 + $0x38] sm:$0xf]
        %v3143 = vld [vmem:[%s3127 + $0x3c] sm:$0xf]
        %v3144 = vrot.slane %v751, 3
        %v3162 = vunpack.c.l.b16 %v3128
        %v3163 = vunpack.c.l.b16 %v3129
        %v3164 = vunpack.c.l.b16 %v3130
        %v3165 = vunpack.c.l.b16 %v3131
        %v3166 = vunpack.c.l.b16 %v3132
        %v3167 = vunpack.c.l.b16 %v3133
        %v3168 = vunpack.c.l.b16 %v3134
        %v3169 = vunpack.c.l.b16 %v3135
        %v3170 = vunpack.c.l.b16 %v3136
        %v3171 = vunpack.c.l.b16 %v3137
        %v3172 = vunpack.c.l.b16 %v3138
        %v3173 = vunpack.c.l.b16 %v3139
        %v3174 = vunpack.c.l.b16 %v3140
        %v3175 = vunpack.c.l.b16 %v3141
        %v3176 = vunpack.c.l.b16 %v3142
        %v3177 = vunpack.c.l.b16 %v3143
        %v3178 = vpack.c.b16 %v3163, %v3162
        %v3179 = vpack.c.b16 %v3165, %v3164
        %v3180 = vpack.c.b16 %v3167, %v3166
        %v3181 = vpack.c.b16 %v3169, %v3168
        %v3182 = vpack.c.b16 %v3171, %v3170
        %v3183 = vpack.c.b16 %v3173, %v3172
        %v3184 = vpack.c.b16 %v3175, %v3174
        %v3185 = vpack.c.b16 %v3177, %v3176
        %3194 = vmatprep.subr.bf16.mxu0 0
        %3195 = vmatpush1.bf16.msra.mxu0 %v3178
        %3196 = vmatprep.subr.bf16.mxu0 0
        %3197 = vmatpush1.bf16.msra.mxu0 %v3179
        %3198 = vmatprep.subr.bf16.mxu0 0
        %3199 = vmatpush1.bf16.msra.mxu0 %v3180
        %3200 = vmatprep.subr.bf16.mxu0 0
        %3201 = vmatpush1.bf16.msra.mxu0 %v3181
        %3202 = vmatprep.subr.bf16.mxu0 0
        %3203 = vmatpush1.bf16.msra.mxu0 %v3182
        %3204 = vmatprep.subr.bf16.mxu0 0
        %3205 = vmatpush1.bf16.msra.mxu0 %v3183
        %3206 = vmatprep.subr.bf16.mxu0 0
        %3207 = vmatpush1.bf16.msra.mxu0 %v3184
        %3208 = vmatprep.subr.bf16.mxu0 0
        %3209 = vmatpush1.bf16.msra.mxu0 %v3185
        %3210 = vmatprep.subr.bf16.mxu0 0
        %3211 = vmatpush1.bf16.msra.mxu0 0
        %3212 = vmatprep.subr.bf16.mxu0 0
        %3213 = vmatpush1.bf16.msra.mxu0 0
        %3214 = vmatprep.subr.bf16.mxu0 0
        %3215 = vmatpush1.bf16.msra.mxu0 0
        %3216 = vmatprep.subr.bf16.mxu0 0
        %3217 = vmatpush1.bf16.msra.mxu0 0
        %3218 = vmatprep.subr.bf16.mxu0 0
        %3219 = vmatpush1.bf16.msra.mxu0 0
        %3220 = vmatprep.subr.bf16.mxu0 0
        %3221 = vmatpush1.bf16.msra.mxu0 0
        %3222 = vmatprep.subr.bf16.mxu0 0
        %3223 = vmatpush1.bf16.msra.mxu0 0
        %3224 = vmatprep.subr.bf16.mxu0 0
        %3225 = vmatpush1.bf16.msra.mxu0 0
        %3226 = vmatprep.mubr.bf16.mxu0 0
        %3227 = vmatmul.mubr.bf16.gmra.mrb[0].mxu0 %v3144
        %v3228 = vpop.f32.mrb[0].mxu0
        %v3229 = vadd.f32 0.0, %v3228
        %v3230 = vpop.f32.mrb[0].mxu0
        %v3231 = vpop.f32.mrb[0].mxu0
        %v3232 = vpop.f32.mrb[0].mxu0
        %3233 = vdwg.mxu0
        %v3234 = vadd.f32 %v3126, %v3229
        %s3235 = scalar_lea.vmem %s3, 1472
        %v3236 = vld [vmem:[%s3235] sm:$0xf]
        %v3237 = vld [vmem:[%s3235 + $0x4] sm:$0xf]
        %v3238 = vld [vmem:[%s3235 + $0x8] sm:$0xf]
        %v3239 = vld [vmem:[%s3235 + $0xc] sm:$0xf]
        %v3240 = vld [vmem:[%s3235 + $0x10] sm:$0xf]
        %v3241 = vld [vmem:[%s3235 + $0x14] sm:$0xf]
        %v3242 = vld [vmem:[%s3235 + $0x18] sm:$0xf]
        %v3243 = vld [vmem:[%s3235 + $0x1c] sm:$0xf]
        %v3244 = vld [vmem:[%s3235 + $0x20] sm:$0xf]
        %v3245 = vld [vmem:[%s3235 + $0x24] sm:$0xf]
        %v3246 = vld [vmem:[%s3235 + $0x28] sm:$0xf]
        %v3247 = vld [vmem:[%s3235 + $0x2c] sm:$0xf]
        %v3248 = vld [vmem:[%s3235 + $0x30] sm:$0xf]
        %v3249 = vld [vmem:[%s3235 + $0x34] sm:$0xf]
        %v3250 = vld [vmem:[%s3235 + $0x38] sm:$0xf]
        %v3251 = vld [vmem:[%s3235 + $0x3c] sm:$0xf]
        %v3252 = vrot.slane %v2602, 3
        %v3270 = vunpack.c.l.b16 %v3236
        %v3271 = vunpack.c.l.b16 %v3237
        %v3272 = vunpack.c.l.b16 %v3238
        %v3273 = vunpack.c.l.b16 %v3239
        %v3274 = vunpack.c.l.b16 %v3240
        %v3275 = vunpack.c.l.b16 %v3241
        %v3276 = vunpack.c.l.b16 %v3242
        %v3277 = vunpack.c.l.b16 %v3243
        %v3278 = vunpack.c.l.b16 %v3244
        %v3279 = vunpack.c.l.b16 %v3245
        %v3280 = vunpack.c.l.b16 %v3246
        %v3281 = vunpack.c.l.b16 %v3247
        %v3282 = vunpack.c.l.b16 %v3248
        %v3283 = vunpack.c.l.b16 %v3249
        %v3284 = vunpack.c.l.b16 %v3250
        %v3285 = vunpack.c.l.b16 %v3251
        %v3286 = vpack.c.b16 %v3271, %v3270
        %v3287 = vpack.c.b16 %v3273, %v3272
        %v3288 = vpack.c.b16 %v3275, %v3274
        %v3289 = vpack.c.b16 %v3277, %v3276
        %v3290 = vpack.c.b16 %v3279, %v3278
        %v3291 = vpack.c.b16 %v3281, %v3280
        %v3292 = vpack.c.b16 %v3283, %v3282
        %v3293 = vpack.c.b16 %v3285, %v3284
        %3302 = vmatprep.subr.bf16.mxu0 0
        %3303 = vmatpush1.bf16.msra.mxu0 %v3286
        %3304 = vmatprep.subr.bf16.mxu0 0
        %3305 = vmatpush1.bf16.msra.mxu0 %v3287
        %3306 = vmatprep.subr.bf16.mxu0 0
        %3307 = vmatpush1.bf16.msra.mxu0 %v3288
        %3308 = vmatprep.subr.bf16.mxu0 0
        %3309 = vmatpush1.bf16.msra.mxu0 %v3289
        %3310 = vmatprep.subr.bf16.mxu0 0
        %3311 = vmatpush1.bf16.msra.mxu0 %v3290
        %3312 = vmatprep.subr.bf16.mxu0 0
        %3313 = vmatpush1.bf16.msra.mxu0 %v3291
        %3314 = vmatprep.subr.bf16.mxu0 0
        %3315 = vmatpush1.bf16.msra.mxu0 %v3292
        %3316 = vmatprep.subr.bf16.mxu0 0
        %3317 = vmatpush1.bf16.msra.mxu0 %v3293
        %3318 = vmatprep.subr.bf16.mxu0 0
        %3319 = vmatpush1.bf16.msra.mxu0 0
        %3320 = vmatprep.subr.bf16.mxu0 0
        %3321 = vmatpush1.bf16.msra.mxu0 0
        %3322 = vmatprep.subr.bf16.mxu0 0
        %3323 = vmatpush1.bf16.msra.mxu0 0
        %3324 = vmatprep.subr.bf16.mxu0 0
        %3325 = vmatpush1.bf16.msra.mxu0 0
        %3326 = vmatprep.subr.bf16.mxu0 0
        %3327 = vmatpush1.bf16.msra.mxu0 0
        %3328 = vmatprep.subr.bf16.mxu0 0
        %3329 = vmatpush1.bf16.msra.mxu0 0
        %3330 = vmatprep.subr.bf16.mxu0 0
        %3331 = vmatpush1.bf16.msra.mxu0 0
        %3332 = vmatprep.subr.bf16.mxu0 0
        %3333 = vmatpush1.bf16.msra.mxu0 0
        %3334 = vmatprep.mubr.bf16.mxu0 0
        %3335 = vmatmul.mubr.bf16.gmra.mrb[0].mxu0 %v3252
        %v3336 = vpop.f32.mrb[0].mxu0
        %v3337 = vadd.f32 0.0, %v3336
        %v3338 = vpop.f32.mrb[0].mxu0
        %v3339 = vpop.f32.mrb[0].mxu0
        %v3340 = vpop.f32.mrb[0].mxu0
        %3341 = vdwg.mxu0
        %v3342 = vadd.f32 %v3234, %v3337
        %s3343 = scalar_lea.vmem %s3, 1536
        %v3344 = vld [vmem:[%s3343] sm:$0xf]
        %v3345 = vld [vmem:[%s3343 + $0x4] sm:$0xf]
        %v3346 = vld [vmem:[%s3343 + $0x8] sm:$0xf]
        %v3347 = vld [vmem:[%s3343 + $0xc] sm:$0xf]
        %v3348 = vld [vmem:[%s3343 + $0x10] sm:$0xf]
        %v3349 = vld [vmem:[%s3343 + $0x14] sm:$0xf]
        %v3350 = vld [vmem:[%s3343 + $0x18] sm:$0xf]
        %v3351 = vld [vmem:[%s3343 + $0x1c] sm:$0xf]
        %v3352 = vld [vmem:[%s3343 + $0x20] sm:$0xf]
        %v3353 = vld [vmem:[%s3343 + $0x24] sm:$0xf]
        %v3354 = vld [vmem:[%s3343 + $0x28] sm:$0xf]
        %v3355 = vld [vmem:[%s3343 + $0x2c] sm:$0xf]
        %v3356 = vld [vmem:[%s3343 + $0x30] sm:$0xf]
        %v3357 = vld [vmem:[%s3343 + $0x34] sm:$0xf]
        %v3358 = vld [vmem:[%s3343 + $0x38] sm:$0xf]
        %v3359 = vld [vmem:[%s3343 + $0x3c] sm:$0xf]
        %v3360 = vrot.slane %v751, 4
        %v3378 = vunpack.c.l.b16 %v3344
        %v3379 = vunpack.c.l.b16 %v3345
        %v3380 = vunpack.c.l.b16 %v3346
        %v3381 = vunpack.c.l.b16 %v3347
        %v3382 = vunpack.c.l.b16 %v3348
        %v3383 = vunpack.c.l.b16 %v3349
        %v3384 = vunpack.c.l.b16 %v3350
        %v3385 = vunpack.c.l.b16 %v3351
        %v3386 = vunpack.c.l.b16 %v3352
        %v3387 = vunpack.c.l.b16 %v3353
        %v3388 = vunpack.c.l.b16 %v3354
        %v3389 = vunpack.c.l.b16 %v3355
        %v3390 = vunpack.c.l.b16 %v3356
        %v3391 = vunpack.c.l.b16 %v3357
        %v3392 = vunpack.c.l.b16 %v3358
        %v3393 = vunpack.c.l.b16 %v3359
        %v3394 = vpack.c.b16 %v3379, %v3378
        %v3395 = vpack.c.b16 %v3381, %v3380
        %v3396 = vpack.c.b16 %v3383, %v3382
        %v3397 = vpack.c.b16 %v3385, %v3384
        %v3398 = vpack.c.b16 %v3387, %v3386
        %v3399 = vpack.c.b16 %v3389, %v3388
        %v3400 = vpack.c.b16 %v3391, %v3390
        %v3401 = vpack.c.b16 %v3393, %v3392
        %3410 = vmatprep.subr.bf16.mxu0 0
        %3411 = vmatpush1.bf16.msra.mxu0 %v3394
        %3412 = vmatprep.subr.bf16.mxu0 0
        %3413 = vmatpush1.bf16.msra.mxu0 %v3395
        %3414 = vmatprep.subr.bf16.mxu0 0
        %3415 = vmatpush1.bf16.msra.mxu0 %v3396
        %3416 = vmatprep.subr.bf16.mxu0 0
        %3417 = vmatpush1.bf16.msra.mxu0 %v3397
        %3418 = vmatprep.subr.bf16.mxu0 0
        %3419 = vmatpush1.bf16.msra.mxu0 %v3398
        %3420 = vmatprep.subr.bf16.mxu0 0
        %3421 = vmatpush1.bf16.msra.mxu0 %v3399
        %3422 = vmatprep.subr.bf16.mxu0 0
        %3423 = vmatpush1.bf16.msra.mxu0 %v3400
        %3424 = vmatprep.subr.bf16.mxu0 0
        %3425 = vmatpush1.bf16.msra.mxu0 %v3401
        %3426 = vmatprep.subr.bf16.mxu0 0
        %3427 = vmatpush1.bf16.msra.mxu0 0
        %3428 = vmatprep.subr.bf16.mxu0 0
        %3429 = vmatpush1.bf16.msra.mxu0 0
        %3430 = vmatprep.subr.bf16.mxu0 0
        %3431 = vmatpush1.bf16.msra.mxu0 0
        %3432 = vmatprep.subr.bf16.mxu0 0
        %3433 = vmatpush1.bf16.msra.mxu0 0
        %3434 = vmatprep.subr.bf16.mxu0 0
        %3435 = vmatpush1.bf16.msra.mxu0 0
        %3436 = vmatprep.subr.bf16.mxu0 0
        %3437 = vmatpush1.bf16.msra.mxu0 0
        %3438 = vmatprep.subr.bf16.mxu0 0
        %3439 = vmatpush1.bf16.msra.mxu0 0
        %3440 = vmatprep.subr.bf16.mxu0 0
        %3441 = vmatpush1.bf16.msra.mxu0 0
        %3442 = vmatprep.mubr.bf16.mxu0 0
        %3443 = vmatmul.mubr.bf16.gmra.mrb[0].mxu0 %v3360
        %v3444 = vpop.f32.mrb[0].mxu0
        %v3445 = vadd.f32 0.0, %v3444
        %v3446 = vpop.f32.mrb[0].mxu0
        %v3447 = vpop.f32.mrb[0].mxu0
        %v3448 = vpop.f32.mrb[0].mxu0
        %3449 = vdwg.mxu0
        %v3450 = vadd.f32 %v3342, %v3445
        %v3451 = vld [vmem:[%s4] sm:$0x1]
        %v3452 = vadd.f32 %v3450, %v3451
        %v3453 = vmax.f32 %v3452, 0.0
        %v3454 = vpack.c.bf16 %v3453, %v3453
        %v3455 = vld [vmem:[%s5] sm:$0xf]
        %v3456 = vld [vmem:[%s5 + $0x4] sm:$0xf]
        %v3457 = vld [vmem:[%s5 + $0x8] sm:$0xf]
        %v3458 = vld [vmem:[%s5 + $0xc] sm:$0xf]
        %v3459 = vld [vmem:[%s5 + $0x10] sm:$0xf]
        %v3460 = vld [vmem:[%s5 + $0x14] sm:$0xf]
        %v3461 = vld [vmem:[%s5 + $0x18] sm:$0xf]
        %v3462 = vld [vmem:[%s5 + $0x1c] sm:$0xf]
        %v3463 = vld [vmem:[%s5 + $0x20] sm:$0xf]
        %v3464 = vld [vmem:[%s5 + $0x24] sm:$0xf]
        %v3465 = vld [vmem:[%s5 + $0x28] sm:$0xf]
        %v3466 = vld [vmem:[%s5 + $0x2c] sm:$0xf]
        %v3467 = vld [vmem:[%s5 + $0x30] sm:$0xf]
        %v3468 = vld [vmem:[%s5 + $0x34] sm:$0xf]
        %v3469 = vld [vmem:[%s5 + $0x38] sm:$0xf]
        %v3470 = vld [vmem:[%s5 + $0x3c] sm:$0xf]
        %v3471 = vld [vmem:[%s6] sm:$0x1]
        %v3488 = vunpack.c.l.b16 %v3455
        %v3489 = vunpack.c.l.b16 %v3456
        %v3490 = vunpack.c.l.b16 %v3457
        %v3491 = vunpack.c.l.b16 %v3458
        %v3492 = vunpack.c.l.b16 %v3459
        %v3493 = vunpack.c.l.b16 %v3460
        %v3494 = vunpack.c.l.b16 %v3461
        %v3495 = vunpack.c.l.b16 %v3462
        %v3496 = vunpack.c.l.b16 %v3463
        %v3497 = vunpack.c.l.b16 %v3464
        %v3498 = vunpack.c.l.b16 %v3465
        %v3499 = vunpack.c.l.b16 %v3466
        %v3500 = vunpack.c.l.b16 %v3467
        %v3501 = vunpack.c.l.b16 %v3468
        %v3502 = vunpack.c.l.b16 %v3469
        %v3503 = vunpack.c.l.b16 %v3470
        %v3504 = vpack.c.b16 %v3489, %v3488
        %v3505 = vpack.c.b16 %v3491, %v3490
        %v3506 = vpack.c.b16 %v3493, %v3492
        %v3507 = vpack.c.b16 %v3495, %v3494
        %v3508 = vpack.c.b16 %v3497, %v3496
        %v3509 = vpack.c.b16 %v3499, %v3498
        %v3510 = vpack.c.b16 %v3501, %v3500
        %v3511 = vpack.c.b16 %v3503, %v3502
        %3520 = vmatprep.subr.bf16.mxu0 0
        %3521 = vmatpush1.bf16.msra.mxu0 %v3504
        %3522 = vmatprep.subr.bf16.mxu0 0
        %3523 = vmatpush1.bf16.msra.mxu0 %v3505
        %3524 = vmatprep.subr.bf16.mxu0 0
        %3525 = vmatpush1.bf16.msra.mxu0 %v3506
        %3526 = vmatprep.subr.bf16.mxu0 0
        %3527 = vmatpush1.bf16.msra.mxu0 %v3507
        %3528 = vmatprep.subr.bf16.mxu0 0
        %3529 = vmatpush1.bf16.msra.mxu0 %v3508
        %3530 = vmatprep.subr.bf16.mxu0 0
        %3531 = vmatpush1.bf16.msra.mxu0 %v3509
        %3532 = vmatprep.subr.bf16.mxu0 0
        %3533 = vmatpush1.bf16.msra.mxu0 %v3510
        %3534 = vmatprep.subr.bf16.mxu0 0
        %3535 = vmatpush1.bf16.msra.mxu0 %v3511
        %3536 = vmatprep.subr.bf16.mxu0 0
        %3537 = vmatpush1.bf16.msra.mxu0 0
        %3538 = vmatprep.subr.bf16.mxu0 0
        %3539 = vmatpush1.bf16.msra.mxu0 0
        %3540 = vmatprep.subr.bf16.mxu0 0
        %3541 = vmatpush1.bf16.msra.mxu0 0
        %3542 = vmatprep.subr.bf16.mxu0 0
        %3543 = vmatpush1.bf16.msra.mxu0 0
        %3544 = vmatprep.subr.bf16.mxu0 0
        %3545 = vmatpush1.bf16.msra.mxu0 0
        %3546 = vmatprep.subr.bf16.mxu0 0
        %3547 = vmatpush1.bf16.msra.mxu0 0
        %3548 = vmatprep.subr.bf16.mxu0 0
        %3549 = vmatpush1.bf16.msra.mxu0 0
        %3550 = vmatprep.subr.bf16.mxu0 0
        %3551 = vmatpush1.bf16.msra.mxu0 0
        %3552 = vmatprep.mubr.bf16.mxu0 0
        %3553 = vmatmul.mubr.bf16.gmra.mrb[0].mxu0 %v3454
        %v3554 = vpop.f32.mrb[0].mxu0
        %v3555 = vadd.f32 %v3471, %v3554
        %v3556 = vpop.f32.mrb[0].mxu0
        %v3557 = vpop.f32.mrb[0].mxu0
        %v3558 = vpop.f32.mrb[0].mxu0
        %3559 = vdwg.mxu0
        %v3560 = vmax.f32 %v3555, 0.0
        %v3561 = vpack.c.bf16 %v3560, %v3560
        %v3562 = vld [vmem:[%s7] sm:$0xf]
        %v3563 = vld [vmem:[%s7 + $0x4] sm:$0xf]
        %v3564 = vld [vmem:[%s7 + $0x8] sm:$0xf]
        %v3565 = vld [vmem:[%s7 + $0xc] sm:$0xf]
        %v3566 = vld [vmem:[%s7 + $0x10] sm:$0xf]
        %v3567 = vld [vmem:[%s7 + $0x14] sm:$0xf]
        %v3568 = vld [vmem:[%s7 + $0x18] sm:$0xf]
        %v3569 = vld [vmem:[%s7 + $0x1c] sm:$0xf]
        %v3570 = vld [vmem:[%s7 + $0x20] sm:$0xf]
        %v3571 = vld [vmem:[%s7 + $0x24] sm:$0xf]
        %v3572 = vld [vmem:[%s7 + $0x28] sm:$0xf]
        %v3573 = vld [vmem:[%s7 + $0x2c] sm:$0xf]
        %v3574 = vld [vmem:[%s7 + $0x30] sm:$0xf]
        %v3575 = vld [vmem:[%s7 + $0x34] sm:$0xf]
        %v3576 = vld [vmem:[%s7 + $0x38] sm:$0xf]
        %v3577 = vld [vmem:[%s7 + $0x3c] sm:$0xf]
        %v3578 = vld [vmem:[%s8] sm:$0x1]
        %v3595 = vunpack.c.l.b16 %v3562
        %v3596 = vunpack.c.l.b16 %v3563
        %v3597 = vunpack.c.l.b16 %v3564
        %v3598 = vunpack.c.l.b16 %v3565
        %v3599 = vunpack.c.l.b16 %v3566
        %v3600 = vunpack.c.l.b16 %v3567
        %v3601 = vunpack.c.l.b16 %v3568
        %v3602 = vunpack.c.l.b16 %v3569
        %v3603 = vunpack.c.l.b16 %v3570
        %v3604 = vunpack.c.l.b16 %v3571
        %v3605 = vunpack.c.l.b16 %v3572
        %v3606 = vunpack.c.l.b16 %v3573
        %v3607 = vunpack.c.l.b16 %v3574
        %v3608 = vunpack.c.l.b16 %v3575
        %v3609 = vunpack.c.l.b16 %v3576
        %v3610 = vunpack.c.l.b16 %v3577
        %v3611 = vpack.c.b16 %v3596, %v3595
        %v3612 = vpack.c.b16 %v3598, %v3597
        %v3613 = vpack.c.b16 %v3600, %v3599
        %v3614 = vpack.c.b16 %v3602, %v3601
        %v3615 = vpack.c.b16 %v3604, %v3603
        %v3616 = vpack.c.b16 %v3606, %v3605
        %v3617 = vpack.c.b16 %v3608, %v3607
        %v3618 = vpack.c.b16 %v3610, %v3609
        %3627 = vmatprep.subr.bf16.mxu0 0
        %3628 = vmatpush1.bf16.msra.mxu0 %v3611
        %3629 = vmatprep.subr.bf16.mxu0 0
        %3630 = vmatpush1.bf16.msra.mxu0 %v3612
        %3631 = vmatprep.subr.bf16.mxu0 0
        %3632 = vmatpush1.bf16.msra.mxu0 %v3613
        %3633 = vmatprep.subr.bf16.mxu0 0
        %3634 = vmatpush1.bf16.msra.mxu0 %v3614
        %3635 = vmatprep.subr.bf16.mxu0 0
        %3636 = vmatpush1.bf16.msra.mxu0 %v3615
        %3637 = vmatprep.subr.bf16.mxu0 0
        %3638 = vmatpush1.bf16.msra.mxu0 %v3616
        %3639 = vmatprep.subr.bf16.mxu0 0
        %3640 = vmatpush1.bf16.msra.mxu0 %v3617
        %3641 = vmatprep.subr.bf16.mxu0 0
        %3642 = vmatpush1.bf16.msra.mxu0 %v3618
        %3643 = vmatprep.subr.bf16.mxu0 0
        %3644 = vmatpush1.bf16.msra.mxu0 0
        %3645 = vmatprep.subr.bf16.mxu0 0
        %3646 = vmatpush1.bf16.msra.mxu0 0
        %3647 = vmatprep.subr.bf16.mxu0 0
        %3648 = vmatpush1.bf16.msra.mxu0 0
        %3649 = vmatprep.subr.bf16.mxu0 0
        %3650 = vmatpush1.bf16.msra.mxu0 0
        %3651 = vmatprep.subr.bf16.mxu0 0
        %3652 = vmatpush1.bf16.msra.mxu0 0
        %3653 = vmatprep.subr.bf16.mxu0 0
        %3654 = vmatpush1.bf16.msra.mxu0 0
        %3655 = vmatprep.subr.bf16.mxu0 0
        %3656 = vmatpush1.bf16.msra.mxu0 0
        %3657 = vmatprep.subr.bf16.mxu0 0
        %3658 = vmatpush1.bf16.msra.mxu0 0
        %3659 = vmatprep.mubr.bf16.mxu0 0
        %3660 = vmatmul.mubr.bf16.gmra.mrb[0].mxu0 %v3561
        %v3661 = vpop.f32.mrb[0].mxu0
        %v3662 = vadd.f32 %v3578, %v3661
        %v3663 = vpop.f32.mrb[0].mxu0
        %v3664 = vpop.f32.mrb[0].mxu0
        %v3665 = vpop.f32.mrb[0].mxu0
        %3666 = vdwg.mxu0
        %3667 = vst [vmem:[%s324] sm:$0x1] %v3662
        %s3668 = sand.u32 %s225, 1
        %s3669 = scalar_lea.sflag [#allocation3], %s3668
        %s3670 = sand.u32 %s225, 1
        %s3671 = scalar_lea.vmem [#allocation2], %s3670
        // Predicated region
        $region57: #{net_forward.3} parent=55 // pred_check
          %p3672 = pneg %p235
        $region58: #{net_forward.3} parent=55 // pred_check_branch
          %3674 = sbr.rel (%p3672) target = $region60
        $region59: #{net_forward.3} parent=55 // pred_region
          %s3676 = ssub.s32 16, 16
          %3677 = vsyncadd %s3669, %s3676
          %s3678 = smul.addr %s23, 16
          %s3679 = scalar_lea.hbm %s9, %s3678
          %s3681 = sshll.u32 %s3671, 4
          %s3682 = int_to_ptr.vmem [resolvable:$true] %s3681
          %3684 = dma.vmem_to_hbm [thread:$0]  %s3682, 16, %s3679, %s3669
        $region60: #{net_forward.3} parent=55 // pred_fallthru
          _
      $region56: #{net_forward.3} parent=5 // pred_fallthru
        _
      %p3685 = scmp.le.s32.totalorder 2, %s18
      // Predicated region
      $region61: #{net_forward.3} parent=5 // pred_check
        %p3686 = pneg %p3685
      $region62: #{net_forward.3} parent=5 // pred_check_branch
        %3688 = sbr.rel (%p3686) target = $region64
      $region63: #{net_forward.3} parent=5 // pred_region
        %s3689 = ssub.s32 %s18, 2
        // Predicated region
        $region65: #{net_forward.3} parent=63 // pred_check
          %p3690 = pneg %p241
        $region66: #{net_forward.3} parent=63 // pred_check_branch
          %3692 = sbr.rel (%p3690) target = $region68
        $region67: #{net_forward.3} parent=63 // pred_region
          %s3693 = sand.u32 %s226, 1
          %s3694 = scalar_lea.sflag [#allocation3], %s3693
          %s3695 = sand.u32 %s226, 1
          %s3696 = scalar_lea.vmem [#allocation2], %s3695
          %3697 = dma.done %s3694, 16
        $region68: #{net_forward.3} parent=63 // pred_fallthru
          _
      $region64: #{net_forward.3} parent=5 // pred_fallthru
        _
    $region6: #{net_forward.3} parent=1 // loop_footer
      %s22 = sadd.s32 1, %s18
    $region7: #{net_forward.3} parent=1 // loop_footer_branch
      %17 = sbr.rel target = $region3
    $region8: #{net_forward.3} parent=1 // loop_exit
      _
    %3698 = vsyncpa [#allocation3], 1
    %s3699 = scalar_lea.sflag [#allocation3], 1
    %3700 = vsyncpa %s3699, 1

</llo_original>
